<compile_context>
chip_gen: v7x
topology: tpu7x:2x2x1
jax: 0.10.0
libtpu: 0.0.40
codegen_flags: <defaults>
</compile_context>

<pallas_src>
import functools

import jax
import jax.numpy as jnp
from jax.experimental import pallas as pl
from jax.experimental.pallas import tpu as pltpu


def _round_up(x, m):
    return (x + m - 1) // m * m


# ---------------------------------------------------------------------------
# Kernel 1: fused GEMM + per-channel affine (folded BN or bias) + optional ReLU
# Used for conv1 (im2col, K = 49*Cin) and proj (space-to-depth, K = ps2*ps2*128)
# ---------------------------------------------------------------------------
def _gemm_affine_kernel(x_ref, w_ref, scale_ref, shift_ref, o_ref, *, apply_relu):
    # x_ref: (TM, K) bf16 row tile, w_ref: (K, N) bf16 (whole array, VMEM-resident)
    acc = jnp.dot(x_ref[...], w_ref[...], preferred_element_type=jnp.float32)
    y = acc * scale_ref[...] + shift_ref[...]          # f32 epilogue
    if apply_relu:
        y = jnp.maximum(y, 0.0)
    o_ref[...] = y.astype(o_ref.dtype)


def _gemm_affine(x2, w, scale, shift, *, out_dtype, apply_relu, tm_max=512):
    """x2: (rows, K) bf16, w: (K, N) bf16, scale/shift: (1, N) f32."""
    rows, K = x2.shape
    N = w.shape[1]
    # Big row tiles (multiple of 8 sublanes; 512 at realistic token counts,
    # shrink on v7x's smaller VMEM if needed).
    tm = min(tm_max, _round_up(rows, 8))
    rows_pad = _round_up(rows, tm)
    if rows_pad != rows:
        x2 = jnp.pad(x2, ((0, rows_pad - rows), (0, 0)))

    out = pl.pallas_call(
        functools.partial(_gemm_affine_kernel, apply_relu=apply_relu),
        out_shape=jax.ShapeDtypeStruct((rows_pad, N), out_dtype),
        grid_spec=pltpu.PrefetchScalarGridSpec(
            num_scalar_prefetch=0,
            grid=(rows_pad // tm,),
            in_specs=[
                pl.BlockSpec((tm, K), lambda i: (i, 0)),          # activations: pipelined
                pl.BlockSpec(memory_space=pltpu.MemorySpace.VMEM),  # weights: resident, single copy
                pl.BlockSpec(memory_space=pltpu.MemorySpace.VMEM),  # scale
                pl.BlockSpec(memory_space=pltpu.MemorySpace.VMEM),  # shift
            ],
            out_specs=pl.BlockSpec((tm, N), lambda i: (i, 0)),
        ),
        compiler_params=pltpu.CompilerParams(
            dimension_semantics=("parallel",),
            vmem_limit_bytes=64 * 1024 * 1024,
        ),
    )(x2, w, scale, shift)
    return out[:rows]


# ---------------------------------------------------------------------------
# Kernel 2: 3x3 stride-1 pad-1 conv + BN + ReLU, whole padded image per step.
# The padded image is flattened to (Hp*Wp, C); because input AND output share
# the padded width Wp, every kernel tap is a single constant row offset, so
# each tap is one contiguous (Ho*Wp, C) x (C, C) MXU matmul — no gathers.
# Two garbage columns per row are discarded in the wrapper.
# ---------------------------------------------------------------------------
def _conv3x3_bn_relu_kernel(x_ref, w_ref, scale_ref, shift_ref, o_ref, *, ho, wp):
    # x_ref: (1, (ho+3)*wp, C) bf16 padded image, w_ref: (9, C, C) bf16
    rows = ho * wp
    acc = None
    for dy in range(3):
        for dx in range(3):
            lhs = x_ref[0, pl.ds(dy * wp + dx, rows), :]
            part = jnp.dot(lhs, w_ref[dy * 3 + dx],
                           preferred_element_type=jnp.float32)
            acc = part if acc is None else acc + part
    y = acc * scale_ref[...] + shift_ref[...]
    y = jnp.maximum(y, 0.0)
    o_ref[0, :, :] = y.astype(o_ref.dtype)


def _conv3x3_bn_relu(x_nhwc, w9, scale, shift):
    """x_nhwc: (B, Ho, Wo, C) bf16 -> (B, Ho, Wo, C) bf16."""
    B, Ho, Wo, C = x_nhwc.shape
    Wp = Wo + 2
    # zero pad: 1 row top, 2 rows bottom (halo + slack so every tap slice stays
    # in bounds in the flattened layout), 1 column each side.
    xp = jnp.pad(x_nhwc, ((0, 0), (1, 2), (1, 1), (0, 0)))
    xf = xp.reshape(B, (Ho + 3) * Wp, C)

    out = pl.pallas_call(
        functools.partial(_conv3x3_bn_relu_kernel, ho=Ho, wp=Wp),
        out_shape=jax.ShapeDtypeStruct((B, Ho * Wp, C), x_nhwc.dtype),
        grid_spec=pltpu.PrefetchScalarGridSpec(
            num_scalar_prefetch=0,
            grid=(B,),
            in_specs=[
                pl.BlockSpec((1, (Ho + 3) * Wp, C), lambda b: (b, 0, 0)),
                pl.BlockSpec(memory_space=pltpu.MemorySpace.VMEM),  # 3x3 weights resident
                pl.BlockSpec(memory_space=pltpu.MemorySpace.VMEM),  # scale
                pl.BlockSpec(memory_space=pltpu.MemorySpace.VMEM),  # shift
            ],
            out_specs=pl.BlockSpec((1, Ho * Wp, C), lambda b: (b, 0, 0)),
        ),
        compiler_params=pltpu.CompilerParams(
            dimension_semantics=("parallel",),
            vmem_limit_bytes=64 * 1024 * 1024,
        ),
    )(xf, w9, scale, shift)
    # drop the 2 garbage columns produced by the width-padded flat layout
    return out.reshape(B, Ho, Wp, C)[:, :, :Wo, :]


def _fold_bn(gamma, beta, mean, var, eps):
    # Inference-mode BatchNorm folded to y = x*scale + shift (done at trace time).
    scale = gamma / jnp.sqrt(var + eps)
    shift = beta - mean * scale
    return (scale.reshape(1, -1).astype(jnp.float32),
            shift.reshape(1, -1).astype(jnp.float32))


# ---------------------------------------------------------------------------
# Full module forward
# ---------------------------------------------------------------------------
def patch_embed_4_2_128(x, params, *, patch_size, eps=1e-5):
    """x: (B, Cin, H, W) f32. Returns (B, embed_dim, H//patch_size, W//patch_size) f32."""
    B, Cin, H, W = x.shape
    ps2 = patch_size // 2
    Ho, Wo = H // 2, W // 2
    Cmid = params["conv1_w"].shape[0]           # 128
    embed_dim = params["proj_w"].shape[0]

    # ---- conv1 (7x7, stride 2, pad 3) + BN1 + ReLU  : im2col GEMM -------------
    x_nhwc = jnp.transpose(x, (0, 2, 3, 1))
    xp = jnp.pad(x_nhwc, ((0, 0), (3, 3), (3, 3), (0, 0)))
    cols = []
    for dy in range(7):
        for dx in range(7):
            cols.append(xp[:, dy:dy + 2 * Ho:2, dx:dx + 2 * Wo:2, :])
    patches = jnp.concatenate(cols, axis=-1).reshape(B * Ho * Wo, 49 * Cin)
    patches = patches.astype(jnp.bfloat16)      # bf16 MXU operands, f32 accumulate

    w1 = jnp.transpose(params["conv1_w"], (2, 3, 1, 0)).reshape(49 * Cin, Cmid)
    s1, t1 = _fold_bn(params["bn1_gamma"], params["bn1_beta"],
                      params["bn1_mean"], params["bn1_var"], eps)
    h = _gemm_affine(patches, w1.astype(jnp.bfloat16), s1, t1,
                     out_dtype=jnp.bfloat16, apply_relu=True)
    h = h.reshape(B, Ho, Wo, Cmid)

    # ---- conv2 / conv3 (3x3, stride 1, pad 1) + BN + ReLU ---------------------
    for name in ("2", "3"):
        w = jnp.transpose(params[f"conv{name}_w"], (2, 3, 1, 0)).reshape(9, Cmid, Cmid)
        s, t = _fold_bn(params[f"bn{name}_gamma"], params[f"bn{name}_beta"],
                        params[f"bn{name}_mean"], params[f"bn{name}_var"], eps)
        h = _conv3x3_bn_relu(h, w.astype(jnp.bfloat16), s, t)

    # ---- proj: (ps2 x ps2) conv, stride ps2, with bias (non-overlapping) ------
    Hq, Wq = Ho // ps2, Wo // ps2
    hp = h.reshape(B, Hq, ps2, Wq, ps2, Cmid)
    hp = jnp.transpose(hp, (0, 1, 3, 2, 4, 5)).reshape(B * Hq * Wq, ps2 * ps2 * Cmid)
    w_proj = jnp.transpose(params["proj_w"], (2, 3, 1, 0)).reshape(ps2 * ps2 * Cmid,
                                                                   embed_dim)
    ones = jnp.ones((1, embed_dim), jnp.float32)
    bias = params["proj_b"].reshape(1, -1).astype(jnp.float32)
    out = _gemm_affine(hp.astype(jnp.bfloat16), w_proj.astype(jnp.bfloat16),
                       ones, bias, out_dtype=jnp.float32, apply_relu=False)
    return jnp.transpose(out.reshape(B, Hq, Wq, embed_dim), (0, 3, 1, 2))


# ---------------------------------------------------------------------------
# Pure-JAX f32 reference (exact conv / eval-mode BN semantics)
# ---------------------------------------------------------------------------
def _reference_forward(x, params, *, patch_size, eps=1e-5):
    def conv(h, w, stride, pad):
        return jax.lax.conv_general_dilated(
            h, w, window_strides=(stride, stride),
            padding=[(pad, pad), (pad, pad)],
            dimension_numbers=("NCHW", "OIHW", "NCHW"))

    def bn(h, g, b, m, v):
        g, b, m, v = (a[None, :, None, None] for a in (g, b, m, v))
        return (h - m) / jnp.sqrt(v + eps) * g + b

    h = jax.nn.relu(bn(conv(x, params["conv1_w"], 2, 3),
                       params["bn1_gamma"], params["bn1_beta"],
                       params["bn1_mean"], params["bn1_var"]))
    h = jax.nn.relu(bn(conv(h, params["conv2_w"], 1, 1),
                       params["bn2_gamma"], params["bn2_beta"],
                       params["bn2_mean"], params["bn2_var"]))
    h = jax.nn.relu(bn(conv(h, params["conv3_w"], 1, 1),
                       params["bn3_gamma"], params["bn3_beta"],
                       params["bn3_mean"], params["bn3_var"]))
    ps2 = patch_size // 2
    out = conv(h, params["proj_w"], ps2, 0) + params["proj_b"][None, :, None, None]
    return out


if __name__ == "__main__":
    # Small shapes consistent with the module: 16x16 image, patch 8 (proj kernel
    # = 4), 3 input channels, the module's fixed 128-filter stem, embed_dim=128.
    B, Cin, H, W = 2, 3, 16, 16
    patch_size = 8
    embed_dim = 128
    Cmid = 128
    ps2 = patch_size // 2

    key = jax.random.PRNGKey(0)
    ks = jax.random.split(key, 9)

    def bn_params(k, c):
        k1, k2, k3, k4 = jax.random.split(k, 4)
        return (1.0 + 0.1 * jax.random.normal(k1, (c,), jnp.float32),
                0.1 * jax.random.normal(k2, (c,), jnp.float32),
                0.1 * jax.random.normal(k3, (c,), jnp.float32),
                jax.random.uniform(k4, (c,), jnp.float32, 0.5, 1.5))

    g1, b1, m1, v1 = bn_params(ks[1], Cmid)
    g2, b2, m2, v2 = bn_params(ks[2], Cmid)
    g3, b3, m3, v3 = bn_params(ks[3], Cmid)

    # TODO(synk): BatchNorm is implemented in inference mode (running stats);
    # training-mode batch statistics are not computed in the kernel.
    params = dict(
        conv1_w=0.08 * jax.random.normal(ks[4], (Cmid, Cin, 7, 7), jnp.float32),
        bn1_gamma=g1, bn1_beta=b1, bn1_mean=m1, bn1_var=v1,
        conv2_w=0.03 * jax.random.normal(ks[5], (Cmid, Cmid, 3, 3), jnp.float32),
        bn2_gamma=g2, bn2_beta=b2, bn2_mean=m2, bn2_var=v2,
        conv3_w=0.03 * jax.random.normal(ks[6], (Cmid, Cmid, 3, 3), jnp.float32),
        bn3_gamma=g3, bn3_beta=b3, bn3_mean=m3, bn3_var=v3,
        proj_w=0.03 * jax.random.normal(ks[7], (embed_dim, Cmid, ps2, ps2), jnp.float32),
        proj_b=0.1 * jax.random.normal(ks[8], (embed_dim,), jnp.float32),
    )

    x = jax.random.normal(ks[0], (B, Cin, H, W), jnp.float32)

    fwd = jax.jit(functools.partial(patch_embed_4_2_128, patch_size=patch_size))
    out = jax.block_until_ready(fwd(x, params))

    ref = _reference_forward(x, params, patch_size=patch_size)
    assert out.shape == (B, embed_dim, H // patch_size, W // patch_size), out.shape
    # bf16 MXU operands vs f32 reference across 4 matmul layers -> loose-ish tol
    assert jnp.allclose(out, ref, atol=7e-2, rtol=7e-2), \
        float(jnp.max(jnp.abs(out - ref)))

    print("KERNEL_OK")
</pallas_src>

<mosaic_0001>
module attributes {stable_mosaic.version = 11 : i64} {
  func.func @_gemm_affine_kernel(%arg0: i32, %arg1: memref<128x147xbf16, #tpu.memory_space<vmem>>, %arg2: memref<147x128xbf16, #tpu.memory_space<vmem>>, %arg3: memref<1x128xf32, #tpu.memory_space<vmem>>, %arg4: memref<1x128xf32, #tpu.memory_space<vmem>>, %arg5: memref<128x128xbf16, #tpu.memory_space<vmem>>) attributes {dimension_semantics = [#tpu.dimension_semantics<parallel>], iteration_bounds = array<i64: 1>, scalar_prefetch = 0 : i64, scratch_operands = 0 : i64, tpu.core_type = #tpu.core_type<tc>, window_params = [{transform_indices = @transform_0, window_bounds = array<i64: 128, 147>}, {pipeline_mode = #tpu.pipeline_mode<synchronous>, transform_indices = @transform_1, window_bounds = array<i64: 147, 128>}, {pipeline_mode = #tpu.pipeline_mode<synchronous>, transform_indices = @transform_2, window_bounds = array<i64: 1, 128>}, {pipeline_mode = #tpu.pipeline_mode<synchronous>, transform_indices = @transform_3, window_bounds = array<i64: 1, 128>}, {transform_indices = @transform_4, window_bounds = array<i64: 128, 128>}]} {
    %c0 = arith.constant 0 : index
    %c0_0 = arith.constant 0 : index
    %0 = vector.load %arg1[%c0, %c0_0] : memref<128x147xbf16, #tpu.memory_space<vmem>>, vector<128x147xbf16>
    %c0_1 = arith.constant 0 : index
    %c0_2 = arith.constant 0 : index
    %1 = vector.load %arg2[%c0_1, %c0_2] : memref<147x128xbf16, #tpu.memory_space<vmem>>, vector<147x128xbf16>
    %cst = arith.constant dense<0.000000e+00> : vector<128x128xf32>
    %2 = tpu.matmul %0, %1, %cst {dimension_numbers = #tpu.dot_dimension_numbers<[1], [0], [0], [1], [0, 0, 1, 1], [], []>} : vector<128x147xbf16>, vector<147x128xbf16>, vector<128x128xf32> -> vector<128x128xf32>
    %c0_3 = arith.constant 0 : index
    %c0_4 = arith.constant 0 : index
    %3 = vector.load %arg3[%c0_3, %c0_4] : memref<1x128xf32, #tpu.memory_space<vmem>>, vector<1x128xf32>
    %4 = vector.broadcast %3 : vector<1x128xf32> to vector<128x128xf32>
    %5 = arith.mulf %2, %4 : vector<128x128xf32>
    %c0_5 = arith.constant 0 : index
    %c0_6 = arith.constant 0 : index
    %6 = vector.load %arg4[%c0_5, %c0_6] : memref<1x128xf32, #tpu.memory_space<vmem>>, vector<1x128xf32>
    %7 = vector.broadcast %6 : vector<1x128xf32> to vector<128x128xf32>
    %8 = arith.addf %5, %7 : vector<128x128xf32>
    %cst_7 = arith.constant 0.000000e+00 : f32
    %9 = vector.broadcast %cst_7 : f32 to vector<128x128xf32>
    %10 = arith.maximumf %8, %9 : vector<128x128xf32>
    %11 = arith.truncf %10 : vector<128x128xf32> to vector<128x128xbf16>
    %c0_8 = arith.constant 0 : index
    %c0_9 = arith.constant 0 : index
    %12 = vector.load %arg5[%c0_8, %c0_9] : memref<128x128xbf16, #tpu.memory_space<vmem>>, vector<128x128xbf16>
    tpu.vector_store %arg5[%c0_8, %c0_9], %11 {strides = array<i32>} : memref<128x128xbf16, #tpu.memory_space<vmem>>, vector<128x128xbf16>,
    return
  }
  func.func @transform_0(%arg0: i32) -> (i32, i32) {
    %c0_i32 = arith.constant 0 : i32
    %c0_i32_0 = arith.constant 0 : i32
    return %arg0, %c0_i32 : i32, i32
  }
  func.func @transform_1(%arg0: i32) -> (i32, i32) {
    %c0_i32 = arith.constant 0 : i32
    %c0_i32_0 = arith.constant 0 : i32
    %c0_i32_1 = arith.constant 0 : i32
    return %c0_i32, %c0_i32_0 : i32, i32
  }
  func.func @transform_2(%arg0: i32) -> (i32, i32) {
    %c0_i32 = arith.constant 0 : i32
    %c0_i32_0 = arith.constant 0 : i32
    %c0_i32_1 = arith.constant 0 : i32
    return %c0_i32, %c0_i32_0 : i32, i32
  }
  func.func @transform_3(%arg0: i32) -> (i32, i32) {
    %c0_i32 = arith.constant 0 : i32
    %c0_i32_0 = arith.constant 0 : i32
    %c0_i32_1 = arith.constant 0 : i32
    return %c0_i32, %c0_i32_0 : i32, i32
  }
  func.func @transform_4(%arg0: i32) -> (i32, i32) {
    %c0_i32 = arith.constant 0 : i32
    %c0_i32_0 = arith.constant 0 : i32
    return %arg0, %c0_i32 : i32, i32
  }
}

module attributes {stable_mosaic.version = 11 : i64} {
  func.func @_conv3x3_bn_relu_kernel(%arg0: i32, %arg1: memref<1x110x128xbf16, #tpu.memory_space<vmem>>, %arg2: memref<9x128x128xbf16, #tpu.memory_space<vmem>>, %arg3: memref<1x128xf32, #tpu.memory_space<vmem>>, %arg4: memref<1x128xf32, #tpu.memory_space<vmem>>, %arg5: memref<1x80x128xbf16, #tpu.memory_space<vmem>>) attributes {dimension_semantics = [#tpu.dimension_semantics<parallel>], iteration_bounds = array<i64: 2>, scalar_prefetch = 0 : i64, scratch_operands = 0 : i64, tpu.core_type = #tpu.core_type<tc>, window_params = [{transform_indices = @transform_0, window_bounds = array<i64: 1, 110, 128>}, {pipeline_mode = #tpu.pipeline_mode<synchronous>, transform_indices = @transform_1, window_bounds = array<i64: 9, 128, 128>}, {pipeline_mode = #tpu.pipeline_mode<synchronous>, transform_indices = @transform_2, window_bounds = array<i64: 1, 128>}, {pipeline_mode = #tpu.pipeline_mode<synchronous>, transform_indices = @transform_3, window_bounds = array<i64: 1, 128>}, {transform_indices = @transform_4, window_bounds = array<i64: 1, 80, 128>}]} {
    %c0 = arith.constant 0 : index
    %c0_0 = arith.constant 0 : index
    %c0_1 = arith.constant 0 : index
    %0 = vector.load %arg1[%c0, %c0_0, %c0_1] : memref<1x110x128xbf16, #tpu.memory_space<vmem>>, vector<1x80x128xbf16>
    %1 = vector.shape_cast %0 : vector<1x80x128xbf16> to vector<80x128xbf16>
    %c0_2 = arith.constant 0 : index
    %c0_3 = arith.constant 0 : index
    %c0_4 = arith.constant 0 : index
    %2 = vector.load %arg2[%c0_2, %c0_3, %c0_4] : memref<9x128x128xbf16, #tpu.memory_space<vmem>>, vector<1x128x128xbf16>
    %3 = vector.shape_cast %2 : vector<1x128x128xbf16> to vector<128x128xbf16>
    %cst = arith.constant dense<0.000000e+00> : vector<80x128xf32>
    %4 = tpu.matmul %1, %3, %cst {dimension_numbers = #tpu.dot_dimension_numbers<[1], [0], [0], [1], [0, 0, 1, 1], [], []>} : vector<80x128xbf16>, vector<128x128xbf16>, vector<80x128xf32> -> vector<80x128xf32>
    %c0_5 = arith.constant 0 : index
    %c1 = arith.constant 1 : index
    %c0_6 = arith.constant 0 : index
    %5 = vector.load %arg1[%c0_5, %c1, %c0_6] : memref<1x110x128xbf16, #tpu.memory_space<vmem>>, vector<1x80x128xbf16>
    %6 = vector.shape_cast %5 : vector<1x80x128xbf16> to vector<80x128xbf16>
    %c1_7 = arith.constant 1 : index
    %c0_8 = arith.constant 0 : index
    %c0_9 = arith.constant 0 : index
    %7 = vector.load %arg2[%c1_7, %c0_8, %c0_9] : memref<9x128x128xbf16, #tpu.memory_space<vmem>>, vector<1x128x128xbf16>
    %8 = vector.shape_cast %7 : vector<1x128x128xbf16> to vector<128x128xbf16>
    %cst_10 = arith.constant dense<0.000000e+00> : vector<80x128xf32>
    %9 = tpu.matmul %6, %8, %cst_10 {dimension_numbers = #tpu.dot_dimension_numbers<[1], [0], [0], [1], [0, 0, 1, 1], [], []>} : vector<80x128xbf16>, vector<128x128xbf16>, vector<80x128xf32> -> vector<80x128xf32>
    %10 = arith.addf %4, %9 : vector<80x128xf32>
    %c0_11 = arith.constant 0 : index
    %c2 = arith.constant 2 : index
    %c0_12 = arith.constant 0 : index
    %11 = vector.load %arg1[%c0_11, %c2, %c0_12] : memref<1x110x128xbf16, #tpu.memory_space<vmem>>, vector<1x80x128xbf16>
    %12 = vector.shape_cast %11 : vector<1x80x128xbf16> to vector<80x128xbf16>
    %c2_13 = arith.constant 2 : index
    %c0_14 = arith.constant 0 : index
    %c0_15 = arith.constant 0 : index
    %13 = vector.load %arg2[%c2_13, %c0_14, %c0_15] : memref<9x128x128xbf16, #tpu.memory_space<vmem>>, vector<1x128x128xbf16>
    %14 = vector.shape_cast %13 : vector<1x128x128xbf16> to vector<128x128xbf16>
    %cst_16 = arith.constant dense<0.000000e+00> : vector<80x128xf32>
    %15 = tpu.matmul %12, %14, %cst_16 {dimension_numbers = #tpu.dot_dimension_numbers<[1], [0], [0], [1], [0, 0, 1, 1], [], []>} : vector<80x128xbf16>, vector<128x128xbf16>, vector<80x128xf32> -> vector<80x128xf32>
    %16 = arith.addf %10, %15 : vector<80x128xf32>
    %c0_17 = arith.constant 0 : index
    %c10 = arith.constant 10 : index
    %c0_18 = arith.constant 0 : index
    %17 = vector.load %arg1[%c0_17, %c10, %c0_18] : memref<1x110x128xbf16, #tpu.memory_space<vmem>>, vector<1x80x128xbf16>
    %18 = vector.shape_cast %17 : vector<1x80x128xbf16> to vector<80x128xbf16>
    %c3 = arith.constant 3 : index
    %c0_19 = arith.constant 0 : index
    %c0_20 = arith.constant 0 : index
    %19 = vector.load %arg2[%c3, %c0_19, %c0_20] : memref<9x128x128xbf16, #tpu.memory_space<vmem>>, vector<1x128x128xbf16>
    %20 = vector.shape_cast %19 : vector<1x128x128xbf16> to vector<128x128xbf16>
    %cst_21 = arith.constant dense<0.000000e+00> : vector<80x128xf32>
    %21 = tpu.matmul %18, %20, %cst_21 {dimension_numbers = #tpu.dot_dimension_numbers<[1], [0], [0], [1], [0, 0, 1, 1], [], []>} : vector<80x128xbf16>, vector<128x128xbf16>, vector<80x128xf32> -> vector<80x128xf32>
    %22 = arith.addf %16, %21 : vector<80x128xf32>
    %c0_22 = arith.constant 0 : index
    %c11 = arith.constant 11 : index
    %c0_23 = arith.constant 0 : index
    %23 = vector.load %arg1[%c0_22, %c11, %c0_23] : memref<1x110x128xbf16, #tpu.memory_space<vmem>>, vector<1x80x128xbf16>
    %24 = vector.shape_cast %23 : vector<1x80x128xbf16> to vector<80x128xbf16>
    %c4 = arith.constant 4 : index
    %c0_24 = arith.constant 0 : index
    %c0_25 = arith.constant 0 : index
    %25 = vector.load %arg2[%c4, %c0_24, %c0_25] : memref<9x128x128xbf16, #tpu.memory_space<vmem>>, vector<1x128x128xbf16>
    %26 = vector.shape_cast %25 : vector<1x128x128xbf16> to vector<128x128xbf16>
    %cst_26 = arith.constant dense<0.000000e+00> : vector<80x128xf32>
    %27 = tpu.matmul %24, %26, %cst_26 {dimension_numbers = #tpu.dot_dimension_numbers<[1], [0], [0], [1], [0, 0, 1, 1], [], []>} : vector<80x128xbf16>, vector<128x128xbf16>, vector<80x128xf32> -> vector<80x128xf32>
    %28 = arith.addf %22, %27 : vector<80x128xf32>
    %c0_27 = arith.constant 0 : index
    %c12 = arith.constant 12 : index
    %c0_28 = arith.constant 0 : index
    %29 = vector.load %arg1[%c0_27, %c12, %c0_28] : memref<1x110x128xbf16, #tpu.memory_space<vmem>>, vector<1x80x128xbf16>
    %30 = vector.shape_cast %29 : vector<1x80x128xbf16> to vector<80x128xbf16>
    %c5 = arith.constant 5 : index
    %c0_29 = arith.constant 0 : index
    %c0_30 = arith.constant 0 : index
    %31 = vector.load %arg2[%c5, %c0_29, %c0_30] : memref<9x128x128xbf16, #tpu.memory_space<vmem>>, vector<1x128x128xbf16>
    %32 = vector.shape_cast %31 : vector<1x128x128xbf16> to vector<128x128xbf16>
    %cst_31 = arith.constant dense<0.000000e+00> : vector<80x128xf32>
    %33 = tpu.matmul %30, %32, %cst_31 {dimension_numbers = #tpu.dot_dimension_numbers<[1], [0], [0], [1], [0, 0, 1, 1], [], []>} : vector<80x128xbf16>, vector<128x128xbf16>, vector<80x128xf32> -> vector<80x128xf32>
    %34 = arith.addf %28, %33 : vector<80x128xf32>
    %c0_32 = arith.constant 0 : index
    %c20 = arith.constant 20 : index
    %c0_33 = arith.constant 0 : index
    %35 = vector.load %arg1[%c0_32, %c20, %c0_33] : memref<1x110x128xbf16, #tpu.memory_space<vmem>>, vector<1x80x128xbf16>
    %36 = vector.shape_cast %35 : vector<1x80x128xbf16> to vector<80x128xbf16>
    %c6 = arith.constant 6 : index
    %c0_34 = arith.constant 0 : index
    %c0_35 = arith.constant 0 : index
    %37 = vector.load %arg2[%c6, %c0_34, %c0_35] : memref<9x128x128xbf16, #tpu.memory_space<vmem>>, vector<1x128x128xbf16>
    %38 = vector.shape_cast %37 : vector<1x128x128xbf16> to vector<128x128xbf16>
    %cst_36 = arith.constant dense<0.000000e+00> : vector<80x128xf32>
    %39 = tpu.matmul %36, %38, %cst_36 {dimension_numbers = #tpu.dot_dimension_numbers<[1], [0], [0], [1], [0, 0, 1, 1], [], []>} : vector<80x128xbf16>, vector<128x128xbf16>, vector<80x128xf32> -> vector<80x128xf32>
    %40 = arith.addf %34, %39 : vector<80x128xf32>
    %c0_37 = arith.constant 0 : index
    %c21 = arith.constant 21 : index
    %c0_38 = arith.constant 0 : index
    %41 = vector.load %arg1[%c0_37, %c21, %c0_38] : memref<1x110x128xbf16, #tpu.memory_space<vmem>>, vector<1x80x128xbf16>
    %42 = vector.shape_cast %41 : vector<1x80x128xbf16> to vector<80x128xbf16>
    %c7 = arith.constant 7 : index
    %c0_39 = arith.constant 0 : index
    %c0_40 = arith.constant 0 : index
    %43 = vector.load %arg2[%c7, %c0_39, %c0_40] : memref<9x128x128xbf16, #tpu.memory_space<vmem>>, vector<1x128x128xbf16>
    %44 = vector.shape_cast %43 : vector<1x128x128xbf16> to vector<128x128xbf16>
    %cst_41 = arith.constant dense<0.000000e+00> : vector<80x128xf32>
    %45 = tpu.matmul %42, %44, %cst_41 {dimension_numbers = #tpu.dot_dimension_numbers<[1], [0], [0], [1], [0, 0, 1, 1], [], []>} : vector<80x128xbf16>, vector<128x128xbf16>, vector<80x128xf32> -> vector<80x128xf32>
    %46 = arith.addf %40, %45 : vector<80x128xf32>
    %c0_42 = arith.constant 0 : index
    %c22 = arith.constant 22 : index
    %c0_43 = arith.constant 0 : index
    %47 = vector.load %arg1[%c0_42, %c22, %c0_43] : memref<1x110x128xbf16, #tpu.memory_space<vmem>>, vector<1x80x128xbf16>
    %48 = vector.shape_cast %47 : vector<1x80x128xbf16> to vector<80x128xbf16>
    %c8 = arith.constant 8 : index
    %c0_44 = arith.constant 0 : index
    %c0_45 = arith.constant 0 : index
    %49 = vector.load %arg2[%c8, %c0_44, %c0_45] : memref<9x128x128xbf16, #tpu.memory_space<vmem>>, vector<1x128x128xbf16>
    %50 = vector.shape_cast %49 : vector<1x128x128xbf16> to vector<128x128xbf16>
    %cst_46 = arith.constant dense<0.000000e+00> : vector<80x128xf32>
    %51 = tpu.matmul %48, %50, %cst_46 {dimension_numbers = #tpu.dot_dimension_numbers<[1], [0], [0], [1], [0, 0, 1, 1], [], []>} : vector<80x128xbf16>, vector<128x128xbf16>, vector<80x128xf32> -> vector<80x128xf32>
    %52 = arith.addf %46, %51 : vector<80x128xf32>
    %c0_47 = arith.constant 0 : index
    %c0_48 = arith.constant 0 : index
    %53 = vector.load %arg3[%c0_47, %c0_48] : memref<1x128xf32, #tpu.memory_space<vmem>>, vector<1x128xf32>
    %54 = vector.broadcast %53 : vector<1x128xf32> to vector<80x128xf32>
    %55 = arith.mulf %52, %54 : vector<80x128xf32>
    %c0_49 = arith.constant 0 : index
    %c0_50 = arith.constant 0 : index
    %56 = vector.load %arg4[%c0_49, %c0_50] : memref<1x128xf32, #tpu.memory_space<vmem>>, vector<1x128xf32>
    %57 = vector.broadcast %56 : vector<1x128xf32> to vector<80x128xf32>
    %58 = arith.addf %55, %57 : vector<80x128xf32>
    %cst_51 = arith.constant 0.000000e+00 : f32
    %59 = vector.broadcast %cst_51 : f32 to vector<80x128xf32>
    %60 = arith.maximumf %58, %59 : vector<80x128xf32>
    %61 = arith.truncf %60 : vector<80x128xf32> to vector<80x128xbf16>
    %c0_52 = arith.constant 0 : index
    %c0_53 = arith.constant 0 : index
    %c0_54 = arith.constant 0 : index
    %62 = vector.load %arg5[%c0_52, %c0_53, %c0_54] : memref<1x80x128xbf16, #tpu.memory_space<vmem>>, vector<1x80x128xbf16>
    %63 = vector.shape_cast %62 : vector<1x80x128xbf16> to vector<80x128xbf16>
    %64 = vector.shape_cast %61 : vector<80x128xbf16> to vector<1x80x128xbf16>
    tpu.vector_store %arg5[%c0_52, %c0_53, %c0_54], %64 {strides = array<i32>} : memref<1x80x128xbf16, #tpu.memory_space<vmem>>, vector<1x80x128xbf16>,
    return
  }
  func.func @transform_0(%arg0: i32) -> (i32, i32, i32) {
    %c0_i32 = arith.constant 0 : i32
    %c0_i32_0 = arith.constant 0 : i32
    %c0_i32_1 = arith.constant 0 : i32
    return %arg0, %c0_i32, %c0_i32_0 : i32, i32, i32
  }
  func.func @transform_1(%arg0: i32) -> (i32, i32, i32) {
    %c0_i32 = arith.constant 0 : i32
    %c0_i32_0 = arith.constant 0 : i32
    %c0_i32_1 = arith.constant 0 : i32
    %c0_i32_2 = arith.constant 0 : i32
    return %c0_i32, %c0_i32_0, %c0_i32_1 : i32, i32, i32
  }
  func.func @transform_2(%arg0: i32) -> (i32, i32) {
    %c0_i32 = arith.constant 0 : i32
    %c0_i32_0 = arith.constant 0 : i32
    %c0_i32_1 = arith.constant 0 : i32
    return %c0_i32, %c0_i32_0 : i32, i32
  }
  func.func @transform_3(%arg0: i32) -> (i32, i32) {
    %c0_i32 = arith.constant 0 : i32
    %c0_i32_0 = arith.constant 0 : i32
    %c0_i32_1 = arith.constant 0 : i32
    return %c0_i32, %c0_i32_0 : i32, i32
  }
  func.func @transform_4(%arg0: i32) -> (i32, i32, i32) {
    %c0_i32 = arith.constant 0 : i32
    %c0_i32_0 = arith.constant 0 : i32
    %c0_i32_1 = arith.constant 0 : i32
    return %arg0, %c0_i32, %c0_i32_0 : i32, i32, i32
  }
}

module attributes {stable_mosaic.version = 11 : i64} {
  func.func @_gemm_affine_kernel(%arg0: i32, %arg1: memref<8x2048xbf16, #tpu.memory_space<vmem>>, %arg2: memref<2048x128xbf16, #tpu.memory_space<vmem>>, %arg3: memref<1x128xf32, #tpu.memory_space<vmem>>, %arg4: memref<1x128xf32, #tpu.memory_space<vmem>>, %arg5: memref<8x128xf32, #tpu.memory_space<vmem>>) attributes {dimension_semantics = [#tpu.dimension_semantics<parallel>], iteration_bounds = array<i64: 1>, scalar_prefetch = 0 : i64, scratch_operands = 0 : i64, tpu.core_type = #tpu.core_type<tc>, window_params = [{transform_indices = @transform_0, window_bounds = array<i64: 8, 2048>}, {pipeline_mode = #tpu.pipeline_mode<synchronous>, transform_indices = @transform_1, window_bounds = array<i64: 2048, 128>}, {pipeline_mode = #tpu.pipeline_mode<synchronous>, transform_indices = @transform_2, window_bounds = array<i64: 1, 128>}, {pipeline_mode = #tpu.pipeline_mode<synchronous>, transform_indices = @transform_3, window_bounds = array<i64: 1, 128>}, {transform_indices = @transform_4, window_bounds = array<i64: 8, 128>}]} {
    %c0 = arith.constant 0 : index
    %c0_0 = arith.constant 0 : index
    %0 = vector.load %arg1[%c0, %c0_0] : memref<8x2048xbf16, #tpu.memory_space<vmem>>, vector<8x2048xbf16>
    %c0_1 = arith.constant 0 : index
    %c0_2 = arith.constant 0 : index
    %1 = vector.load %arg2[%c0_1, %c0_2] : memref<2048x128xbf16, #tpu.memory_space<vmem>>, vector<2048x128xbf16>
    %cst = arith.constant dense<0.000000e+00> : vector<8x128xf32>
    %2 = tpu.matmul %0, %1, %cst {dimension_numbers = #tpu.dot_dimension_numbers<[1], [0], [0], [1], [0, 0, 1, 1], [], []>} : vector<8x2048xbf16>, vector<2048x128xbf16>, vector<8x128xf32> -> vector<8x128xf32>
    %c0_3 = arith.constant 0 : index
    %c0_4 = arith.constant 0 : index
    %3 = vector.load %arg3[%c0_3, %c0_4] : memref<1x128xf32, #tpu.memory_space<vmem>>, vector<1x128xf32>
    %4 = vector.broadcast %3 : vector<1x128xf32> to vector<8x128xf32>
    %5 = arith.mulf %2, %4 : vector<8x128xf32>
    %c0_5 = arith.constant 0 : index
    %c0_6 = arith.constant 0 : index
    %6 = vector.load %arg4[%c0_5, %c0_6] : memref<1x128xf32, #tpu.memory_space<vmem>>, vector<1x128xf32>
    %7 = vector.broadcast %6 : vector<1x128xf32> to vector<8x128xf32>
    %8 = arith.addf %5, %7 : vector<8x128xf32>
    %c0_7 = arith.constant 0 : index
    %c0_8 = arith.constant 0 : index
    %9 = vector.load %arg5[%c0_7, %c0_8] : memref<8x128xf32, #tpu.memory_space<vmem>>, vector<8x128xf32>
    tpu.vector_store %arg5[%c0_7, %c0_8], %8 {strides = array<i32>} : memref<8x128xf32, #tpu.memory_space<vmem>>, vector<8x128xf32>,
    return
  }
  func.func @transform_0(%arg0: i32) -> (i32, i32) {
    %c0_i32 = arith.constant 0 : i32
    %c0_i32_0 = arith.constant 0 : i32
    return %arg0, %c0_i32 : i32, i32
  }
  func.func @transform_1(%arg0: i32) -> (i32, i32) {
    %c0_i32 = arith.constant 0 : i32
    %c0_i32_0 = arith.constant 0 : i32
    %c0_i32_1 = arith.constant 0 : i32
    return %c0_i32, %c0_i32_0 : i32, i32
  }
  func.func @transform_2(%arg0: i32) -> (i32, i32) {
    %c0_i32 = arith.constant 0 : i32
    %c0_i32_0 = arith.constant 0 : i32
    %c0_i32_1 = arith.constant 0 : i32
    return %c0_i32, %c0_i32_0 : i32, i32
  }
  func.func @transform_3(%arg0: i32) -> (i32, i32) {
    %c0_i32 = arith.constant 0 : i32
    %c0_i32_0 = arith.constant 0 : i32
    %c0_i32_1 = arith.constant 0 : i32
    return %c0_i32, %c0_i32_0 : i32, i32
  }
  func.func @transform_4(%arg0: i32) -> (i32, i32) {
    %c0_i32 = arith.constant 0 : i32
    %c0_i32_0 = arith.constant 0 : i32
    return %arg0, %c0_i32 : i32, i32
  }
}

</mosaic_0001>

<llo_original>
// kernel: patch_embed_4_2_128.4
$region0: #{patch_embed_4_2_128.4}
  #allocation0 [shape = 'u32[]', space=smem, size = 0x4, offset = 0x4, fixed_abs, tag = 'smem constant byte address 0x4 - core index']
  #allocation1 [shape = 'u32[144,128]{1,0:T(1,128)}', space=vmem, size = 0x12000, scoped, tag = 'internal scratch']
  %s0 = inlined_call_operand.hbm [shape: bf16[128,147], index: 0, kind: input, shape index: {}]
  %s1 = inlined_call_operand.hbm [shape: bf16[147,128], index: 1, kind: input, shape index: {}]
  %s2 = inlined_call_operand.hbm [shape: f32[1,128], index: 2, kind: input, shape index: {}]
  %s3 = inlined_call_operand.hbm [shape: f32[1,128], index: 3, kind: input, shape index: {}]
  %s4 = inlined_call_operand.hbm [shape: bf16[128,128], index: 4, kind: output, shape index: {}]
  %s5 = sld [smem:[#allocation0]]
  $region42: #{patch_embed_4_2_128.4} parent=0
    _
  %s7 = ssub.s32 1, %s5
  %s8 = scalar_select 0, %s7, %s5
  $region1: #{patch_embed_4_2_128.4} parent=0
    #allocation2 [shape = 'u8[65536]{0}', space=vmem, size = 0x10000, scoped, tag = 'input window, operand 0, single buffered']
    #allocation3 [shape = 's32[1]{0}', space=sflag, size = 0x4, scoped, tag = 'scoped memory for patch_embed_4_2_128.4']
    #allocation4 [shape = 's32[1]{0}', space=sflag, size = 0x4, scoped, tag = 'scoped memory for patch_embed_4_2_128.4']
    #allocation5 [shape = 'u8[38912]{0}', space=vmem, size = 0x9800, scoped, tag = 'input window, operand 1, single buffered']
    #allocation6 [shape = 's32[1]{0}', space=sflag, size = 0x4, scoped, tag = 'scoped memory for patch_embed_4_2_128.4']
    #allocation7 [shape = 'u8[512]{0}', space=vmem, size = 0x400, scoped, tag = 'input window, operand 2, single buffered']
    #allocation8 [shape = 'u8[512]{0}', space=vmem, size = 0x400, scoped, tag = 'input window, operand 3, single buffered']
    #allocation9 [shape = 's32[1]{0}', space=sflag, size = 0x4, scoped, tag = 'scoped memory for patch_embed_4_2_128.4']
    #allocation10 [shape = 'u8[32768]{0}', space=vmem, size = 0x8000, scoped, tag = 'output window, operand 0, single buffered']
    %9 = vsyncpa [#allocation3], 0
    %10 = vsyncpa [#allocation6], 0
    %11 = vsyncpa [#allocation9], 0
    %12 = vsyncpa [#allocation4], 0
    // Predicated region
    $region2: #{patch_embed_4_2_128.4} parent=1 // pred_check
      _
    $region3: #{patch_embed_4_2_128.4} parent=1 // pred_check_branch
      %14 = sbr.rel (0) target = $region5
    $region4: #{patch_embed_4_2_128.4} parent=1 // pred_region
      %s16 = ssub.s32 2048, 2048
      %17 = vsyncadd [#allocation3], %s16
      %s18 = sshll.u32 [#allocation2], 4
      %s19 = int_to_ptr.vmem [resolvable:$true] %s18
      %24 = dma.hbm_to_vmem [thread:$0]  %s0, 2048, %s19, [#allocation3], 128, 128, 8
    $region5: #{patch_embed_4_2_128.4} parent=1 // pred_fallthru
      _
    // Predicated region
    $region6: #{patch_embed_4_2_128.4} parent=1 // pred_check
      _
    $region7: #{patch_embed_4_2_128.4} parent=1 // pred_check_branch
      %26 = sbr.rel (0) target = $region9
    $region8: #{patch_embed_4_2_128.4} parent=1 // pred_region
      %s28 = ssub.s32 1216, 1216
      %29 = vsyncadd [#allocation6], %s28
      %s30 = sshll.u32 [#allocation5], 4
      %s31 = int_to_ptr.vmem [resolvable:$true] %s30
      %36 = dma.hbm_to_vmem [thread:$0]  %s1, 1216, %s31, [#allocation6], 64, 64, 4
    $region9: #{patch_embed_4_2_128.4} parent=1 // pred_fallthru
      _
    // Predicated region
    $region10: #{patch_embed_4_2_128.4} parent=1 // pred_check
      _
    $region11: #{patch_embed_4_2_128.4} parent=1 // pred_check_branch
      %38 = sbr.rel (0) target = $region13
    $region12: #{patch_embed_4_2_128.4} parent=1 // pred_region
      %s40 = ssub.s32 16, 16
      %41 = vsyncadd [#allocation6], %s40
      %s43 = sshll.u32 [#allocation7], 4
      %s44 = int_to_ptr.vmem [resolvable:$true] %s43
      %46 = dma.hbm_to_vmem [thread:$0]  %s2, 16, %s44, [#allocation6]
    $region13: #{patch_embed_4_2_128.4} parent=1 // pred_fallthru
      _
    // Predicated region
    $region14: #{patch_embed_4_2_128.4} parent=1 // pred_check
      _
    $region15: #{patch_embed_4_2_128.4} parent=1 // pred_check_branch
      %48 = sbr.rel (0) target = $region17
    $region16: #{patch_embed_4_2_128.4} parent=1 // pred_region
      %s50 = ssub.s32 16, 16
      %51 = vsyncadd [#allocation9], %s50
      %s53 = sshll.u32 [#allocation8], 4
      %s54 = int_to_ptr.vmem [resolvable:$true] %s53
      %56 = dma.hbm_to_vmem [thread:$0]  %s3, 16, %s54, [#allocation9]
    $region17: #{patch_embed_4_2_128.4} parent=1 // pred_fallthru
      _
    // Predicated region
    $region18: #{patch_embed_4_2_128.4} parent=1 // pred_check
      _
    $region19: #{patch_embed_4_2_128.4} parent=1 // pred_check_branch
      %58 = sbr.rel (0) target = $region21
    $region20: #{patch_embed_4_2_128.4} parent=1 // pred_region
      %59 = dma.done [#allocation3], 2048
    $region21: #{patch_embed_4_2_128.4} parent=1 // pred_fallthru
      _
    // Predicated region
    $region22: #{patch_embed_4_2_128.4} parent=1 // pred_check
      _
    $region23: #{patch_embed_4_2_128.4} parent=1 // pred_check_branch
      %61 = sbr.rel (0) target = $region25
    $region24: #{patch_embed_4_2_128.4} parent=1 // pred_region
      %62 = dma.done [#allocation6], 1216
    $region25: #{patch_embed_4_2_128.4} parent=1 // pred_fallthru
      _
    // Predicated region
    $region26: #{patch_embed_4_2_128.4} parent=1 // pred_check
      _
    $region27: #{patch_embed_4_2_128.4} parent=1 // pred_check_branch
      %64 = sbr.rel (0) target = $region29
    $region28: #{patch_embed_4_2_128.4} parent=1 // pred_region
      %65 = dma.done [#allocation6], 16
    $region29: #{patch_embed_4_2_128.4} parent=1 // pred_fallthru
      _
    // Predicated region
    $region30: #{patch_embed_4_2_128.4} parent=1 // pred_check
      _
    $region31: #{patch_embed_4_2_128.4} parent=1 // pred_check_branch
      %67 = sbr.rel (0) target = $region33
    $region32: #{patch_embed_4_2_128.4} parent=1 // pred_region
      %68 = dma.done [#allocation9], 16
    $region33: #{patch_embed_4_2_128.4} parent=1 // pred_fallthru
      _
    %v70 = vld [vmem:[#allocation2] sm:$0xff]
    %v71 = vld [vmem:[#allocation2 + $0x8] sm:$0xff]
    %v72 = vld [vmem:[#allocation2 + $0x10] sm:$0xff]
    %v73 = vld [vmem:[#allocation2 + $0x18] sm:$0xff]
    %v74 = vld [vmem:[#allocation2 + $0x20] sm:$0xff]
    %v75 = vld [vmem:[#allocation2 + $0x28] sm:$0xff]
    %v76 = vld [vmem:[#allocation2 + $0x30] sm:$0xff]
    %v77 = vld [vmem:[#allocation2 + $0x38] sm:$0xff]
    %v78 = vld [vmem:[#allocation2 + $0x40] sm:$0xff]
    %v79 = vld [vmem:[#allocation2 + $0x48] sm:$0xff]
    %v80 = vld [vmem:[#allocation2 + $0x50] sm:$0xff]
    %v81 = vld [vmem:[#allocation2 + $0x58] sm:$0xff]
    %v82 = vld [vmem:[#allocation2 + $0x60] sm:$0xff]
    %v83 = vld [vmem:[#allocation2 + $0x68] sm:$0xff]
    %v84 = vld [vmem:[#allocation2 + $0x70] sm:$0xff]
    %v85 = vld [vmem:[#allocation2 + $0x78] sm:$0xff]
    %v86 = vld [vmem:[#allocation5] sm:$0xf]
    %v87 = vld [vmem:[#allocation5 + $0x4] sm:$0xf]
    %v88 = vld [vmem:[#allocation5 + $0x8] sm:$0xf]
    %v89 = vld [vmem:[#allocation5 + $0xc] sm:$0xf]
    %v90 = vld [vmem:[#allocation5 + $0x10] sm:$0xf]
    %v91 = vld [vmem:[#allocation5 + $0x14] sm:$0xf]
    %v92 = vld [vmem:[#allocation5 + $0x18] sm:$0xf]
    %v93 = vld [vmem:[#allocation5 + $0x1c] sm:$0xf]
    %v94 = vld [vmem:[#allocation5 + $0x20] sm:$0xf]
    %v95 = vld [vmem:[#allocation5 + $0x24] sm:$0xf]
    %v96 = vld [vmem:[#allocation5 + $0x28] sm:$0xf]
    %v97 = vld [vmem:[#allocation5 + $0x2c] sm:$0xf]
    %v98 = vld [vmem:[#allocation5 + $0x30] sm:$0xf]
    %v99 = vld [vmem:[#allocation5 + $0x34] sm:$0xf]
    %v100 = vld [vmem:[#allocation5 + $0x38] sm:$0xf]
    %v101 = vld [vmem:[#allocation5 + $0x3c] sm:$0xf]
    %v102 = vld [vmem:[#allocation5 + $0x40] sm:$0xf]
    %v103 = vld [vmem:[#allocation5 + $0x44] sm:$0xf]
    %v104 = vld [vmem:[#allocation5 + $0x48] sm:$0x3]
    %v121 = vunpack.c.l.b16 %v70
    %v122 = vunpack.c.h.b16 %v70
    %v123 = vunpack.c.l.b16 %v71
    %v124 = vunpack.c.h.b16 %v71
    %v125 = vunpack.c.l.b16 %v72
    %v126 = vunpack.c.h.b16 %v72
    %v127 = vunpack.c.l.b16 %v73
    %v128 = vunpack.c.h.b16 %v73
    %v129 = vunpack.c.l.b16 %v74
    %v130 = vunpack.c.h.b16 %v74
    %v131 = vunpack.c.l.b16 %v75
    %v132 = vunpack.c.h.b16 %v75
    %v133 = vunpack.c.l.b16 %v76
    %v134 = vunpack.c.h.b16 %v76
    %v135 = vunpack.c.l.b16 %v77
    %v136 = vunpack.c.h.b16 %v77
    %v137 = vunpack.c.l.b16 %v78
    %v138 = vunpack.c.h.b16 %v78
    %v139 = vunpack.c.l.b16 %v79
    %v140 = vunpack.c.h.b16 %v79
    %v141 = vunpack.c.l.b16 %v80
    %v142 = vunpack.c.h.b16 %v80
    %v143 = vunpack.c.l.b16 %v81
    %v144 = vunpack.c.h.b16 %v81
    %v145 = vunpack.c.l.b16 %v82
    %v146 = vunpack.c.h.b16 %v82
    %v147 = vunpack.c.l.b16 %v83
    %v148 = vunpack.c.h.b16 %v83
    %v149 = vunpack.c.l.b16 %v84
    %v150 = vunpack.c.h.b16 %v84
    %v151 = vunpack.c.l.b16 %v85
    %v152 = vunpack.c.h.b16 %v85
    %v153 = vpack.c.b16 %v123, %v121
    %v154 = vpack.c.b16 %v124, %v122
    %v155 = vpack.c.b16 %v127, %v125
    %v156 = vpack.c.b16 %v128, %v126
    %v157 = vpack.c.b16 %v131, %v129
    %v158 = vpack.c.b16 %v132, %v130
    %v159 = vpack.c.b16 %v135, %v133
    %v160 = vpack.c.b16 %v136, %v134
    %v161 = vpack.c.b16 %v139, %v137
    %v162 = vpack.c.b16 %v140, %v138
    %v163 = vpack.c.b16 %v143, %v141
    %v164 = vpack.c.b16 %v144, %v142
    %v165 = vpack.c.b16 %v147, %v145
    %v166 = vpack.c.b16 %v148, %v146
    %v167 = vpack.c.b16 %v151, %v149
    %v168 = vpack.c.b16 %v152, %v150
    %v196 = vunpack.c.l.b16 %v86
    %v197 = vunpack.c.l.b16 %v87
    %v198 = vunpack.c.l.b16 %v88
    %v199 = vunpack.c.l.b16 %v89
    %v200 = vunpack.c.l.b16 %v90
    %v201 = vunpack.c.l.b16 %v91
    %v202 = vunpack.c.l.b16 %v92
    %v203 = vunpack.c.l.b16 %v93
    %v204 = vunpack.c.l.b16 %v94
    %v205 = vunpack.c.l.b16 %v95
    %v206 = vunpack.c.l.b16 %v96
    %v207 = vunpack.c.l.b16 %v97
    %v208 = vunpack.c.l.b16 %v98
    %v209 = vunpack.c.l.b16 %v99
    %v210 = vunpack.c.l.b16 %v100
    %v211 = vunpack.c.l.b16 %v101
    %v212 = vunpack.c.l.b16 %v102
    %v213 = vunpack.c.l.b16 %v103
    %v214 = vunpack.c.l.b16 %v104
    %v215 = vpack.c.b16 %v197, %v196
    %v216 = vpack.c.b16 %v199, %v198
    %v217 = vpack.c.b16 %v201, %v200
    %v218 = vpack.c.b16 %v203, %v202
    %v219 = vpack.c.b16 %v205, %v204
    %v220 = vpack.c.b16 %v207, %v206
    %v221 = vpack.c.b16 %v209, %v208
    %v222 = vpack.c.b16 %v211, %v210
    %v223 = vpack.c.b16 %v213, %v212
    %v224 = vpack.c.b16 %v214, %v214
    %vm234 = vcmask 154624
    %v236 = vsel %vm234, %v154, 0
    %v239 = vsel %vm234, %v156, 0
    %v242 = vsel %vm234, %v158, 0
    %v245 = vsel %vm234, %v160, 0
    %v248 = vsel %vm234, %v162, 0
    %v251 = vsel %vm234, %v164, 0
    %v254 = vsel %vm234, %v166, 0
    %v257 = vsel %vm234, %v168, 0
    %vm259 = vcmask 1040384
    %vm260 = vcmask 1041408
    %v261 = vsel %vm259, 4294967295, 65535
    %v262 = vsel %vm260, %v261, 0
    %v264 = vand.u32 %v224, %v262
    %266 = vmatprep.subr.bf16.mxu0 0
    %267 = vmatpush1.bf16.msra.mxu0 %v215
    %268 = vmatprep.subr.bf16.mxu0 0
    %269 = vmatpush1.bf16.msra.mxu0 %v216
    %270 = vmatprep.subr.bf16.mxu0 0
    %271 = vmatpush1.bf16.msra.mxu0 %v217
    %272 = vmatprep.subr.bf16.mxu0 0
    %273 = vmatpush1.bf16.msra.mxu0 %v218
    %274 = vmatprep.subr.bf16.mxu0 0
    %275 = vmatpush1.bf16.msra.mxu0 %v219
    %276 = vmatprep.subr.bf16.mxu0 0
    %277 = vmatpush1.bf16.msra.mxu0 %v220
    %278 = vmatprep.subr.bf16.mxu0 0
    %279 = vmatpush1.bf16.msra.mxu0 %v221
    %280 = vmatprep.subr.bf16.mxu0 0
    %281 = vmatpush1.bf16.msra.mxu0 %v222
    %282 = vmatprep.subr.bf16.mxu0 0
    %283 = vmatpush1.bf16.msra.mxu0 %v223
    %284 = vmatprep.subr.bf16.mxu0 0
    %285 = vmatpush1.bf16.msra.mxu0 %v264
    %286 = vmatprep.subr.bf16.mxu0 0
    %287 = vmatpush1.bf16.msra.mxu0 0
    %288 = vmatprep.subr.bf16.mxu0 0
    %289 = vmatpush1.bf16.msra.mxu0 0
    %290 = vmatprep.subr.bf16.mxu0 0
    %291 = vmatpush1.bf16.msra.mxu0 0
    %292 = vmatprep.subr.bf16.mxu0 0
    %293 = vmatpush1.bf16.msra.mxu0 0
    %294 = vmatprep.subr.bf16.mxu0 0
    %295 = vmatpush1.bf16.msra.mxu0 0
    %296 = vmatprep.subr.bf16.mxu0 0
    %297 = vmatpush1.bf16.msra.mxu0 0
    %298 = vmatprep.mubr.bf16.mxu0 %v236
    %299 = vmatmul.mubr.bf16.gmra.mrb[0].mxu0 %v153
    %v300 = vpop.f32.mrb[0].mxu0
    %v301 = vadd.f32 0.0, %v300
    %v302 = vpop.f32.mrb[0].mxu0
    %v303 = vpop.f32.mrb[0].mxu0
    %v304 = vadd.f32 0.0, %v303
    %v305 = vpop.f32.mrb[0].mxu0
    %306 = vmatprep.mubr.bf16.mxu0 %v239
    %307 = vmatmul.mubr.bf16.gmra.mrb[0].mxu0 %v155
    %v308 = vpop.f32.mrb[0].mxu0
    %v309 = vadd.f32 0.0, %v308
    %v310 = vpop.f32.mrb[0].mxu0
    %v311 = vpop.f32.mrb[0].mxu0
    %v312 = vadd.f32 0.0, %v311
    %v313 = vpop.f32.mrb[0].mxu0
    %314 = vmatprep.mubr.bf16.mxu0 %v242
    %315 = vmatmul.mubr.bf16.gmra.mrb[0].mxu0 %v157
    %v316 = vpop.f32.mrb[0].mxu0
    %v317 = vadd.f32 0.0, %v316
    %v318 = vpop.f32.mrb[0].mxu0
    %v319 = vpop.f32.mrb[0].mxu0
    %v320 = vadd.f32 0.0, %v319
    %v321 = vpop.f32.mrb[0].mxu0
    %322 = vmatprep.mubr.bf16.mxu0 %v245
    %323 = vmatmul.mubr.bf16.gmra.mrb[0].mxu0 %v159
    %v324 = vpop.f32.mrb[0].mxu0
    %v325 = vadd.f32 0.0, %v324
    %v326 = vpop.f32.mrb[0].mxu0
    %v327 = vpop.f32.mrb[0].mxu0
    %v328 = vadd.f32 0.0, %v327
    %v329 = vpop.f32.mrb[0].mxu0
    %330 = vmatprep.mubr.bf16.mxu0 %v248
    %331 = vmatmul.mubr.bf16.gmra.mrb[0].mxu0 %v161
    %v332 = vpop.f32.mrb[0].mxu0
    %v333 = vadd.f32 0.0, %v332
    %v334 = vpop.f32.mrb[0].mxu0
    %v335 = vpop.f32.mrb[0].mxu0
    %v336 = vadd.f32 0.0, %v335
    %v337 = vpop.f32.mrb[0].mxu0
    %338 = vmatprep.mubr.bf16.mxu0 %v251
    %339 = vmatmul.mubr.bf16.gmra.mrb[0].mxu0 %v163
    %v340 = vpop.f32.mrb[0].mxu0
    %v341 = vadd.f32 0.0, %v340
    %v342 = vpop.f32.mrb[0].mxu0
    %v343 = vpop.f32.mrb[0].mxu0
    %v344 = vadd.f32 0.0, %v343
    %v345 = vpop.f32.mrb[0].mxu0
    %346 = vmatprep.mubr.bf16.mxu0 %v254
    %347 = vmatmul.mubr.bf16.gmra.mrb[0].mxu0 %v165
    %v348 = vpop.f32.mrb[0].mxu0
    %v349 = vadd.f32 0.0, %v348
    %v350 = vpop.f32.mrb[0].mxu0
    %v351 = vpop.f32.mrb[0].mxu0
    %v352 = vadd.f32 0.0, %v351
    %v353 = vpop.f32.mrb[0].mxu0
    %354 = vmatprep.mubr.bf16.mxu0 %v257
    %355 = vmatmul.mubr.bf16.gmra.mrb[0].mxu0 %v167
    %v356 = vpop.f32.mrb[0].mxu0
    %v357 = vadd.f32 0.0, %v356
    %v358 = vpop.f32.mrb[0].mxu0
    %v359 = vpop.f32.mrb[0].mxu0
    %v360 = vadd.f32 0.0, %v359
    %v361 = vpop.f32.mrb[0].mxu0
    %362 = vdwg.mxu0
    %v363 = vld [vmem:[#allocation7] sm:$0x1]
    %v365 = vlaneseq
    %v366 = vshrl.u32 %v365, 7
    %v367 = vsub.s32 0, %v366
    %v368 = vrot.slane %v363, %v367
    %v370 = vmul.f32 %v301, %v368
    %v371 = vmul.f32 %v304, %v368
    %v372 = vmul.f32 %v309, %v368
    %v373 = vmul.f32 %v312, %v368
    %v374 = vmul.f32 %v317, %v368
    %v375 = vmul.f32 %v320, %v368
    %v376 = vmul.f32 %v325, %v368
    %v377 = vmul.f32 %v328, %v368
    %v378 = vmul.f32 %v333, %v368
    %v379 = vmul.f32 %v336, %v368
    %v380 = vmul.f32 %v341, %v368
    %v381 = vmul.f32 %v344, %v368
    %v382 = vmul.f32 %v349, %v368
    %v383 = vmul.f32 %v352, %v368
    %v384 = vmul.f32 %v357, %v368
    %v385 = vmul.f32 %v360, %v368
    %v386 = vld [vmem:[#allocation8] sm:$0x1]
    %v388 = vlaneseq
    %v389 = vshrl.u32 %v388, 7
    %v390 = vsub.s32 0, %v389
    %v391 = vrot.slane %v386, %v390
    %v393 = vadd.f32 %v370, %v391
    %v394 = vadd.f32 %v371, %v391
    %v395 = vadd.f32 %v372, %v391
    %v396 = vadd.f32 %v373, %v391
    %v397 = vadd.f32 %v374, %v391
    %v398 = vadd.f32 %v375, %v391
    %v399 = vadd.f32 %v376, %v391
    %v400 = vadd.f32 %v377, %v391
    %v401 = vadd.f32 %v378, %v391
    %v402 = vadd.f32 %v379, %v391
    %v403 = vadd.f32 %v380, %v391
    %v404 = vadd.f32 %v381, %v391
    %v405 = vadd.f32 %v382, %v391
    %v406 = vadd.f32 %v383, %v391
    %v407 = vadd.f32 %v384, %v391
    %v408 = vadd.f32 %v385, %v391
    %v409 = vmax.f32 %v393, 0.0
    %v410 = vmax.f32 %v394, 0.0
    %v411 = vmax.f32 %v395, 0.0
    %v412 = vmax.f32 %v396, 0.0
    %v413 = vmax.f32 %v397, 0.0
    %v414 = vmax.f32 %v398, 0.0
    %v415 = vmax.f32 %v399, 0.0
    %v416 = vmax.f32 %v400, 0.0
    %v417 = vmax.f32 %v401, 0.0
    %v418 = vmax.f32 %v402, 0.0
    %v419 = vmax.f32 %v403, 0.0
    %v420 = vmax.f32 %v404, 0.0
    %v421 = vmax.f32 %v405, 0.0
    %v422 = vmax.f32 %v406, 0.0
    %v423 = vmax.f32 %v407, 0.0
    %v424 = vmax.f32 %v408, 0.0
    %v425 = vpack.c.bf16 %v410, %v409
    %v426 = vpack.c.bf16 %v412, %v411
    %v427 = vpack.c.bf16 %v414, %v413
    %v428 = vpack.c.bf16 %v416, %v415
    %v429 = vpack.c.bf16 %v418, %v417
    %v430 = vpack.c.bf16 %v420, %v419
    %v431 = vpack.c.bf16 %v422, %v421
    %v432 = vpack.c.bf16 %v424, %v423
    %v441 = vunpack.c.l.b16 %v425
    %v442 = vunpack.c.h.b16 %v425
    %v443 = vunpack.c.l.b16 %v426
    %v444 = vunpack.c.h.b16 %v426
    %v445 = vunpack.c.l.b16 %v427
    %v446 = vunpack.c.h.b16 %v427
    %v447 = vunpack.c.l.b16 %v428
    %v448 = vunpack.c.h.b16 %v428
    %v449 = vunpack.c.l.b16 %v429
    %v450 = vunpack.c.h.b16 %v429
    %v451 = vunpack.c.l.b16 %v430
    %v452 = vunpack.c.h.b16 %v430
    %v453 = vunpack.c.l.b16 %v431
    %v454 = vunpack.c.h.b16 %v431
    %v455 = vunpack.c.l.b16 %v432
    %v456 = vunpack.c.h.b16 %v432
    %v457 = vpack.c.b16 %v441, %v441
    %v458 = vpack.c.b16 %v442, %v442
    %v459 = vpack.c.b16 %v443, %v443
    %v460 = vpack.c.b16 %v444, %v444
    %v461 = vpack.c.b16 %v445, %v445
    %v462 = vpack.c.b16 %v446, %v446
    %v463 = vpack.c.b16 %v447, %v447
    %v464 = vpack.c.b16 %v448, %v448
    %v465 = vpack.c.b16 %v449, %v449
    %v466 = vpack.c.b16 %v450, %v450
    %v467 = vpack.c.b16 %v451, %v451
    %v468 = vpack.c.b16 %v452, %v452
    %v469 = vpack.c.b16 %v453, %v453
    %v470 = vpack.c.b16 %v454, %v454
    %v471 = vpack.c.b16 %v455, %v455
    %v472 = vpack.c.b16 %v456, %v456
    %489 = vst [vmem:[#allocation10] sm:$0xf] %v457
    %490 = vst [vmem:[#allocation10 + $0x4] sm:$0xf] %v458
    %491 = vst [vmem:[#allocation10 + $0x8] sm:$0xf] %v459
    %492 = vst [vmem:[#allocation10 + $0xc] sm:$0xf] %v460
    %493 = vst [vmem:[#allocation10 + $0x10] sm:$0xf] %v461
    %494 = vst [vmem:[#allocation10 + $0x14] sm:$0xf] %v462
    %495 = vst [vmem:[#allocation10 + $0x18] sm:$0xf] %v463
    %496 = vst [vmem:[#allocation10 + $0x1c] sm:$0xf] %v464
    %497 = vst [vmem:[#allocation10 + $0x20] sm:$0xf] %v465
    %498 = vst [vmem:[#allocation10 + $0x24] sm:$0xf] %v466
    %499 = vst [vmem:[#allocation10 + $0x28] sm:$0xf] %v467
    %500 = vst [vmem:[#allocation10 + $0x2c] sm:$0xf] %v468
    %501 = vst [vmem:[#allocation10 + $0x30] sm:$0xf] %v469
    %502 = vst [vmem:[#allocation10 + $0x34] sm:$0xf] %v470
    %503 = vst [vmem:[#allocation10 + $0x38] sm:$0xf] %v471
    %504 = vst [vmem:[#allocation10 + $0x3c] sm:$0xf] %v472
    // Predicated region
    $region34: #{patch_embed_4_2_128.4} parent=1 // pred_check
      _
    $region35: #{patch_embed_4_2_128.4} parent=1 // pred_check_branch
      %506 = sbr.rel (0) target = $region37
    $region36: #{patch_embed_4_2_128.4} parent=1 // pred_region
      %s508 = ssub.s32 1024, 1024
      %509 = vsyncadd [#allocation4], %s508
      %s510 = sshll.u32 [#allocation10], 4
      %s511 = int_to_ptr.vmem [resolvable:$true] %s510
      %516 = dma.vmem_to_hbm [thread:$0]  %s511, 1024, %s4, [#allocation4], 64, 64, 4
    $region37: #{patch_embed_4_2_128.4} parent=1 // pred_fallthru
      _
    // Predicated region
    $region38: #{patch_embed_4_2_128.4} parent=1 // pred_check
      _
    $region39: #{patch_embed_4_2_128.4} parent=1 // pred_check_branch
      %518 = sbr.rel (0) target = $region41
    $region40: #{patch_embed_4_2_128.4} parent=1 // pred_region
      %519 = dma.done [#allocation4], 1024
    $region41: #{patch_embed_4_2_128.4} parent=1 // pred_fallthru
      _
    %520 = vsyncpa [#allocation3], 1
    %521 = vsyncpa [#allocation6], 1
    %522 = vsyncpa [#allocation9], 1
    %523 = vsyncpa [#allocation4], 1

// kernel: patch_embed_4_2_128.5
$region0: #{patch_embed_4_2_128.5}
  #allocation0 [shape = 'u32[]', space=smem, size = 0x4, offset = 0x4, fixed_abs, tag = 'smem constant byte address 0x4 - core index']
  #allocation1 [shape = 'u32[144,128]{1,0:T(1,128)}', space=vmem, size = 0x12000, scoped, tag = 'internal scratch']
  %s0 = inlined_call_operand.hbm [shape: bf16[2,110,128], index: 0, kind: input, shape index: {}]
  %s1 = inlined_call_operand.hbm [shape: bf16[9,128,128], index: 1, kind: input, shape index: {}]
  %s2 = inlined_call_operand.hbm [shape: f32[1,128], index: 2, kind: input, shape index: {}]
  %s3 = inlined_call_operand.hbm [shape: f32[1,128], index: 3, kind: input, shape index: {}]
  %s4 = inlined_call_operand.hbm [shape: bf16[2,80,128], index: 4, kind: output, shape index: {}]
  %s5 = sld [smem:[#allocation0]]
  $region65: #{patch_embed_4_2_128.5} parent=0
    _
  %s7 = ssub.s32 1, %s5
  %s8 = scalar_select 0, %s7, %s5
  $region1: #{patch_embed_4_2_128.5} parent=0
    #allocation2 [shape = 'u8[57344]{0}', space=vmem, size = 0xe000, scoped, tag = 'input window, operand 0']
    #allocation3 [shape = 's32[2]{0}', space=sflag, size = 0x8, scoped, tag = 'scoped memory for patch_embed_4_2_128.5']
    #allocation4 [shape = 's32[2]{0}', space=sflag, size = 0x8, scoped, tag = 'scoped memory for patch_embed_4_2_128.5']
    #allocation5 [shape = 'u8[294912]{0}', space=vmem, size = 0x48000, scoped, tag = 'input window, operand 1, single buffered']
    #allocation6 [shape = 's32[1]{0}', space=sflag, size = 0x4, scoped, tag = 'scoped memory for patch_embed_4_2_128.5']
    #allocation7 [shape = 'u8[512]{0}', space=vmem, size = 0x400, scoped, tag = 'input window, operand 2, single buffered']
    #allocation8 [shape = 'u8[512]{0}', space=vmem, size = 0x400, scoped, tag = 'input window, operand 3, single buffered']
    #allocation9 [shape = 's32[1]{0}', space=sflag, size = 0x4, scoped, tag = 'scoped memory for patch_embed_4_2_128.5']
    #allocation10 [shape = 'u8[40960]{0}', space=vmem, size = 0xa000, scoped, tag = 'output window, operand 0']
    %9 = vsyncpa [#allocation3], 0
    %s10 = scalar_lea.sflag [#allocation3], 1
    %11 = vsyncpa %s10, 0
    %12 = vsyncpa [#allocation6], 0
    %13 = vsyncpa [#allocation9], 0
    %14 = vsyncpa [#allocation4], 0
    %s15 = scalar_lea.sflag [#allocation4], 1
    %16 = vsyncpa %s15, 0
    loop: start=0, step=1, limit=4
    $region2: #{patch_embed_4_2_128.5} parent=1 // loop_pre_header
      _
    $region3: #{patch_embed_4_2_128.5} parent=1 // loop_header
      %s18 = sphi 0, %s22
      %p19 = scmp.ge.s32.totalorder %s18, 4
      %s28 = sphi 0, %s30
      %s31 = sphi 0, %s28
      %s32 = sphi 0, %s31
      %s48 = sphi 0, %s32
      %s52 = sphi 0, %s52
      %s54 = sphi 0, %s52
      %s55 = sphi 0, %s54
      %s69 = sphi 0, %s55
      %s73 = sphi 0, %s73
      %s75 = sphi 0, %s73
      %s76 = sphi 0, %s75
      %s90 = sphi 0, %s76
      %s94 = sphi 0, %s94
      %s96 = sphi 0, %s94
      %s97 = sphi 0, %s96
      %s111 = sphi 0, %s97
      %s117 = sphi 0, %s119
      %s120 = sphi 0, %s117
      %s121 = sphi 0, %s120
      %s137 = sphi 0, %s121
    $region4: #{patch_embed_4_2_128.5} parent=1 // loop_header_branch
      %21 = sbr.rel (%p19) target = $region8
    $region5: #{patch_embed_4_2_128.5} parent=1 // loop_body
      %s23 = ssub.s32 %s18, 1
      %s24 = ssub.s32 %s18, 2
      %s25 = sadd.s32 %s18, 1
      %s26 = ssub.s32 %s18, %s25
      %p27 = scmp.eq.s32.totalorder %s26, 0
      %s29 = sadd.s32 %s28, 1
      %s30 = scalar_select %p27, %s28, %s29
      %p33 = pneg %p27
      %p34 = scmp.eq.s32.totalorder %s18, 1
      %p35 = por %p33, %p34
      %p36 = scmp.ne.s32.totalorder %s28, %s31
      %p37 = scmp.eq.s32.totalorder %s18, 0
      %p38 = por %p36, %p37
      %p39 = scmp.ne.s32.totalorder %s28, %s31
      %p40 = scmp.eq.s32.totalorder %s23, 1
      %p41 = por %p39, %p40
      %p42 = scmp.ne.s32.totalorder %s31, %s32
      %p43 = scmp.eq.s32.totalorder %s23, 0
      %p44 = por %p42, %p43
      %p45 = scmp.ne.s32.totalorder %s31, %s32
      %p46 = scmp.eq.s32.totalorder %s24, 1
      %p47 = por %p45, %p46
      %p49 = scmp.ne.s32.totalorder %s32, %s48
      %p50 = scmp.eq.s32.totalorder %s24, 0
      %p51 = por %p49, %p50
      %s53 = sadd.s32 %s52, 1
      %p56 = scmp.eq.s32.totalorder %s18, 1
      %p57 = scmp.ne.s32.totalorder %s52, %s54
      %p58 = scmp.eq.s32.totalorder %s18, 0
      %p59 = por %p57, %p58
      %p60 = scmp.ne.s32.totalorder %s52, %s54
      %p61 = scmp.eq.s32.totalorder %s23, 1
      %p62 = por %p60, %p61
      %p63 = scmp.ne.s32.totalorder %s54, %s55
      %p64 = scmp.eq.s32.totalorder %s23, 0
      %p65 = por %p63, %p64
      %p66 = scmp.ne.s32.totalorder %s54, %s55
      %p67 = scmp.eq.s32.totalorder %s24, 1
      %p68 = por %p66, %p67
      %p70 = scmp.ne.s32.totalorder %s55, %s69
      %p71 = scmp.eq.s32.totalorder %s24, 0
      %p72 = por %p70, %p71
      %s74 = sadd.s32 %s73, 1
      %p77 = scmp.eq.s32.totalorder %s18, 1
      %p78 = scmp.ne.s32.totalorder %s73, %s75
      %p79 = scmp.eq.s32.totalorder %s18, 0
      %p80 = por %p78, %p79
      %p81 = scmp.ne.s32.totalorder %s73, %s75
      %p82 = scmp.eq.s32.totalorder %s23, 1
      %p83 = por %p81, %p82
      %p84 = scmp.ne.s32.totalorder %s75, %s76
      %p85 = scmp.eq.s32.totalorder %s23, 0
      %p86 = por %p84, %p85
      %p87 = scmp.ne.s32.totalorder %s75, %s76
      %p88 = scmp.eq.s32.totalorder %s24, 1
      %p89 = por %p87, %p88
      %p91 = scmp.ne.s32.totalorder %s76, %s90
      %p92 = scmp.eq.s32.totalorder %s24, 0
      %p93 = por %p91, %p92
      %s95 = sadd.s32 %s94, 1
      %p98 = scmp.eq.s32.totalorder %s18, 1
      %p99 = scmp.ne.s32.totalorder %s94, %s96
      %p100 = scmp.eq.s32.totalorder %s18, 0
      %p101 = por %p99, %p100
      %p102 = scmp.ne.s32.totalorder %s94, %s96
      %p103 = scmp.eq.s32.totalorder %s23, 1
      %p104 = por %p102, %p103
      %p105 = scmp.ne.s32.totalorder %s96, %s97
      %p106 = scmp.eq.s32.totalorder %s23, 0
      %p107 = por %p105, %p106
      %p108 = scmp.ne.s32.totalorder %s96, %s97
      %p109 = scmp.eq.s32.totalorder %s24, 1
      %p110 = por %p108, %p109
      %p112 = scmp.ne.s32.totalorder %s97, %s111
      %p113 = scmp.eq.s32.totalorder %s24, 0
      %p114 = por %p112, %p113
      %s115 = ssub.s32 %s18, %s25
      %p116 = scmp.eq.s32.totalorder %s115, 0
      %s118 = sadd.s32 %s117, 1
      %s119 = scalar_select %p116, %s117, %s118
      %p122 = pneg %p116
      %p123 = scmp.eq.s32.totalorder %s18, 1
      %p124 = por %p122, %p123
      %p125 = scmp.ne.s32.totalorder %s117, %s120
      %p126 = scmp.eq.s32.totalorder %s18, 0
      %p127 = por %p125, %p126
      %p128 = scmp.ne.s32.totalorder %s117, %s120
      %p129 = scmp.eq.s32.totalorder %s23, 1
      %p130 = por %p128, %p129
      %p131 = scmp.ne.s32.totalorder %s120, %s121
      %p132 = scmp.eq.s32.totalorder %s23, 0
      %p133 = por %p131, %p132
      %p134 = scmp.ne.s32.totalorder %s120, %s121
      %p135 = scmp.eq.s32.totalorder %s24, 1
      %p136 = por %p134, %p135
      %p138 = scmp.ne.s32.totalorder %s121, %s137
      %p139 = scmp.eq.s32.totalorder %s24, 0
      %p140 = por %p138, %p139
      %p141 = scmp.le.s32.totalorder 1, %s18
      %p142 = scmp.lt.s32.totalorder %s18, 3
      %p143 = pnand %p141, %p142
      %p144 = pneg %p143
      // Predicated region
      $region9: #{patch_embed_4_2_128.5} parent=5 // pred_check
        _
      $region10: #{patch_embed_4_2_128.5} parent=5 // pred_check_branch
        %146 = sbr.rel (%p143) target = $region12
      $region11: #{patch_embed_4_2_128.5} parent=5 // pred_region
        %s147 = ssub.s32 %s18, 1
        // Predicated region
        $region13: #{patch_embed_4_2_128.5} parent=11 // pred_check
          %p148 = pneg %p65
        $region14: #{patch_embed_4_2_128.5} parent=11 // pred_check_branch
          %150 = sbr.rel (%p148) target = $region16
        $region15: #{patch_embed_4_2_128.5} parent=11 // pred_region
          %s152 = ssub.s32 9216, 9216
          %153 = vsyncadd [#allocation6], %s152
          %s154 = sshll.u32 [#allocation5], 4
          %s155 = int_to_ptr.vmem [resolvable:$true] %s154
          %160 = dma.hbm_to_vmem [thread:$0]  %s1, 9216, %s155, [#allocation6], 64, 64, 4
        $region16: #{patch_embed_4_2_128.5} parent=11 // pred_fallthru
          _
        // Predicated region
        $region17: #{patch_embed_4_2_128.5} parent=11 // pred_check
          %p161 = pneg %p86
        $region18: #{patch_embed_4_2_128.5} parent=11 // pred_check_branch
          %163 = sbr.rel (%p161) target = $region20
        $region19: #{patch_embed_4_2_128.5} parent=11 // pred_region
          %s165 = ssub.s32 16, 16
          %166 = vsyncadd [#allocation6], %s165
          %s168 = sshll.u32 [#allocation7], 4
          %s169 = int_to_ptr.vmem [resolvable:$true] %s168
          %171 = dma.hbm_to_vmem [thread:$0]  %s2, 16, %s169, [#allocation6]
        $region20: #{patch_embed_4_2_128.5} parent=11 // pred_fallthru
          _
        // Predicated region
        $region21: #{patch_embed_4_2_128.5} parent=11 // pred_check
          %p172 = pneg %p107
        $region22: #{patch_embed_4_2_128.5} parent=11 // pred_check_branch
          %174 = sbr.rel (%p172) target = $region24
        $region23: #{patch_embed_4_2_128.5} parent=11 // pred_region
          %s176 = ssub.s32 16, 16
          %177 = vsyncadd [#allocation9], %s176
          %s179 = sshll.u32 [#allocation8], 4
          %s180 = int_to_ptr.vmem [resolvable:$true] %s179
          %182 = dma.hbm_to_vmem [thread:$0]  %s3, 16, %s180, [#allocation9]
        $region24: #{patch_embed_4_2_128.5} parent=11 // pred_fallthru
          _
      $region12: #{patch_embed_4_2_128.5} parent=5 // pred_fallthru
        _
      %p183 = scmp.lt.s32.totalorder %s18, 2
      // Predicated region
      $region25: #{patch_embed_4_2_128.5} parent=5 // pred_check
        %p184 = pneg %p183
      $region26: #{patch_embed_4_2_128.5} parent=5 // pred_check_branch
        %186 = sbr.rel (%p184) target = $region28
      $region27: #{patch_embed_4_2_128.5} parent=5 // pred_region
        // Predicated region
        $region29: #{patch_embed_4_2_128.5} parent=27 // pred_check
          %p187 = pneg %p38
        $region30: #{patch_embed_4_2_128.5} parent=27 // pred_check_branch
          %189 = sbr.rel (%p187) target = $region32
        $region31: #{patch_embed_4_2_128.5} parent=27 // pred_region
          %s190 = sand.u32 %s28, 1
          %s191 = scalar_lea.sflag [#allocation3], %s190
          %s192 = sand.u32 %s28, 1
          %s193 = smul.addr %s192, 56
          %s194 = scalar_lea.vmem [#allocation2], %s193
          %s196 = ssub.s32 896, 896
          %197 = vsyncadd %s191, %s196
          %s198 = smul.addr %s18, 14
          %s199 = smul.addr %s198, 64
          %s200 = scalar_lea.hbm %s0, %s199
          %s201 = sshll.u32 %s194, 4
          %s202 = int_to_ptr.vmem [resolvable:$true] %s201
          %207 = dma.hbm_to_vmem [thread:$0]  %s200, 896, %s202, %s191, 64, 64, 4
        $region32: #{patch_embed_4_2_128.5} parent=27 // pred_fallthru
          _
      $region28: #{patch_embed_4_2_128.5} parent=5 // pred_fallthru
        _
      %p208 = scmp.le.s32.totalorder 1, %s18
      %p209 = scmp.lt.s32.totalorder %s18, 3
      %p210 = pnand %p208, %p209
      %p211 = pneg %p210
      // Predicated region
      $region33: #{patch_embed_4_2_128.5} parent=5 // pred_check
        _
      $region34: #{patch_embed_4_2_128.5} parent=5 // pred_check_branch
        %213 = sbr.rel (%p210) target = $region36
      $region35: #{patch_embed_4_2_128.5} parent=5 // pred_region
        %s214 = ssub.s32 %s18, 1
        %s215 = sand.u32 %s31, 1
        %s216 = scalar_lea.sflag [#allocation3], %s215
        %s217 = sand.u32 %s31, 1
        %s218 = smul.addr %s217, 56
        %s219 = scalar_lea.vmem [#allocation2], %s218
        // Predicated region
        $region37: #{patch_embed_4_2_128.5} parent=35 // pred_check
          %p220 = pneg %p44
        $region38: #{patch_embed_4_2_128.5} parent=35 // pred_check_branch
          %222 = sbr.rel (%p220) target = $region40
        $region39: #{patch_embed_4_2_128.5} parent=35 // pred_region
          %223 = dma.done %s216, 896
        $region40: #{patch_embed_4_2_128.5} parent=35 // pred_fallthru
          _
        // Predicated region
        $region41: #{patch_embed_4_2_128.5} parent=35 // pred_check
          %p224 = pneg %p65
        $region42: #{patch_embed_4_2_128.5} parent=35 // pred_check_branch
          %226 = sbr.rel (%p224) target = $region44
        $region43: #{patch_embed_4_2_128.5} parent=35 // pred_region
          %227 = dma.done [#allocation6], 9216
        $region44: #{patch_embed_4_2_128.5} parent=35 // pred_fallthru
          _
        // Predicated region
        $region45: #{patch_embed_4_2_128.5} parent=35 // pred_check
          %p228 = pneg %p86
        $region46: #{patch_embed_4_2_128.5} parent=35 // pred_check_branch
          %230 = sbr.rel (%p228) target = $region48
        $region47: #{patch_embed_4_2_128.5} parent=35 // pred_region
          %231 = dma.done [#allocation6], 16
        $region48: #{patch_embed_4_2_128.5} parent=35 // pred_fallthru
          _
        // Predicated region
        $region49: #{patch_embed_4_2_128.5} parent=35 // pred_check
          %p232 = pneg %p107
        $region50: #{patch_embed_4_2_128.5} parent=35 // pred_check_branch
          %234 = sbr.rel (%p232) target = $region52
        $region51: #{patch_embed_4_2_128.5} parent=35 // pred_region
          %235 = dma.done [#allocation9], 16
        $region52: #{patch_embed_4_2_128.5} parent=35 // pred_fallthru
          _
        %s236 = sand.u32 %s31, 1
        %s237 = scalar_lea.sflag [#allocation3], %s236
        %s238 = sand.u32 %s31, 1
        %s239 = smul.addr %s238, 56
        %s240 = scalar_lea.vmem [#allocation2], %s239
        %p241 = pneg %p44
        %p242 = pneg %p41
        %p243 = pneg %p65
        %p244 = pneg %p62
        %p245 = pneg %p86
        %p246 = pneg %p83
        %p247 = pneg %p107
        %p248 = pneg %p104
        %p249 = pneg %p133
        %p250 = pneg %p130
        %s251 = sand.u32 %s120, 1
        %s252 = scalar_lea.sflag [#allocation4], %s251
        %s253 = sand.u32 %s120, 1
        %s254 = smul.addr %s253, 40
        %s255 = scalar_lea.vmem [#allocation10], %s254
        %v257 = vld [vmem:[%s219] sm:$0xf]
        %v258 = vld [vmem:[%s219 + $0x4] sm:$0xf]
        %v259 = vld [vmem:[%s219 + $0x8] sm:$0xf]
        %v260 = vld [vmem:[%s219 + $0xc] sm:$0xf]
        %v261 = vld [vmem:[%s219 + $0x10] sm:$0xf]
        %v262 = vld [vmem:[%s219 + $0x14] sm:$0xf]
        %v263 = vld [vmem:[%s219 + $0x18] sm:$0xf]
        %v264 = vld [vmem:[%s219 + $0x1c] sm:$0xf]
        %v265 = vld [vmem:[%s219 + $0x20] sm:$0xf]
        %v266 = vld [vmem:[%s219 + $0x24] sm:$0xf]
        %v267 = vld [vmem:[#allocation5] sm:$0xf]
        %v268 = vld [vmem:[#allocation5 + $0x4] sm:$0xf]
        %v269 = vld [vmem:[#allocation5 + $0x8] sm:$0xf]
        %v270 = vld [vmem:[#allocation5 + $0xc] sm:$0xf]
        %v271 = vld [vmem:[#allocation5 + $0x10] sm:$0xf]
        %v272 = vld [vmem:[#allocation5 + $0x14] sm:$0xf]
        %v273 = vld [vmem:[#allocation5 + $0x18] sm:$0xf]
        %v274 = vld [vmem:[#allocation5 + $0x1c] sm:$0xf]
        %v275 = vld [vmem:[#allocation5 + $0x20] sm:$0xf]
        %v276 = vld [vmem:[#allocation5 + $0x24] sm:$0xf]
        %v277 = vld [vmem:[#allocation5 + $0x28] sm:$0xf]
        %v278 = vld [vmem:[#allocation5 + $0x2c] sm:$0xf]
        %v279 = vld [vmem:[#allocation5 + $0x30] sm:$0xf]
        %v280 = vld [vmem:[#allocation5 + $0x34] sm:$0xf]
        %v281 = vld [vmem:[#allocation5 + $0x38] sm:$0xf]
        %v282 = vld [vmem:[#allocation5 + $0x3c] sm:$0xf]
        %v283 = vld [vmem:[%s219 + $0x28] sm:$0x1]
        %s284 = scalar_lea.vmem [#allocation5], 64
        %v285 = vld [vmem:[%s284] sm:$0xf]
        %v286 = vld [vmem:[%s284 + $0x4] sm:$0xf]
        %v287 = vld [vmem:[%s284 + $0x8] sm:$0xf]
        %v288 = vld [vmem:[%s284 + $0xc] sm:$0xf]
        %v289 = vld [vmem:[%s284 + $0x10] sm:$0xf]
        %v290 = vld [vmem:[%s284 + $0x14] sm:$0xf]
        %v291 = vld [vmem:[%s284 + $0x18] sm:$0xf]
        %v292 = vld [vmem:[%s284 + $0x1c] sm:$0xf]
        %v293 = vld [vmem:[%s284 + $0x20] sm:$0xf]
        %v294 = vld [vmem:[%s284 + $0x24] sm:$0xf]
        %v295 = vld [vmem:[%s284 + $0x28] sm:$0xf]
        %v296 = vld [vmem:[%s284 + $0x2c] sm:$0xf]
        %v297 = vld [vmem:[%s284 + $0x30] sm:$0xf]
        %v298 = vld [vmem:[%s284 + $0x34] sm:$0xf]
        %v299 = vld [vmem:[%s284 + $0x38] sm:$0xf]
        %v300 = vld [vmem:[%s284 + $0x3c] sm:$0xf]
        %v312 = vunpack.c.l.b16 %v257
        %v313 = vunpack.c.l.b16 %v258
        %v314 = vunpack.c.l.b16 %v259
        %v315 = vunpack.c.l.b16 %v260
        %v316 = vunpack.c.l.b16 %v261
        %v317 = vunpack.c.l.b16 %v262
        %v318 = vunpack.c.l.b16 %v263
        %v319 = vunpack.c.l.b16 %v264
        %v320 = vunpack.c.l.b16 %v265
        %v321 = vunpack.c.l.b16 %v266
        %v322 = vunpack.c.l.b16 %v283
        %v323 = vpack.c.b16 %v313, %v312
        %v324 = vpack.c.b16 %v315, %v314
        %v325 = vpack.c.b16 %v317, %v316
        %v326 = vpack.c.b16 %v319, %v318
        %v327 = vpack.c.b16 %v321, %v320
        %v328 = vpack.c.b16 %v322, %v322
        %vm329 = vsmask.f32 7424
        %v331 = vshrl.u32 %v323, 16
        %v333 = vshll.u32 %v323, 16
        %v335 = vrot.slane %v333, 1
        %v336 = vor.u32 %v331, %v335
        %v338 = vshll.u32 %v324, 16
        %v340 = vrot.slane %v338, 1
        %v341 = vsel %vm329, %v336, %v340
        %v342 = vshrl.u32 %v324, 16
        %v344 = vor.u32 %v342, %v340
        %v346 = vshll.u32 %v325, 16
        %v348 = vrot.slane %v346, 1
        %v349 = vsel %vm329, %v344, %v348
        %v350 = vshrl.u32 %v325, 16
        %v352 = vor.u32 %v350, %v348
        %v354 = vshll.u32 %v326, 16
        %v356 = vrot.slane %v354, 1
        %v357 = vsel %vm329, %v352, %v356
        %v358 = vshrl.u32 %v326, 16
        %v360 = vor.u32 %v358, %v356
        %v362 = vshll.u32 %v327, 16
        %v364 = vrot.slane %v362, 1
        %v365 = vsel %vm329, %v360, %v364
        %v366 = vshrl.u32 %v327, 16
        %v368 = vor.u32 %v366, %v364
        %v370 = vshll.u32 %v328, 16
        %v372 = vrot.slane %v370, 1
        %v373 = vsel %vm329, %v368, %v372
        %v395 = vunpack.c.l.b16 %v285
        %v396 = vunpack.c.l.b16 %v286
        %v397 = vunpack.c.l.b16 %v287
        %v398 = vunpack.c.l.b16 %v288
        %v399 = vunpack.c.l.b16 %v289
        %v400 = vunpack.c.l.b16 %v290
        %v401 = vunpack.c.l.b16 %v291
        %v402 = vunpack.c.l.b16 %v292
        %v403 = vunpack.c.l.b16 %v293
        %v404 = vunpack.c.l.b16 %v294
        %v405 = vunpack.c.l.b16 %v295
        %v406 = vunpack.c.l.b16 %v296
        %v407 = vunpack.c.l.b16 %v297
        %v408 = vunpack.c.l.b16 %v298
        %v409 = vunpack.c.l.b16 %v299
        %v410 = vunpack.c.l.b16 %v300
        %v411 = vpack.c.b16 %v396, %v395
        %v412 = vpack.c.b16 %v398, %v397
        %v413 = vpack.c.b16 %v400, %v399
        %v414 = vpack.c.b16 %v402, %v401
        %v415 = vpack.c.b16 %v404, %v403
        %v416 = vpack.c.b16 %v406, %v405
        %v417 = vpack.c.b16 %v408, %v407
        %v418 = vpack.c.b16 %v410, %v409
        %427 = vmatprep.subr.bf16.mxu0 0
        %428 = vmatpush1.bf16.msra.mxu0 %v411
        %429 = vmatprep.subr.bf16.mxu0 0
        %430 = vmatpush1.bf16.msra.mxu0 %v412
        %431 = vmatprep.subr.bf16.mxu0 0
        %432 = vmatpush1.bf16.msra.mxu0 %v413
        %433 = vmatprep.subr.bf16.mxu0 0
        %434 = vmatpush1.bf16.msra.mxu0 %v414
        %435 = vmatprep.subr.bf16.mxu0 0
        %436 = vmatpush1.bf16.msra.mxu0 %v415
        %437 = vmatprep.subr.bf16.mxu0 0
        %438 = vmatpush1.bf16.msra.mxu0 %v416
        %439 = vmatprep.subr.bf16.mxu0 0
        %440 = vmatpush1.bf16.msra.mxu0 %v417
        %441 = vmatprep.subr.bf16.mxu0 0
        %442 = vmatpush1.bf16.msra.mxu0 %v418
        %443 = vmatprep.subr.bf16.mxu0 0
        %444 = vmatpush1.bf16.msra.mxu0 0
        %445 = vmatprep.subr.bf16.mxu0 0
        %446 = vmatpush1.bf16.msra.mxu0 0
        %447 = vmatprep.subr.bf16.mxu0 0
        %448 = vmatpush1.bf16.msra.mxu0 0
        %449 = vmatprep.subr.bf16.mxu0 0
        %450 = vmatpush1.bf16.msra.mxu0 0
        %451 = vmatprep.subr.bf16.mxu0 0
        %452 = vmatpush1.bf16.msra.mxu0 0
        %453 = vmatprep.subr.bf16.mxu0 0
        %454 = vmatpush1.bf16.msra.mxu0 0
        %455 = vmatprep.subr.bf16.mxu0 0
        %456 = vmatpush1.bf16.msra.mxu0 0
        %457 = vmatprep.subr.bf16.mxu0 0
        %458 = vmatpush1.bf16.msra.mxu0 0
        %459 = vmatprep.mubr.bf16.mxu0 0
        %460 = vmatmul.mubr.bf16.gmra.mrb[0].mxu0 %v341
        %v461 = vpop.f32.mrb[0].mxu0
        %v462 = vadd.f32 0.0, %v461
        %v463 = vpop.f32.mrb[0].mxu0
        %v464 = vpop.f32.mrb[0].mxu0
        %v465 = vadd.f32 0.0, %v464
        %v466 = vpop.f32.mrb[0].mxu0
        %467 = vmatprep.mubr.bf16.mxu0 0
        %468 = vmatmul.mubr.bf16.gmra.mrb[0].mxu0 %v349
        %v469 = vpop.f32.mrb[0].mxu0
        %v470 = vadd.f32 0.0, %v469
        %v471 = vpop.f32.mrb[0].mxu0
        %v472 = vpop.f32.mrb[0].mxu0
        %v473 = vadd.f32 0.0, %v472
        %v474 = vpop.f32.mrb[0].mxu0
        %475 = vmatprep.mubr.bf16.mxu0 0
        %476 = vmatmul.mubr.bf16.gmra.mrb[0].mxu0 %v357
        %v477 = vpop.f32.mrb[0].mxu0
        %v478 = vadd.f32 0.0, %v477
        %v479 = vpop.f32.mrb[0].mxu0
        %v480 = vpop.f32.mrb[0].mxu0
        %v481 = vadd.f32 0.0, %v480
        %v482 = vpop.f32.mrb[0].mxu0
        %483 = vmatprep.mubr.bf16.mxu0 0
        %484 = vmatmul.mubr.bf16.gmra.mrb[0].mxu0 %v365
        %v485 = vpop.f32.mrb[0].mxu0
        %v486 = vadd.f32 0.0, %v485
        %v487 = vpop.f32.mrb[0].mxu0
        %v488 = vpop.f32.mrb[0].mxu0
        %v489 = vadd.f32 0.0, %v488
        %v490 = vpop.f32.mrb[0].mxu0
        %491 = vmatprep.mubr.bf16.mxu0 0
        %492 = vmatmul.mubr.bf16.gmra.mrb[0].mxu0 %v373
        %v493 = vpop.f32.mrb[0].mxu0
        %v494 = vadd.f32 0.0, %v493
        %v495 = vpop.f32.mrb[0].mxu0
        %v496 = vpop.f32.mrb[0].mxu0
        %v497 = vadd.f32 0.0, %v496
        %v498 = vpop.f32.mrb[0].mxu0
        %499 = vdwg.mxu0
        %v521 = vunpack.c.l.b16 %v267
        %v522 = vunpack.c.l.b16 %v268
        %v523 = vunpack.c.l.b16 %v269
        %v524 = vunpack.c.l.b16 %v270
        %v525 = vunpack.c.l.b16 %v271
        %v526 = vunpack.c.l.b16 %v272
        %v527 = vunpack.c.l.b16 %v273
        %v528 = vunpack.c.l.b16 %v274
        %v529 = vunpack.c.l.b16 %v275
        %v530 = vunpack.c.l.b16 %v276
        %v531 = vunpack.c.l.b16 %v277
        %v532 = vunpack.c.l.b16 %v278
        %v533 = vunpack.c.l.b16 %v279
        %v534 = vunpack.c.l.b16 %v280
        %v535 = vunpack.c.l.b16 %v281
        %v536 = vunpack.c.l.b16 %v282
        %v537 = vpack.c.b16 %v522, %v521
        %v538 = vpack.c.b16 %v524, %v523
        %v539 = vpack.c.b16 %v526, %v525
        %v540 = vpack.c.b16 %v528, %v527
        %v541 = vpack.c.b16 %v530, %v529
        %v542 = vpack.c.b16 %v532, %v531
        %v543 = vpack.c.b16 %v534, %v533
        %v544 = vpack.c.b16 %v536, %v535
        %553 = vmatprep.subr.bf16.mxu0 0
        %554 = vmatpush1.bf16.msra.mxu0 %v537
        %555 = vmatprep.subr.bf16.mxu0 0
        %556 = vmatpush1.bf16.msra.mxu0 %v538
        %557 = vmatprep.subr.bf16.mxu0 0
        %558 = vmatpush1.bf16.msra.mxu0 %v539
        %559 = vmatprep.subr.bf16.mxu0 0
        %560 = vmatpush1.bf16.msra.mxu0 %v540
        %561 = vmatprep.subr.bf16.mxu0 0
        %562 = vmatpush1.bf16.msra.mxu0 %v541
        %563 = vmatprep.subr.bf16.mxu0 0
        %564 = vmatpush1.bf16.msra.mxu0 %v542
        %565 = vmatprep.subr.bf16.mxu0 0
        %566 = vmatpush1.bf16.msra.mxu0 %v543
        %567 = vmatprep.subr.bf16.mxu0 0
        %568 = vmatpush1.bf16.msra.mxu0 %v544
        %569 = vmatprep.subr.bf16.mxu0 0
        %570 = vmatpush1.bf16.msra.mxu0 0
        %571 = vmatprep.subr.bf16.mxu0 0
        %572 = vmatpush1.bf16.msra.mxu0 0
        %573 = vmatprep.subr.bf16.mxu0 0
        %574 = vmatpush1.bf16.msra.mxu0 0
        %575 = vmatprep.subr.bf16.mxu0 0
        %576 = vmatpush1.bf16.msra.mxu0 0
        %577 = vmatprep.subr.bf16.mxu0 0
        %578 = vmatpush1.bf16.msra.mxu0 0
        %579 = vmatprep.subr.bf16.mxu0 0
        %580 = vmatpush1.bf16.msra.mxu0 0
        %581 = vmatprep.subr.bf16.mxu0 0
        %582 = vmatpush1.bf16.msra.mxu0 0
        %583 = vmatprep.subr.bf16.mxu0 0
        %584 = vmatpush1.bf16.msra.mxu0 0
        %585 = vmatprep.mubr.bf16.mxu0 0
        %586 = vmatmul.mubr.bf16.gmra.mrb[0].mxu0 %v323
        %v587 = vpop.f32.mrb[0].mxu0
        %v588 = vadd.f32 %v462, %v587
        %v589 = vpop.f32.mrb[0].mxu0
        %v590 = vpop.f32.mrb[0].mxu0
        %v591 = vadd.f32 %v465, %v590
        %v592 = vpop.f32.mrb[0].mxu0
        %593 = vmatprep.mubr.bf16.mxu0 0
        %594 = vmatmul.mubr.bf16.gmra.mrb[0].mxu0 %v324
        %v595 = vpop.f32.mrb[0].mxu0
        %v596 = vadd.f32 %v470, %v595
        %v597 = vpop.f32.mrb[0].mxu0
        %v598 = vpop.f32.mrb[0].mxu0
        %v599 = vadd.f32 %v473, %v598
        %v600 = vpop.f32.mrb[0].mxu0
        %601 = vmatprep.mubr.bf16.mxu0 0
        %602 = vmatmul.mubr.bf16.gmra.mrb[0].mxu0 %v325
        %v603 = vpop.f32.mrb[0].mxu0
        %v604 = vadd.f32 %v478, %v603
        %v605 = vpop.f32.mrb[0].mxu0
        %v606 = vpop.f32.mrb[0].mxu0
        %v607 = vadd.f32 %v481, %v606
        %v608 = vpop.f32.mrb[0].mxu0
        %609 = vmatprep.mubr.bf16.mxu0 0
        %610 = vmatmul.mubr.bf16.gmra.mrb[0].mxu0 %v326
        %v611 = vpop.f32.mrb[0].mxu0
        %v612 = vadd.f32 %v486, %v611
        %v613 = vpop.f32.mrb[0].mxu0
        %v614 = vpop.f32.mrb[0].mxu0
        %v615 = vadd.f32 %v489, %v614
        %v616 = vpop.f32.mrb[0].mxu0
        %617 = vmatprep.mubr.bf16.mxu0 0
        %618 = vmatmul.mubr.bf16.gmra.mrb[0].mxu0 %v327
        %v619 = vpop.f32.mrb[0].mxu0
        %v620 = vadd.f32 %v494, %v619
        %v621 = vpop.f32.mrb[0].mxu0
        %v622 = vpop.f32.mrb[0].mxu0
        %v623 = vadd.f32 %v497, %v622
        %v624 = vpop.f32.mrb[0].mxu0
        %625 = vdwg.mxu0
        %v626 = vld [vmem:[%s219] sm:$0xe]
        %s627 = scalar_lea.vmem [#allocation5], 128
        %v628 = vld [vmem:[%s627] sm:$0xf]
        %v629 = vld [vmem:[%s627 + $0x4] sm:$0xf]
        %v630 = vld [vmem:[%s627 + $0x8] sm:$0xf]
        %v631 = vld [vmem:[%s627 + $0xc] sm:$0xf]
        %v632 = vld [vmem:[%s627 + $0x10] sm:$0xf]
        %v633 = vld [vmem:[%s627 + $0x14] sm:$0xf]
        %v634 = vld [vmem:[%s627 + $0x18] sm:$0xf]
        %v635 = vld [vmem:[%s627 + $0x1c] sm:$0xf]
        %v636 = vld [vmem:[%s627 + $0x20] sm:$0xf]
        %v637 = vld [vmem:[%s627 + $0x24] sm:$0xf]
        %v638 = vld [vmem:[%s627 + $0x28] sm:$0xf]
        %v639 = vld [vmem:[%s627 + $0x2c] sm:$0xf]
        %v640 = vld [vmem:[%s627 + $0x30] sm:$0xf]
        %v641 = vld [vmem:[%s627 + $0x34] sm:$0xf]
        %v642 = vld [vmem:[%s627 + $0x38] sm:$0xf]
        %v643 = vld [vmem:[%s627 + $0x3c] sm:$0xf]
        %v645 = vunpack.c.l.b16 %v626
        %v646 = vpack.c.b16 %v313, %v645
        %vm647 = vcmask 1046528
        %v648 = vrot.slane %v646, 1
        %v649 = vrot.slane %v324, 1
        %v650 = vsel %vm647, %v648, %v649
        %v651 = vrot.slane %v325, 1
        %v652 = vsel %vm647, %v649, %v651
        %v653 = vrot.slane %v326, 1
        %v654 = vsel %vm647, %v651, %v653
        %v655 = vrot.slane %v327, 1
        %v656 = vsel %vm647, %v653, %v655
        %v657 = vrot.slane %v328, 1
        %v658 = vsel %vm647, %v655, %v657
        %v680 = vunpack.c.l.b16 %v628
        %v681 = vunpack.c.l.b16 %v629
        %v682 = vunpack.c.l.b16 %v630
        %v683 = vunpack.c.l.b16 %v631
        %v684 = vunpack.c.l.b16 %v632
        %v685 = vunpack.c.l.b16 %v633
        %v686 = vunpack.c.l.b16 %v634
        %v687 = vunpack.c.l.b16 %v635
        %v688 = vunpack.c.l.b16 %v636
        %v689 = vunpack.c.l.b16 %v637
        %v690 = vunpack.c.l.b16 %v638
        %v691 = vunpack.c.l.b16 %v639
        %v692 = vunpack.c.l.b16 %v640
        %v693 = vunpack.c.l.b16 %v641
        %v694 = vunpack.c.l.b16 %v642
        %v695 = vunpack.c.l.b16 %v643
        %v696 = vpack.c.b16 %v681, %v680
        %v697 = vpack.c.b16 %v683, %v682
        %v698 = vpack.c.b16 %v685, %v684
        %v699 = vpack.c.b16 %v687, %v686
        %v700 = vpack.c.b16 %v689, %v688
        %v701 = vpack.c.b16 %v691, %v690
        %v702 = vpack.c.b16 %v693, %v692
        %v703 = vpack.c.b16 %v695, %v694
        %712 = vmatprep.subr.bf16.mxu0 0
        %713 = vmatpush1.bf16.msra.mxu0 %v696
        %714 = vmatprep.subr.bf16.mxu0 0
        %715 = vmatpush1.bf16.msra.mxu0 %v697
        %716 = vmatprep.subr.bf16.mxu0 0
        %717 = vmatpush1.bf16.msra.mxu0 %v698
        %718 = vmatprep.subr.bf16.mxu0 0
        %719 = vmatpush1.bf16.msra.mxu0 %v699
        %720 = vmatprep.subr.bf16.mxu0 0
        %721 = vmatpush1.bf16.msra.mxu0 %v700
        %722 = vmatprep.subr.bf16.mxu0 0
        %723 = vmatpush1.bf16.msra.mxu0 %v701
        %724 = vmatprep.subr.bf16.mxu0 0
        %725 = vmatpush1.bf16.msra.mxu0 %v702
        %726 = vmatprep.subr.bf16.mxu0 0
        %727 = vmatpush1.bf16.msra.mxu0 %v703
        %728 = vmatprep.subr.bf16.mxu0 0
        %729 = vmatpush1.bf16.msra.mxu0 0
        %730 = vmatprep.subr.bf16.mxu0 0
        %731 = vmatpush1.bf16.msra.mxu0 0
        %732 = vmatprep.subr.bf16.mxu0 0
        %733 = vmatpush1.bf16.msra.mxu0 0
        %734 = vmatprep.subr.bf16.mxu0 0
        %735 = vmatpush1.bf16.msra.mxu0 0
        %736 = vmatprep.subr.bf16.mxu0 0
        %737 = vmatpush1.bf16.msra.mxu0 0
        %738 = vmatprep.subr.bf16.mxu0 0
        %739 = vmatpush1.bf16.msra.mxu0 0
        %740 = vmatprep.subr.bf16.mxu0 0
        %741 = vmatpush1.bf16.msra.mxu0 0
        %742 = vmatprep.subr.bf16.mxu0 0
        %743 = vmatpush1.bf16.msra.mxu0 0
        %744 = vmatprep.mubr.bf16.mxu0 0
        %745 = vmatmul.mubr.bf16.gmra.mrb[0].mxu0 %v650
        %v746 = vpop.f32.mrb[0].mxu0
        %v747 = vadd.f32 0.0, %v746
        %v748 = vpop.f32.mrb[0].mxu0
        %v749 = vpop.f32.mrb[0].mxu0
        %v750 = vadd.f32 0.0, %v749
        %v751 = vpop.f32.mrb[0].mxu0
        %752 = vmatprep.mubr.bf16.mxu0 0
        %753 = vmatmul.mubr.bf16.gmra.mrb[0].mxu0 %v652
        %v754 = vpop.f32.mrb[0].mxu0
        %v755 = vadd.f32 0.0, %v754
        %v756 = vpop.f32.mrb[0].mxu0
        %v757 = vpop.f32.mrb[0].mxu0
        %v758 = vadd.f32 0.0, %v757
        %v759 = vpop.f32.mrb[0].mxu0
        %760 = vmatprep.mubr.bf16.mxu0 0
        %761 = vmatmul.mubr.bf16.gmra.mrb[0].mxu0 %v654
        %v762 = vpop.f32.mrb[0].mxu0
        %v763 = vadd.f32 0.0, %v762
        %v764 = vpop.f32.mrb[0].mxu0
        %v765 = vpop.f32.mrb[0].mxu0
        %v766 = vadd.f32 0.0, %v765
        %v767 = vpop.f32.mrb[0].mxu0
        %768 = vmatprep.mubr.bf16.mxu0 0
        %769 = vmatmul.mubr.bf16.gmra.mrb[0].mxu0 %v656
        %v770 = vpop.f32.mrb[0].mxu0
        %v771 = vadd.f32 0.0, %v770
        %v772 = vpop.f32.mrb[0].mxu0
        %v773 = vpop.f32.mrb[0].mxu0
        %v774 = vadd.f32 0.0, %v773
        %v775 = vpop.f32.mrb[0].mxu0
        %776 = vmatprep.mubr.bf16.mxu0 0
        %777 = vmatmul.mubr.bf16.gmra.mrb[0].mxu0 %v658
        %v778 = vpop.f32.mrb[0].mxu0
        %v779 = vadd.f32 0.0, %v778
        %v780 = vpop.f32.mrb[0].mxu0
        %v781 = vpop.f32.mrb[0].mxu0
        %v782 = vadd.f32 0.0, %v781
        %v783 = vpop.f32.mrb[0].mxu0
        %784 = vdwg.mxu0
        %v785 = vadd.f32 %v588, %v747
        %v786 = vadd.f32 %v591, %v750
        %v787 = vadd.f32 %v596, %v755
        %v788 = vadd.f32 %v599, %v758
        %v789 = vadd.f32 %v604, %v763
        %v790 = vadd.f32 %v607, %v766
        %v791 = vadd.f32 %v612, %v771
        %v792 = vadd.f32 %v615, %v774
        %v793 = vadd.f32 %v620, %v779
        %v794 = vadd.f32 %v623, %v782
        %v795 = vld [vmem:[%s219 + $0x4] sm:$0xe]
        %v796 = vld [vmem:[%s219 + $0x8] sm:$0xf]
        %v797 = vld [vmem:[%s219 + $0xc] sm:$0xf]
        %v798 = vld [vmem:[%s219 + $0x10] sm:$0xf]
        %v799 = vld [vmem:[%s219 + $0x14] sm:$0xf]
        %v800 = vld [vmem:[%s219 + $0x18] sm:$0xf]
        %v801 = vld [vmem:[%s219 + $0x1c] sm:$0xf]
        %v802 = vld [vmem:[%s219 + $0x20] sm:$0xf]
        %v803 = vld [vmem:[%s219 + $0x24] sm:$0xf]
        %v804 = vld [vmem:[%s219 + $0x28] sm:$0xf]
        %v805 = vld [vmem:[%s219 + $0x2c] sm:$0x1]
        %s806 = scalar_lea.vmem [#allocation5], 192
        %v807 = vld [vmem:[%s806] sm:$0xf]
        %v808 = vld [vmem:[%s806 + $0x4] sm:$0xf]
        %v809 = vld [vmem:[%s806 + $0x8] sm:$0xf]
        %v810 = vld [vmem:[%s806 + $0xc] sm:$0xf]
        %v811 = vld [vmem:[%s806 + $0x10] sm:$0xf]
        %v812 = vld [vmem:[%s806 + $0x14] sm:$0xf]
        %v813 = vld [vmem:[%s806 + $0x18] sm:$0xf]
        %v814 = vld [vmem:[%s806 + $0x1c] sm:$0xf]
        %v815 = vld [vmem:[%s806 + $0x20] sm:$0xf]
        %v816 = vld [vmem:[%s806 + $0x24] sm:$0xf]
        %v817 = vld [vmem:[%s806 + $0x28] sm:$0xf]
        %v818 = vld [vmem:[%s806 + $0x2c] sm:$0xf]
        %v819 = vld [vmem:[%s806 + $0x30] sm:$0xf]
        %v820 = vld [vmem:[%s806 + $0x34] sm:$0xf]
        %v821 = vld [vmem:[%s806 + $0x38] sm:$0xf]
        %v822 = vld [vmem:[%s806 + $0x3c] sm:$0xf]
        %v834 = vunpack.c.l.b16 %v795
        %v835 = vunpack.c.l.b16 %v796
        %v836 = vunpack.c.l.b16 %v797
        %v837 = vunpack.c.l.b16 %v798
        %v838 = vunpack.c.l.b16 %v799
        %v839 = vunpack.c.l.b16 %v800
        %v840 = vunpack.c.l.b16 %v801
        %v841 = vunpack.c.l.b16 %v802
        %v842 = vunpack.c.l.b16 %v803
        %v843 = vunpack.c.l.b16 %v804
        %v844 = vunpack.c.l.b16 %v805
        %v845 = vpack.c.b16 %v835, %v834
        %v846 = vpack.c.b16 %v837, %v836
        %v847 = vpack.c.b16 %v839, %v838
        %v848 = vpack.c.b16 %v841, %v840
        %v849 = vpack.c.b16 %v843, %v842
        %v850 = vpack.c.b16 %v844, %v844
        %v851 = vrot.slane %v845, 1
        %v852 = vrot.slane %v846, 1
        %v853 = vsel %vm647, %v851, %v852
        %v854 = vrot.slane %v847, 1
        %v855 = vsel %vm647, %v852, %v854
        %v856 = vrot.slane %v848, 1
        %v857 = vsel %vm647, %v854, %v856
        %v858 = vrot.slane %v849, 1
        %v859 = vsel %vm647, %v856, %v858
        %v860 = vrot.slane %v850, 1
        %v861 = vsel %vm647, %v858, %v860
        %v883 = vunpack.c.l.b16 %v807
        %v884 = vunpack.c.l.b16 %v808
        %v885 = vunpack.c.l.b16 %v809
        %v886 = vunpack.c.l.b16 %v810
        %v887 = vunpack.c.l.b16 %v811
        %v888 = vunpack.c.l.b16 %v812
        %v889 = vunpack.c.l.b16 %v813
        %v890 = vunpack.c.l.b16 %v814
        %v891 = vunpack.c.l.b16 %v815
        %v892 = vunpack.c.l.b16 %v816
        %v893 = vunpack.c.l.b16 %v817
        %v894 = vunpack.c.l.b16 %v818
        %v895 = vunpack.c.l.b16 %v819
        %v896 = vunpack.c.l.b16 %v820
        %v897 = vunpack.c.l.b16 %v821
        %v898 = vunpack.c.l.b16 %v822
        %v899 = vpack.c.b16 %v884, %v883
        %v900 = vpack.c.b16 %v886, %v885
        %v901 = vpack.c.b16 %v888, %v887
        %v902 = vpack.c.b16 %v890, %v889
        %v903 = vpack.c.b16 %v892, %v891
        %v904 = vpack.c.b16 %v894, %v893
        %v905 = vpack.c.b16 %v896, %v895
        %v906 = vpack.c.b16 %v898, %v897
        %915 = vmatprep.subr.bf16.mxu0 0
        %916 = vmatpush1.bf16.msra.mxu0 %v899
        %917 = vmatprep.subr.bf16.mxu0 0
        %918 = vmatpush1.bf16.msra.mxu0 %v900
        %919 = vmatprep.subr.bf16.mxu0 0
        %920 = vmatpush1.bf16.msra.mxu0 %v901
        %921 = vmatprep.subr.bf16.mxu0 0
        %922 = vmatpush1.bf16.msra.mxu0 %v902
        %923 = vmatprep.subr.bf16.mxu0 0
        %924 = vmatpush1.bf16.msra.mxu0 %v903
        %925 = vmatprep.subr.bf16.mxu0 0
        %926 = vmatpush1.bf16.msra.mxu0 %v904
        %927 = vmatprep.subr.bf16.mxu0 0
        %928 = vmatpush1.bf16.msra.mxu0 %v905
        %929 = vmatprep.subr.bf16.mxu0 0
        %930 = vmatpush1.bf16.msra.mxu0 %v906
        %931 = vmatprep.subr.bf16.mxu0 0
        %932 = vmatpush1.bf16.msra.mxu0 0
        %933 = vmatprep.subr.bf16.mxu0 0
        %934 = vmatpush1.bf16.msra.mxu0 0
        %935 = vmatprep.subr.bf16.mxu0 0
        %936 = vmatpush1.bf16.msra.mxu0 0
        %937 = vmatprep.subr.bf16.mxu0 0
        %938 = vmatpush1.bf16.msra.mxu0 0
        %939 = vmatprep.subr.bf16.mxu0 0
        %940 = vmatpush1.bf16.msra.mxu0 0
        %941 = vmatprep.subr.bf16.mxu0 0
        %942 = vmatpush1.bf16.msra.mxu0 0
        %943 = vmatprep.subr.bf16.mxu0 0
        %944 = vmatpush1.bf16.msra.mxu0 0
        %945 = vmatprep.subr.bf16.mxu0 0
        %946 = vmatpush1.bf16.msra.mxu0 0
        %947 = vmatprep.mubr.bf16.mxu0 0
        %948 = vmatmul.mubr.bf16.gmra.mrb[0].mxu0 %v853
        %v949 = vpop.f32.mrb[0].mxu0
        %v950 = vadd.f32 0.0, %v949
        %v951 = vpop.f32.mrb[0].mxu0
        %v952 = vpop.f32.mrb[0].mxu0
        %v953 = vadd.f32 0.0, %v952
        %v954 = vpop.f32.mrb[0].mxu0
        %955 = vmatprep.mubr.bf16.mxu0 0
        %956 = vmatmul.mubr.bf16.gmra.mrb[0].mxu0 %v855
        %v957 = vpop.f32.mrb[0].mxu0
        %v958 = vadd.f32 0.0, %v957
        %v959 = vpop.f32.mrb[0].mxu0
        %v960 = vpop.f32.mrb[0].mxu0
        %v961 = vadd.f32 0.0, %v960
        %v962 = vpop.f32.mrb[0].mxu0
        %963 = vmatprep.mubr.bf16.mxu0 0
        %964 = vmatmul.mubr.bf16.gmra.mrb[0].mxu0 %v857
        %v965 = vpop.f32.mrb[0].mxu0
        %v966 = vadd.f32 0.0, %v965
        %v967 = vpop.f32.mrb[0].mxu0
        %v968 = vpop.f32.mrb[0].mxu0
        %v969 = vadd.f32 0.0, %v968
        %v970 = vpop.f32.mrb[0].mxu0
        %971 = vmatprep.mubr.bf16.mxu0 0
        %972 = vmatmul.mubr.bf16.gmra.mrb[0].mxu0 %v859
        %v973 = vpop.f32.mrb[0].mxu0
        %v974 = vadd.f32 0.0, %v973
        %v975 = vpop.f32.mrb[0].mxu0
        %v976 = vpop.f32.mrb[0].mxu0
        %v977 = vadd.f32 0.0, %v976
        %v978 = vpop.f32.mrb[0].mxu0
        %979 = vmatprep.mubr.bf16.mxu0 0
        %980 = vmatmul.mubr.bf16.gmra.mrb[0].mxu0 %v861
        %v981 = vpop.f32.mrb[0].mxu0
        %v982 = vadd.f32 0.0, %v981
        %v983 = vpop.f32.mrb[0].mxu0
        %v984 = vpop.f32.mrb[0].mxu0
        %v985 = vadd.f32 0.0, %v984
        %v986 = vpop.f32.mrb[0].mxu0
        %987 = vdwg.mxu0
        %v988 = vadd.f32 %v785, %v950
        %v989 = vadd.f32 %v786, %v953
        %v990 = vadd.f32 %v787, %v958
        %v991 = vadd.f32 %v788, %v961
        %v992 = vadd.f32 %v789, %v966
        %v993 = vadd.f32 %v790, %v969
        %v994 = vadd.f32 %v791, %v974
        %v995 = vadd.f32 %v792, %v977
        %v996 = vadd.f32 %v793, %v982
        %v997 = vadd.f32 %v794, %v985
        %v998 = vld [vmem:[%s219 + $0x2c] sm:$0x3]
        %s999 = scalar_lea.vmem [#allocation5], 256
        %v1000 = vld [vmem:[%s999] sm:$0xf]
        %v1001 = vld [vmem:[%s999 + $0x4] sm:$0xf]
        %v1002 = vld [vmem:[%s999 + $0x8] sm:$0xf]
        %v1003 = vld [vmem:[%s999 + $0xc] sm:$0xf]
        %v1004 = vld [vmem:[%s999 + $0x10] sm:$0xf]
        %v1005 = vld [vmem:[%s999 + $0x14] sm:$0xf]
        %v1006 = vld [vmem:[%s999 + $0x18] sm:$0xf]
        %v1007 = vld [vmem:[%s999 + $0x1c] sm:$0xf]
        %v1008 = vld [vmem:[%s999 + $0x20] sm:$0xf]
        %v1009 = vld [vmem:[%s999 + $0x24] sm:$0xf]
        %v1010 = vld [vmem:[%s999 + $0x28] sm:$0xf]
        %v1011 = vld [vmem:[%s999 + $0x2c] sm:$0xf]
        %v1012 = vld [vmem:[%s999 + $0x30] sm:$0xf]
        %v1013 = vld [vmem:[%s999 + $0x34] sm:$0xf]
        %v1014 = vld [vmem:[%s999 + $0x38] sm:$0xf]
        %v1015 = vld [vmem:[%s999 + $0x3c] sm:$0xf]
        %v1017 = vunpack.c.l.b16 %v998
        %v1018 = vpack.c.b16 %v1017, %v1017
        %vm1019 = vsmask.f32 6400
        %v1021 = vshrl.u32 %v845, 16
        %v1023 = vrot.slane %v1021, 1
        %v1024 = vshll.u32 %v845, 16
        %v1026 = vrot.slane %v1024, 2
        %v1027 = vor.u32 %v1023, %v1026
        %v1029 = vshrl.u32 %v846, 16
        %v1031 = vrot.slane %v1029, 1
        %v1032 = vshll.u32 %v846, 16
        %v1034 = vrot.slane %v1032, 2
        %v1035 = vor.u32 %v1031, %v1034
        %v1036 = vsel %vm1019, %v1027, %v1035
        %v1038 = vshrl.u32 %v847, 16
        %v1040 = vrot.slane %v1038, 1
        %v1041 = vshll.u32 %v847, 16
        %v1043 = vrot.slane %v1041, 2
        %v1044 = vor.u32 %v1040, %v1043
        %v1045 = vsel %vm1019, %v1035, %v1044
        %v1047 = vshrl.u32 %v848, 16
        %v1049 = vrot.slane %v1047, 1
        %v1050 = vshll.u32 %v848, 16
        %v1052 = vrot.slane %v1050, 2
        %v1053 = vor.u32 %v1049, %v1052
        %v1054 = vsel %vm1019, %v1044, %v1053
        %v1056 = vshrl.u32 %v849, 16
        %v1058 = vrot.slane %v1056, 1
        %v1059 = vshll.u32 %v849, 16
        %v1061 = vrot.slane %v1059, 2
        %v1062 = vor.u32 %v1058, %v1061
        %v1063 = vsel %vm1019, %v1053, %v1062
        %v1065 = vshrl.u32 %v1018, 16
        %v1067 = vrot.slane %v1065, 1
        %v1068 = vshll.u32 %v1018, 16
        %v1070 = vrot.slane %v1068, 2
        %v1071 = vor.u32 %v1067, %v1070
        %v1072 = vsel %vm1019, %v1062, %v1071
        %v1094 = vunpack.c.l.b16 %v1000
        %v1095 = vunpack.c.l.b16 %v1001
        %v1096 = vunpack.c.l.b16 %v1002
        %v1097 = vunpack.c.l.b16 %v1003
        %v1098 = vunpack.c.l.b16 %v1004
        %v1099 = vunpack.c.l.b16 %v1005
        %v1100 = vunpack.c.l.b16 %v1006
        %v1101 = vunpack.c.l.b16 %v1007
        %v1102 = vunpack.c.l.b16 %v1008
        %v1103 = vunpack.c.l.b16 %v1009
        %v1104 = vunpack.c.l.b16 %v1010
        %v1105 = vunpack.c.l.b16 %v1011
        %v1106 = vunpack.c.l.b16 %v1012
        %v1107 = vunpack.c.l.b16 %v1013
        %v1108 = vunpack.c.l.b16 %v1014
        %v1109 = vunpack.c.l.b16 %v1015
        %v1110 = vpack.c.b16 %v1095, %v1094
        %v1111 = vpack.c.b16 %v1097, %v1096
        %v1112 = vpack.c.b16 %v1099, %v1098
        %v1113 = vpack.c.b16 %v1101, %v1100
        %v1114 = vpack.c.b16 %v1103, %v1102
        %v1115 = vpack.c.b16 %v1105, %v1104
        %v1116 = vpack.c.b16 %v1107, %v1106
        %v1117 = vpack.c.b16 %v1109, %v1108
        %1126 = vmatprep.subr.bf16.mxu0 0
        %1127 = vmatpush1.bf16.msra.mxu0 %v1110
        %1128 = vmatprep.subr.bf16.mxu0 0
        %1129 = vmatpush1.bf16.msra.mxu0 %v1111
        %1130 = vmatprep.subr.bf16.mxu0 0
        %1131 = vmatpush1.bf16.msra.mxu0 %v1112
        %1132 = vmatprep.subr.bf16.mxu0 0
        %1133 = vmatpush1.bf16.msra.mxu0 %v1113
        %1134 = vmatprep.subr.bf16.mxu0 0
        %1135 = vmatpush1.bf16.msra.mxu0 %v1114
        %1136 = vmatprep.subr.bf16.mxu0 0
        %1137 = vmatpush1.bf16.msra.mxu0 %v1115
        %1138 = vmatprep.subr.bf16.mxu0 0
        %1139 = vmatpush1.bf16.msra.mxu0 %v1116
        %1140 = vmatprep.subr.bf16.mxu0 0
        %1141 = vmatpush1.bf16.msra.mxu0 %v1117
        %1142 = vmatprep.subr.bf16.mxu0 0
        %1143 = vmatpush1.bf16.msra.mxu0 0
        %1144 = vmatprep.subr.bf16.mxu0 0
        %1145 = vmatpush1.bf16.msra.mxu0 0
        %1146 = vmatprep.subr.bf16.mxu0 0
        %1147 = vmatpush1.bf16.msra.mxu0 0
        %1148 = vmatprep.subr.bf16.mxu0 0
        %1149 = vmatpush1.bf16.msra.mxu0 0
        %1150 = vmatprep.subr.bf16.mxu0 0
        %1151 = vmatpush1.bf16.msra.mxu0 0
        %1152 = vmatprep.subr.bf16.mxu0 0
        %1153 = vmatpush1.bf16.msra.mxu0 0
        %1154 = vmatprep.subr.bf16.mxu0 0
        %1155 = vmatpush1.bf16.msra.mxu0 0
        %1156 = vmatprep.subr.bf16.mxu0 0
        %1157 = vmatpush1.bf16.msra.mxu0 0
        %1158 = vmatprep.mubr.bf16.mxu0 0
        %1159 = vmatmul.mubr.bf16.gmra.mrb[0].mxu0 %v1036
        %v1160 = vpop.f32.mrb[0].mxu0
        %v1161 = vadd.f32 0.0, %v1160
        %v1162 = vpop.f32.mrb[0].mxu0
        %v1163 = vpop.f32.mrb[0].mxu0
        %v1164 = vadd.f32 0.0, %v1163
        %v1165 = vpop.f32.mrb[0].mxu0
        %1166 = vmatprep.mubr.bf16.mxu0 0
        %1167 = vmatmul.mubr.bf16.gmra.mrb[0].mxu0 %v1045
        %v1168 = vpop.f32.mrb[0].mxu0
        %v1169 = vadd.f32 0.0, %v1168
        %v1170 = vpop.f32.mrb[0].mxu0
        %v1171 = vpop.f32.mrb[0].mxu0
        %v1172 = vadd.f32 0.0, %v1171
        %v1173 = vpop.f32.mrb[0].mxu0
        %1174 = vmatprep.mubr.bf16.mxu0 0
        %1175 = vmatmul.mubr.bf16.gmra.mrb[0].mxu0 %v1054
        %v1176 = vpop.f32.mrb[0].mxu0
        %v1177 = vadd.f32 0.0, %v1176
        %v1178 = vpop.f32.mrb[0].mxu0
        %v1179 = vpop.f32.mrb[0].mxu0
        %v1180 = vadd.f32 0.0, %v1179
        %v1181 = vpop.f32.mrb[0].mxu0
        %1182 = vmatprep.mubr.bf16.mxu0 0
        %1183 = vmatmul.mubr.bf16.gmra.mrb[0].mxu0 %v1063
        %v1184 = vpop.f32.mrb[0].mxu0
        %v1185 = vadd.f32 0.0, %v1184
        %v1186 = vpop.f32.mrb[0].mxu0
        %v1187 = vpop.f32.mrb[0].mxu0
        %v1188 = vadd.f32 0.0, %v1187
        %v1189 = vpop.f32.mrb[0].mxu0
        %1190 = vmatprep.mubr.bf16.mxu0 0
        %1191 = vmatmul.mubr.bf16.gmra.mrb[0].mxu0 %v1072
        %v1192 = vpop.f32.mrb[0].mxu0
        %v1193 = vadd.f32 0.0, %v1192
        %v1194 = vpop.f32.mrb[0].mxu0
        %v1195 = vpop.f32.mrb[0].mxu0
        %v1196 = vadd.f32 0.0, %v1195
        %v1197 = vpop.f32.mrb[0].mxu0
        %1198 = vdwg.mxu0
        %v1199 = vadd.f32 %v988, %v1161
        %v1200 = vadd.f32 %v989, %v1164
        %v1201 = vadd.f32 %v990, %v1169
        %v1202 = vadd.f32 %v991, %v1172
        %v1203 = vadd.f32 %v992, %v1177
        %v1204 = vadd.f32 %v993, %v1180
        %v1205 = vadd.f32 %v994, %v1185
        %v1206 = vadd.f32 %v995, %v1188
        %v1207 = vadd.f32 %v996, %v1193
        %v1208 = vadd.f32 %v997, %v1196
        %v1209 = vld [vmem:[%s219 + $0x4] sm:$0xc]
        %s1210 = scalar_lea.vmem [#allocation5], 320
        %v1211 = vld [vmem:[%s1210] sm:$0xf]
        %v1212 = vld [vmem:[%s1210 + $0x4] sm:$0xf]
        %v1213 = vld [vmem:[%s1210 + $0x8] sm:$0xf]
        %v1214 = vld [vmem:[%s1210 + $0xc] sm:$0xf]
        %v1215 = vld [vmem:[%s1210 + $0x10] sm:$0xf]
        %v1216 = vld [vmem:[%s1210 + $0x14] sm:$0xf]
        %v1217 = vld [vmem:[%s1210 + $0x18] sm:$0xf]
        %v1218 = vld [vmem:[%s1210 + $0x1c] sm:$0xf]
        %v1219 = vld [vmem:[%s1210 + $0x20] sm:$0xf]
        %v1220 = vld [vmem:[%s1210 + $0x24] sm:$0xf]
        %v1221 = vld [vmem:[%s1210 + $0x28] sm:$0xf]
        %v1222 = vld [vmem:[%s1210 + $0x2c] sm:$0xf]
        %v1223 = vld [vmem:[%s1210 + $0x30] sm:$0xf]
        %v1224 = vld [vmem:[%s1210 + $0x34] sm:$0xf]
        %v1225 = vld [vmem:[%s1210 + $0x38] sm:$0xf]
        %v1226 = vld [vmem:[%s1210 + $0x3c] sm:$0xf]
        %v1228 = vunpack.c.l.b16 %v1209
        %v1229 = vpack.c.b16 %v835, %v1228
        %vm1230 = vcmask 1045504
        %v1231 = vrot.slane %v1229, 2
        %v1232 = vrot.slane %v846, 2
        %v1233 = vsel %vm1230, %v1231, %v1232
        %v1234 = vrot.slane %v847, 2
        %v1235 = vsel %vm1230, %v1232, %v1234
        %v1236 = vrot.slane %v848, 2
        %v1237 = vsel %vm1230, %v1234, %v1236
        %v1238 = vrot.slane %v849, 2
        %v1239 = vsel %vm1230, %v1236, %v1238
        %v1240 = vrot.slane %v1018, 2
        %v1241 = vsel %vm1230, %v1238, %v1240
        %v1263 = vunpack.c.l.b16 %v1211
        %v1264 = vunpack.c.l.b16 %v1212
        %v1265 = vunpack.c.l.b16 %v1213
        %v1266 = vunpack.c.l.b16 %v1214
        %v1267 = vunpack.c.l.b16 %v1215
        %v1268 = vunpack.c.l.b16 %v1216
        %v1269 = vunpack.c.l.b16 %v1217
        %v1270 = vunpack.c.l.b16 %v1218
        %v1271 = vunpack.c.l.b16 %v1219
        %v1272 = vunpack.c.l.b16 %v1220
        %v1273 = vunpack.c.l.b16 %v1221
        %v1274 = vunpack.c.l.b16 %v1222
        %v1275 = vunpack.c.l.b16 %v1223
        %v1276 = vunpack.c.l.b16 %v1224
        %v1277 = vunpack.c.l.b16 %v1225
        %v1278 = vunpack.c.l.b16 %v1226
        %v1279 = vpack.c.b16 %v1264, %v1263
        %v1280 = vpack.c.b16 %v1266, %v1265
        %v1281 = vpack.c.b16 %v1268, %v1267
        %v1282 = vpack.c.b16 %v1270, %v1269
        %v1283 = vpack.c.b16 %v1272, %v1271
        %v1284 = vpack.c.b16 %v1274, %v1273
        %v1285 = vpack.c.b16 %v1276, %v1275
        %v1286 = vpack.c.b16 %v1278, %v1277
        %1295 = vmatprep.subr.bf16.mxu0 0
        %1296 = vmatpush1.bf16.msra.mxu0 %v1279
        %1297 = vmatprep.subr.bf16.mxu0 0
        %1298 = vmatpush1.bf16.msra.mxu0 %v1280
        %1299 = vmatprep.subr.bf16.mxu0 0
        %1300 = vmatpush1.bf16.msra.mxu0 %v1281
        %1301 = vmatprep.subr.bf16.mxu0 0
        %1302 = vmatpush1.bf16.msra.mxu0 %v1282
        %1303 = vmatprep.subr.bf16.mxu0 0
        %1304 = vmatpush1.bf16.msra.mxu0 %v1283
        %1305 = vmatprep.subr.bf16.mxu0 0
        %1306 = vmatpush1.bf16.msra.mxu0 %v1284
        %1307 = vmatprep.subr.bf16.mxu0 0
        %1308 = vmatpush1.bf16.msra.mxu0 %v1285
        %1309 = vmatprep.subr.bf16.mxu0 0
        %1310 = vmatpush1.bf16.msra.mxu0 %v1286
        %1311 = vmatprep.subr.bf16.mxu0 0
        %1312 = vmatpush1.bf16.msra.mxu0 0
        %1313 = vmatprep.subr.bf16.mxu0 0
        %1314 = vmatpush1.bf16.msra.mxu0 0
        %1315 = vmatprep.subr.bf16.mxu0 0
        %1316 = vmatpush1.bf16.msra.mxu0 0
        %1317 = vmatprep.subr.bf16.mxu0 0
        %1318 = vmatpush1.bf16.msra.mxu0 0
        %1319 = vmatprep.subr.bf16.mxu0 0
        %1320 = vmatpush1.bf16.msra.mxu0 0
        %1321 = vmatprep.subr.bf16.mxu0 0
        %1322 = vmatpush1.bf16.msra.mxu0 0
        %1323 = vmatprep.subr.bf16.mxu0 0
        %1324 = vmatpush1.bf16.msra.mxu0 0
        %1325 = vmatprep.subr.bf16.mxu0 0
        %1326 = vmatpush1.bf16.msra.mxu0 0
        %1327 = vmatprep.mubr.bf16.mxu0 0
        %1328 = vmatmul.mubr.bf16.gmra.mrb[0].mxu0 %v1233
        %v1329 = vpop.f32.mrb[0].mxu0
        %v1330 = vadd.f32 0.0, %v1329
        %v1331 = vpop.f32.mrb[0].mxu0
        %v1332 = vpop.f32.mrb[0].mxu0
        %v1333 = vadd.f32 0.0, %v1332
        %v1334 = vpop.f32.mrb[0].mxu0
        %1335 = vmatprep.mubr.bf16.mxu0 0
        %1336 = vmatmul.mubr.bf16.gmra.mrb[0].mxu0 %v1235
        %v1337 = vpop.f32.mrb[0].mxu0
        %v1338 = vadd.f32 0.0, %v1337
        %v1339 = vpop.f32.mrb[0].mxu0
        %v1340 = vpop.f32.mrb[0].mxu0
        %v1341 = vadd.f32 0.0, %v1340
        %v1342 = vpop.f32.mrb[0].mxu0
        %1343 = vmatprep.mubr.bf16.mxu0 0
        %1344 = vmatmul.mubr.bf16.gmra.mrb[0].mxu0 %v1237
        %v1345 = vpop.f32.mrb[0].mxu0
        %v1346 = vadd.f32 0.0, %v1345
        %v1347 = vpop.f32.mrb[0].mxu0
        %v1348 = vpop.f32.mrb[0].mxu0
        %v1349 = vadd.f32 0.0, %v1348
        %v1350 = vpop.f32.mrb[0].mxu0
        %1351 = vmatprep.mubr.bf16.mxu0 0
        %1352 = vmatmul.mubr.bf16.gmra.mrb[0].mxu0 %v1239
        %v1353 = vpop.f32.mrb[0].mxu0
        %v1354 = vadd.f32 0.0, %v1353
        %v1355 = vpop.f32.mrb[0].mxu0
        %v1356 = vpop.f32.mrb[0].mxu0
        %v1357 = vadd.f32 0.0, %v1356
        %v1358 = vpop.f32.mrb[0].mxu0
        %1359 = vmatprep.mubr.bf16.mxu0 0
        %1360 = vmatmul.mubr.bf16.gmra.mrb[0].mxu0 %v1241
        %v1361 = vpop.f32.mrb[0].mxu0
        %v1362 = vadd.f32 0.0, %v1361
        %v1363 = vpop.f32.mrb[0].mxu0
        %v1364 = vpop.f32.mrb[0].mxu0
        %v1365 = vadd.f32 0.0, %v1364
        %v1366 = vpop.f32.mrb[0].mxu0
        %1367 = vdwg.mxu0
        %v1368 = vadd.f32 %v1199, %v1330
        %v1369 = vadd.f32 %v1200, %v1333
        %v1370 = vadd.f32 %v1201, %v1338
        %v1371 = vadd.f32 %v1202, %v1341
        %v1372 = vadd.f32 %v1203, %v1346
        %v1373 = vadd.f32 %v1204, %v1349
        %v1374 = vadd.f32 %v1205, %v1354
        %v1375 = vadd.f32 %v1206, %v1357
        %v1376 = vadd.f32 %v1207, %v1362
        %v1377 = vadd.f32 %v1208, %v1365
        %v1378 = vld [vmem:[%s219 + $0x8] sm:$0xc]
        %v1379 = vld [vmem:[%s219 + $0xc] sm:$0xf]
        %v1380 = vld [vmem:[%s219 + $0x10] sm:$0xf]
        %v1381 = vld [vmem:[%s219 + $0x14] sm:$0xf]
        %v1382 = vld [vmem:[%s219 + $0x18] sm:$0xf]
        %v1383 = vld [vmem:[%s219 + $0x1c] sm:$0xf]
        %v1384 = vld [vmem:[%s219 + $0x20] sm:$0xf]
        %v1385 = vld [vmem:[%s219 + $0x24] sm:$0xf]
        %v1386 = vld [vmem:[%s219 + $0x28] sm:$0xf]
        %v1387 = vld [vmem:[%s219 + $0x2c] sm:$0xf]
        %v1388 = vld [vmem:[%s219 + $0x30] sm:$0x3]
        %s1389 = scalar_lea.vmem [#allocation5], 384
        %v1390 = vld [vmem:[%s1389] sm:$0xf]
        %v1391 = vld [vmem:[%s1389 + $0x4] sm:$0xf]
        %v1392 = vld [vmem:[%s1389 + $0x8] sm:$0xf]
        %v1393 = vld [vmem:[%s1389 + $0xc] sm:$0xf]
        %v1394 = vld [vmem:[%s1389 + $0x10] sm:$0xf]
        %v1395 = vld [vmem:[%s1389 + $0x14] sm:$0xf]
        %v1396 = vld [vmem:[%s1389 + $0x18] sm:$0xf]
        %v1397 = vld [vmem:[%s1389 + $0x1c] sm:$0xf]
        %v1398 = vld [vmem:[%s1389 + $0x20] sm:$0xf]
        %v1399 = vld [vmem:[%s1389 + $0x24] sm:$0xf]
        %v1400 = vld [vmem:[%s1389 + $0x28] sm:$0xf]
        %v1401 = vld [vmem:[%s1389 + $0x2c] sm:$0xf]
        %v1402 = vld [vmem:[%s1389 + $0x30] sm:$0xf]
        %v1403 = vld [vmem:[%s1389 + $0x34] sm:$0xf]
        %v1404 = vld [vmem:[%s1389 + $0x38] sm:$0xf]
        %v1405 = vld [vmem:[%s1389 + $0x3c] sm:$0xf]
        %v1417 = vunpack.c.l.b16 %v1378
        %v1418 = vunpack.c.l.b16 %v1379
        %v1419 = vunpack.c.l.b16 %v1380
        %v1420 = vunpack.c.l.b16 %v1381
        %v1421 = vunpack.c.l.b16 %v1382
        %v1422 = vunpack.c.l.b16 %v1383
        %v1423 = vunpack.c.l.b16 %v1384
        %v1424 = vunpack.c.l.b16 %v1385
        %v1425 = vunpack.c.l.b16 %v1386
        %v1426 = vunpack.c.l.b16 %v1387
        %v1427 = vunpack.c.l.b16 %v1388
        %v1428 = vpack.c.b16 %v1418, %v1417
        %v1429 = vpack.c.b16 %v1420, %v1419
        %v1430 = vpack.c.b16 %v1422, %v1421
        %v1431 = vpack.c.b16 %v1424, %v1423
        %v1432 = vpack.c.b16 %v1426, %v1425
        %v1433 = vpack.c.b16 %v1427, %v1427
        %v1434 = vrot.slane %v1428, 2
        %v1435 = vrot.slane %v1429, 2
        %v1436 = vsel %vm1230, %v1434, %v1435
        %v1437 = vrot.slane %v1430, 2
        %v1438 = vsel %vm1230, %v1435, %v1437
        %v1439 = vrot.slane %v1431, 2
        %v1440 = vsel %vm1230, %v1437, %v1439
        %v1441 = vrot.slane %v1432, 2
        %v1442 = vsel %vm1230, %v1439, %v1441
        %v1443 = vrot.slane %v1433, 2
        %v1444 = vsel %vm1230, %v1441, %v1443
        %v1466 = vunpack.c.l.b16 %v1390
        %v1467 = vunpack.c.l.b16 %v1391
        %v1468 = vunpack.c.l.b16 %v1392
        %v1469 = vunpack.c.l.b16 %v1393
        %v1470 = vunpack.c.l.b16 %v1394
        %v1471 = vunpack.c.l.b16 %v1395
        %v1472 = vunpack.c.l.b16 %v1396
        %v1473 = vunpack.c.l.b16 %v1397
        %v1474 = vunpack.c.l.b16 %v1398
        %v1475 = vunpack.c.l.b16 %v1399
        %v1476 = vunpack.c.l.b16 %v1400
        %v1477 = vunpack.c.l.b16 %v1401
        %v1478 = vunpack.c.l.b16 %v1402
        %v1479 = vunpack.c.l.b16 %v1403
        %v1480 = vunpack.c.l.b16 %v1404
        %v1481 = vunpack.c.l.b16 %v1405
        %v1482 = vpack.c.b16 %v1467, %v1466
        %v1483 = vpack.c.b16 %v1469, %v1468
        %v1484 = vpack.c.b16 %v1471, %v1470
        %v1485 = vpack.c.b16 %v1473, %v1472
        %v1486 = vpack.c.b16 %v1475, %v1474
        %v1487 = vpack.c.b16 %v1477, %v1476
        %v1488 = vpack.c.b16 %v1479, %v1478
        %v1489 = vpack.c.b16 %v1481, %v1480
        %1498 = vmatprep.subr.bf16.mxu0 0
        %1499 = vmatpush1.bf16.msra.mxu0 %v1482
        %1500 = vmatprep.subr.bf16.mxu0 0
        %1501 = vmatpush1.bf16.msra.mxu0 %v1483
        %1502 = vmatprep.subr.bf16.mxu0 0
        %1503 = vmatpush1.bf16.msra.mxu0 %v1484
        %1504 = vmatprep.subr.bf16.mxu0 0
        %1505 = vmatpush1.bf16.msra.mxu0 %v1485
        %1506 = vmatprep.subr.bf16.mxu0 0
        %1507 = vmatpush1.bf16.msra.mxu0 %v1486
        %1508 = vmatprep.subr.bf16.mxu0 0
        %1509 = vmatpush1.bf16.msra.mxu0 %v1487
        %1510 = vmatprep.subr.bf16.mxu0 0
        %1511 = vmatpush1.bf16.msra.mxu0 %v1488
        %1512 = vmatprep.subr.bf16.mxu0 0
        %1513 = vmatpush1.bf16.msra.mxu0 %v1489
        %1514 = vmatprep.subr.bf16.mxu0 0
        %1515 = vmatpush1.bf16.msra.mxu0 0
        %1516 = vmatprep.subr.bf16.mxu0 0
        %1517 = vmatpush1.bf16.msra.mxu0 0
        %1518 = vmatprep.subr.bf16.mxu0 0
        %1519 = vmatpush1.bf16.msra.mxu0 0
        %1520 = vmatprep.subr.bf16.mxu0 0
        %1521 = vmatpush1.bf16.msra.mxu0 0
        %1522 = vmatprep.subr.bf16.mxu0 0
        %1523 = vmatpush1.bf16.msra.mxu0 0
        %1524 = vmatprep.subr.bf16.mxu0 0
        %1525 = vmatpush1.bf16.msra.mxu0 0
        %1526 = vmatprep.subr.bf16.mxu0 0
        %1527 = vmatpush1.bf16.msra.mxu0 0
        %1528 = vmatprep.subr.bf16.mxu0 0
        %1529 = vmatpush1.bf16.msra.mxu0 0
        %1530 = vmatprep.mubr.bf16.mxu0 0
        %1531 = vmatmul.mubr.bf16.gmra.mrb[0].mxu0 %v1436
        %v1532 = vpop.f32.mrb[0].mxu0
        %v1533 = vadd.f32 0.0, %v1532
        %v1534 = vpop.f32.mrb[0].mxu0
        %v1535 = vpop.f32.mrb[0].mxu0
        %v1536 = vadd.f32 0.0, %v1535
        %v1537 = vpop.f32.mrb[0].mxu0
        %1538 = vmatprep.mubr.bf16.mxu0 0
        %1539 = vmatmul.mubr.bf16.gmra.mrb[0].mxu0 %v1438
        %v1540 = vpop.f32.mrb[0].mxu0
        %v1541 = vadd.f32 0.0, %v1540
        %v1542 = vpop.f32.mrb[0].mxu0
        %v1543 = vpop.f32.mrb[0].mxu0
        %v1544 = vadd.f32 0.0, %v1543
        %v1545 = vpop.f32.mrb[0].mxu0
        %1546 = vmatprep.mubr.bf16.mxu0 0
        %1547 = vmatmul.mubr.bf16.gmra.mrb[0].mxu0 %v1440
        %v1548 = vpop.f32.mrb[0].mxu0
        %v1549 = vadd.f32 0.0, %v1548
        %v1550 = vpop.f32.mrb[0].mxu0
        %v1551 = vpop.f32.mrb[0].mxu0
        %v1552 = vadd.f32 0.0, %v1551
        %v1553 = vpop.f32.mrb[0].mxu0
        %1554 = vmatprep.mubr.bf16.mxu0 0
        %1555 = vmatmul.mubr.bf16.gmra.mrb[0].mxu0 %v1442
        %v1556 = vpop.f32.mrb[0].mxu0
        %v1557 = vadd.f32 0.0, %v1556
        %v1558 = vpop.f32.mrb[0].mxu0
        %v1559 = vpop.f32.mrb[0].mxu0
        %v1560 = vadd.f32 0.0, %v1559
        %v1561 = vpop.f32.mrb[0].mxu0
        %1562 = vmatprep.mubr.bf16.mxu0 0
        %1563 = vmatmul.mubr.bf16.gmra.mrb[0].mxu0 %v1444
        %v1564 = vpop.f32.mrb[0].mxu0
        %v1565 = vadd.f32 0.0, %v1564
        %v1566 = vpop.f32.mrb[0].mxu0
        %v1567 = vpop.f32.mrb[0].mxu0
        %v1568 = vadd.f32 0.0, %v1567
        %v1569 = vpop.f32.mrb[0].mxu0
        %1570 = vdwg.mxu0
        %v1571 = vadd.f32 %v1368, %v1533
        %v1572 = vadd.f32 %v1369, %v1536
        %v1573 = vadd.f32 %v1370, %v1541
        %v1574 = vadd.f32 %v1371, %v1544
        %v1575 = vadd.f32 %v1372, %v1549
        %v1576 = vadd.f32 %v1373, %v1552
        %v1577 = vadd.f32 %v1374, %v1557
        %v1578 = vadd.f32 %v1375, %v1560
        %v1579 = vadd.f32 %v1376, %v1565
        %v1580 = vadd.f32 %v1377, %v1568
        %v1581 = vld [vmem:[%s219 + $0x30] sm:$0x7]
        %s1582 = scalar_lea.vmem [#allocation5], 448
        %v1583 = vld [vmem:[%s1582] sm:$0xf]
        %v1584 = vld [vmem:[%s1582 + $0x4] sm:$0xf]
        %v1585 = vld [vmem:[%s1582 + $0x8] sm:$0xf]
        %v1586 = vld [vmem:[%s1582 + $0xc] sm:$0xf]
        %v1587 = vld [vmem:[%s1582 + $0x10] sm:$0xf]
        %v1588 = vld [vmem:[%s1582 + $0x14] sm:$0xf]
        %v1589 = vld [vmem:[%s1582 + $0x18] sm:$0xf]
        %v1590 = vld [vmem:[%s1582 + $0x1c] sm:$0xf]
        %v1591 = vld [vmem:[%s1582 + $0x20] sm:$0xf]
        %v1592 = vld [vmem:[%s1582 + $0x24] sm:$0xf]
        %v1593 = vld [vmem:[%s1582 + $0x28] sm:$0xf]
        %v1594 = vld [vmem:[%s1582 + $0x2c] sm:$0xf]
        %v1595 = vld [vmem:[%s1582 + $0x30] sm:$0xf]
        %v1596 = vld [vmem:[%s1582 + $0x34] sm:$0xf]
        %v1597 = vld [vmem:[%s1582 + $0x38] sm:$0xf]
        %v1598 = vld [vmem:[%s1582 + $0x3c] sm:$0xf]
        %v1600 = vunpack.c.l.b16 %v1581
        %v1601 = vpack.c.b16 %v1600, %v1600
        %vm1602 = vsmask.f32 5376
        %v1604 = vshrl.u32 %v1428, 16
        %v1606 = vrot.slane %v1604, 2
        %v1607 = vshll.u32 %v1428, 16
        %v1609 = vrot.slane %v1607, 3
        %v1610 = vor.u32 %v1606, %v1609
        %v1612 = vshrl.u32 %v1429, 16
        %v1614 = vrot.slane %v1612, 2
        %v1615 = vshll.u32 %v1429, 16
        %v1617 = vrot.slane %v1615, 3
        %v1618 = vor.u32 %v1614, %v1617
        %v1619 = vsel %vm1602, %v1610, %v1618
        %v1621 = vshrl.u32 %v1430, 16
        %v1623 = vrot.slane %v1621, 2
        %v1624 = vshll.u32 %v1430, 16
        %v1626 = vrot.slane %v1624, 3
        %v1627 = vor.u32 %v1623, %v1626
        %v1628 = vsel %vm1602, %v1618, %v1627
        %v1630 = vshrl.u32 %v1431, 16
        %v1632 = vrot.slane %v1630, 2
        %v1633 = vshll.u32 %v1431, 16
        %v1635 = vrot.slane %v1633, 3
        %v1636 = vor.u32 %v1632, %v1635
        %v1637 = vsel %vm1602, %v1627, %v1636
        %v1639 = vshrl.u32 %v1432, 16
        %v1641 = vrot.slane %v1639, 2
        %v1642 = vshll.u32 %v1432, 16
        %v1644 = vrot.slane %v1642, 3
        %v1645 = vor.u32 %v1641, %v1644
        %v1646 = vsel %vm1602, %v1636, %v1645
        %v1648 = vshrl.u32 %v1601, 16
        %v1650 = vrot.slane %v1648, 2
        %v1651 = vshll.u32 %v1601, 16
        %v1653 = vrot.slane %v1651, 3
        %v1654 = vor.u32 %v1650, %v1653
        %v1655 = vsel %vm1602, %v1645, %v1654
        %v1677 = vunpack.c.l.b16 %v1583
        %v1678 = vunpack.c.l.b16 %v1584
        %v1679 = vunpack.c.l.b16 %v1585
        %v1680 = vunpack.c.l.b16 %v1586
        %v1681 = vunpack.c.l.b16 %v1587
        %v1682 = vunpack.c.l.b16 %v1588
        %v1683 = vunpack.c.l.b16 %v1589
        %v1684 = vunpack.c.l.b16 %v1590
        %v1685 = vunpack.c.l.b16 %v1591
        %v1686 = vunpack.c.l.b16 %v1592
        %v1687 = vunpack.c.l.b16 %v1593
        %v1688 = vunpack.c.l.b16 %v1594
        %v1689 = vunpack.c.l.b16 %v1595
        %v1690 = vunpack.c.l.b16 %v1596
        %v1691 = vunpack.c.l.b16 %v1597
        %v1692 = vunpack.c.l.b16 %v1598
        %v1693 = vpack.c.b16 %v1678, %v1677
        %v1694 = vpack.c.b16 %v1680, %v1679
        %v1695 = vpack.c.b16 %v1682, %v1681
        %v1696 = vpack.c.b16 %v1684, %v1683
        %v1697 = vpack.c.b16 %v1686, %v1685
        %v1698 = vpack.c.b16 %v1688, %v1687
        %v1699 = vpack.c.b16 %v1690, %v1689
        %v1700 = vpack.c.b16 %v1692, %v1691
        %1709 = vmatprep.subr.bf16.mxu0 0
        %1710 = vmatpush1.bf16.msra.mxu0 %v1693
        %1711 = vmatprep.subr.bf16.mxu0 0
        %1712 = vmatpush1.bf16.msra.mxu0 %v1694
        %1713 = vmatprep.subr.bf16.mxu0 0
        %1714 = vmatpush1.bf16.msra.mxu0 %v1695
        %1715 = vmatprep.subr.bf16.mxu0 0
        %1716 = vmatpush1.bf16.msra.mxu0 %v1696
        %1717 = vmatprep.subr.bf16.mxu0 0
        %1718 = vmatpush1.bf16.msra.mxu0 %v1697
        %1719 = vmatprep.subr.bf16.mxu0 0
        %1720 = vmatpush1.bf16.msra.mxu0 %v1698
        %1721 = vmatprep.subr.bf16.mxu0 0
        %1722 = vmatpush1.bf16.msra.mxu0 %v1699
        %1723 = vmatprep.subr.bf16.mxu0 0
        %1724 = vmatpush1.bf16.msra.mxu0 %v1700
        %1725 = vmatprep.subr.bf16.mxu0 0
        %1726 = vmatpush1.bf16.msra.mxu0 0
        %1727 = vmatprep.subr.bf16.mxu0 0
        %1728 = vmatpush1.bf16.msra.mxu0 0
        %1729 = vmatprep.subr.bf16.mxu0 0
        %1730 = vmatpush1.bf16.msra.mxu0 0
        %1731 = vmatprep.subr.bf16.mxu0 0
        %1732 = vmatpush1.bf16.msra.mxu0 0
        %1733 = vmatprep.subr.bf16.mxu0 0
        %1734 = vmatpush1.bf16.msra.mxu0 0
        %1735 = vmatprep.subr.bf16.mxu0 0
        %1736 = vmatpush1.bf16.msra.mxu0 0
        %1737 = vmatprep.subr.bf16.mxu0 0
        %1738 = vmatpush1.bf16.msra.mxu0 0
        %1739 = vmatprep.subr.bf16.mxu0 0
        %1740 = vmatpush1.bf16.msra.mxu0 0
        %1741 = vmatprep.mubr.bf16.mxu0 0
        %1742 = vmatmul.mubr.bf16.gmra.mrb[0].mxu0 %v1619
        %v1743 = vpop.f32.mrb[0].mxu0
        %v1744 = vadd.f32 0.0, %v1743
        %v1745 = vpop.f32.mrb[0].mxu0
        %v1746 = vpop.f32.mrb[0].mxu0
        %v1747 = vadd.f32 0.0, %v1746
        %v1748 = vpop.f32.mrb[0].mxu0
        %1749 = vmatprep.mubr.bf16.mxu0 0
        %1750 = vmatmul.mubr.bf16.gmra.mrb[0].mxu0 %v1628
        %v1751 = vpop.f32.mrb[0].mxu0
        %v1752 = vadd.f32 0.0, %v1751
        %v1753 = vpop.f32.mrb[0].mxu0
        %v1754 = vpop.f32.mrb[0].mxu0
        %v1755 = vadd.f32 0.0, %v1754
        %v1756 = vpop.f32.mrb[0].mxu0
        %1757 = vmatprep.mubr.bf16.mxu0 0
        %1758 = vmatmul.mubr.bf16.gmra.mrb[0].mxu0 %v1637
        %v1759 = vpop.f32.mrb[0].mxu0
        %v1760 = vadd.f32 0.0, %v1759
        %v1761 = vpop.f32.mrb[0].mxu0
        %v1762 = vpop.f32.mrb[0].mxu0
        %v1763 = vadd.f32 0.0, %v1762
        %v1764 = vpop.f32.mrb[0].mxu0
        %1765 = vmatprep.mubr.bf16.mxu0 0
        %1766 = vmatmul.mubr.bf16.gmra.mrb[0].mxu0 %v1646
        %v1767 = vpop.f32.mrb[0].mxu0
        %v1768 = vadd.f32 0.0, %v1767
        %v1769 = vpop.f32.mrb[0].mxu0
        %v1770 = vpop.f32.mrb[0].mxu0
        %v1771 = vadd.f32 0.0, %v1770
        %v1772 = vpop.f32.mrb[0].mxu0
        %1773 = vmatprep.mubr.bf16.mxu0 0
        %1774 = vmatmul.mubr.bf16.gmra.mrb[0].mxu0 %v1655
        %v1775 = vpop.f32.mrb[0].mxu0
        %v1776 = vadd.f32 0.0, %v1775
        %v1777 = vpop.f32.mrb[0].mxu0
        %v1778 = vpop.f32.mrb[0].mxu0
        %v1779 = vadd.f32 0.0, %v1778
        %v1780 = vpop.f32.mrb[0].mxu0
        %1781 = vdwg.mxu0
        %v1782 = vadd.f32 %v1571, %v1744
        %v1783 = vadd.f32 %v1572, %v1747
        %v1784 = vadd.f32 %v1573, %v1752
        %v1785 = vadd.f32 %v1574, %v1755
        %v1786 = vadd.f32 %v1575, %v1760
        %v1787 = vadd.f32 %v1576, %v1763
        %v1788 = vadd.f32 %v1577, %v1768
        %v1789 = vadd.f32 %v1578, %v1771
        %v1790 = vadd.f32 %v1579, %v1776
        %v1791 = vadd.f32 %v1580, %v1779
        %v1792 = vld [vmem:[%s219 + $0x8] sm:$0x8]
        %s1793 = scalar_lea.vmem [#allocation5], 512
        %v1794 = vld [vmem:[%s1793] sm:$0xf]
        %v1795 = vld [vmem:[%s1793 + $0x4] sm:$0xf]
        %v1796 = vld [vmem:[%s1793 + $0x8] sm:$0xf]
        %v1797 = vld [vmem:[%s1793 + $0xc] sm:$0xf]
        %v1798 = vld [vmem:[%s1793 + $0x10] sm:$0xf]
        %v1799 = vld [vmem:[%s1793 + $0x14] sm:$0xf]
        %v1800 = vld [vmem:[%s1793 + $0x18] sm:$0xf]
        %v1801 = vld [vmem:[%s1793 + $0x1c] sm:$0xf]
        %v1802 = vld [vmem:[%s1793 + $0x20] sm:$0xf]
        %v1803 = vld [vmem:[%s1793 + $0x24] sm:$0xf]
        %v1804 = vld [vmem:[%s1793 + $0x28] sm:$0xf]
        %v1805 = vld [vmem:[%s1793 + $0x2c] sm:$0xf]
        %v1806 = vld [vmem:[%s1793 + $0x30] sm:$0xf]
        %v1807 = vld [vmem:[%s1793 + $0x34] sm:$0xf]
        %v1808 = vld [vmem:[%s1793 + $0x38] sm:$0xf]
        %v1809 = vld [vmem:[%s1793 + $0x3c] sm:$0xf]
        %v1811 = vunpack.c.l.b16 %v1792
        %v1812 = vpack.c.b16 %v1418, %v1811
        %vm1813 = vcmask 1044480
        %v1814 = vrot.slane %v1812, 3
        %v1815 = vrot.slane %v1429, 3
        %v1816 = vsel %vm1813, %v1814, %v1815
        %v1817 = vrot.slane %v1430, 3
        %v1818 = vsel %vm1813, %v1815, %v1817
        %v1819 = vrot.slane %v1431, 3
        %v1820 = vsel %vm1813, %v1817, %v1819
        %v1821 = vrot.slane %v1432, 3
        %v1822 = vsel %vm1813, %v1819, %v1821
        %v1823 = vrot.slane %v1601, 3
        %v1824 = vsel %vm1813, %v1821, %v1823
        %v1846 = vunpack.c.l.b16 %v1794
        %v1847 = vunpack.c.l.b16 %v1795
        %v1848 = vunpack.c.l.b16 %v1796
        %v1849 = vunpack.c.l.b16 %v1797
        %v1850 = vunpack.c.l.b16 %v1798
        %v1851 = vunpack.c.l.b16 %v1799
        %v1852 = vunpack.c.l.b16 %v1800
        %v1853 = vunpack.c.l.b16 %v1801
        %v1854 = vunpack.c.l.b16 %v1802
        %v1855 = vunpack.c.l.b16 %v1803
        %v1856 = vunpack.c.l.b16 %v1804
        %v1857 = vunpack.c.l.b16 %v1805
        %v1858 = vunpack.c.l.b16 %v1806
        %v1859 = vunpack.c.l.b16 %v1807
        %v1860 = vunpack.c.l.b16 %v1808
        %v1861 = vunpack.c.l.b16 %v1809
        %v1862 = vpack.c.b16 %v1847, %v1846
        %v1863 = vpack.c.b16 %v1849, %v1848
        %v1864 = vpack.c.b16 %v1851, %v1850
        %v1865 = vpack.c.b16 %v1853, %v1852
        %v1866 = vpack.c.b16 %v1855, %v1854
        %v1867 = vpack.c.b16 %v1857, %v1856
        %v1868 = vpack.c.b16 %v1859, %v1858
        %v1869 = vpack.c.b16 %v1861, %v1860
        %1878 = vmatprep.subr.bf16.mxu0 0
        %1879 = vmatpush1.bf16.msra.mxu0 %v1862
        %1880 = vmatprep.subr.bf16.mxu0 0
        %1881 = vmatpush1.bf16.msra.mxu0 %v1863
        %1882 = vmatprep.subr.bf16.mxu0 0
        %1883 = vmatpush1.bf16.msra.mxu0 %v1864
        %1884 = vmatprep.subr.bf16.mxu0 0
        %1885 = vmatpush1.bf16.msra.mxu0 %v1865
        %1886 = vmatprep.subr.bf16.mxu0 0
        %1887 = vmatpush1.bf16.msra.mxu0 %v1866
        %1888 = vmatprep.subr.bf16.mxu0 0
        %1889 = vmatpush1.bf16.msra.mxu0 %v1867
        %1890 = vmatprep.subr.bf16.mxu0 0
        %1891 = vmatpush1.bf16.msra.mxu0 %v1868
        %1892 = vmatprep.subr.bf16.mxu0 0
        %1893 = vmatpush1.bf16.msra.mxu0 %v1869
        %1894 = vmatprep.subr.bf16.mxu0 0
        %1895 = vmatpush1.bf16.msra.mxu0 0
        %1896 = vmatprep.subr.bf16.mxu0 0
        %1897 = vmatpush1.bf16.msra.mxu0 0
        %1898 = vmatprep.subr.bf16.mxu0 0
        %1899 = vmatpush1.bf16.msra.mxu0 0
        %1900 = vmatprep.subr.bf16.mxu0 0
        %1901 = vmatpush1.bf16.msra.mxu0 0
        %1902 = vmatprep.subr.bf16.mxu0 0
        %1903 = vmatpush1.bf16.msra.mxu0 0
        %1904 = vmatprep.subr.bf16.mxu0 0
        %1905 = vmatpush1.bf16.msra.mxu0 0
        %1906 = vmatprep.subr.bf16.mxu0 0
        %1907 = vmatpush1.bf16.msra.mxu0 0
        %1908 = vmatprep.subr.bf16.mxu0 0
        %1909 = vmatpush1.bf16.msra.mxu0 0
        %1910 = vmatprep.mubr.bf16.mxu0 0
        %1911 = vmatmul.mubr.bf16.gmra.mrb[0].mxu0 %v1816
        %v1912 = vpop.f32.mrb[0].mxu0
        %v1913 = vadd.f32 0.0, %v1912
        %v1914 = vpop.f32.mrb[0].mxu0
        %v1915 = vpop.f32.mrb[0].mxu0
        %v1916 = vadd.f32 0.0, %v1915
        %v1917 = vpop.f32.mrb[0].mxu0
        %1918 = vmatprep.mubr.bf16.mxu0 0
        %1919 = vmatmul.mubr.bf16.gmra.mrb[0].mxu0 %v1818
        %v1920 = vpop.f32.mrb[0].mxu0
        %v1921 = vadd.f32 0.0, %v1920
        %v1922 = vpop.f32.mrb[0].mxu0
        %v1923 = vpop.f32.mrb[0].mxu0
        %v1924 = vadd.f32 0.0, %v1923
        %v1925 = vpop.f32.mrb[0].mxu0
        %1926 = vmatprep.mubr.bf16.mxu0 0
        %1927 = vmatmul.mubr.bf16.gmra.mrb[0].mxu0 %v1820
        %v1928 = vpop.f32.mrb[0].mxu0
        %v1929 = vadd.f32 0.0, %v1928
        %v1930 = vpop.f32.mrb[0].mxu0
        %v1931 = vpop.f32.mrb[0].mxu0
        %v1932 = vadd.f32 0.0, %v1931
        %v1933 = vpop.f32.mrb[0].mxu0
        %1934 = vmatprep.mubr.bf16.mxu0 0
        %1935 = vmatmul.mubr.bf16.gmra.mrb[0].mxu0 %v1822
        %v1936 = vpop.f32.mrb[0].mxu0
        %v1937 = vadd.f32 0.0, %v1936
        %v1938 = vpop.f32.mrb[0].mxu0
        %v1939 = vpop.f32.mrb[0].mxu0
        %v1940 = vadd.f32 0.0, %v1939
        %v1941 = vpop.f32.mrb[0].mxu0
        %1942 = vmatprep.mubr.bf16.mxu0 0
        %1943 = vmatmul.mubr.bf16.gmra.mrb[0].mxu0 %v1824
        %v1944 = vpop.f32.mrb[0].mxu0
        %v1945 = vadd.f32 0.0, %v1944
        %v1946 = vpop.f32.mrb[0].mxu0
        %v1947 = vpop.f32.mrb[0].mxu0
        %v1948 = vadd.f32 0.0, %v1947
        %v1949 = vpop.f32.mrb[0].mxu0
        %1950 = vdwg.mxu0
        %v1951 = vadd.f32 %v1782, %v1913
        %v1952 = vadd.f32 %v1783, %v1916
        %v1953 = vadd.f32 %v1784, %v1921
        %v1954 = vadd.f32 %v1785, %v1924
        %v1955 = vadd.f32 %v1786, %v1929
        %v1956 = vadd.f32 %v1787, %v1932
        %v1957 = vadd.f32 %v1788, %v1937
        %v1958 = vadd.f32 %v1789, %v1940
        %v1959 = vadd.f32 %v1790, %v1945
        %v1960 = vadd.f32 %v1791, %v1948
        %v1961 = vld [vmem:[#allocation7] sm:$0x1]
        %v1963 = vlaneseq
        %v1964 = vshrl.u32 %v1963, 7
        %v1965 = vsub.s32 0, %v1964
        %v1966 = vrot.slane %v1961, %v1965
        %v1968 = vmul.f32 %v1951, %v1966
        %v1969 = vmul.f32 %v1952, %v1966
        %v1970 = vmul.f32 %v1953, %v1966
        %v1971 = vmul.f32 %v1954, %v1966
        %v1972 = vmul.f32 %v1955, %v1966
        %v1973 = vmul.f32 %v1956, %v1966
        %v1974 = vmul.f32 %v1957, %v1966
        %v1975 = vmul.f32 %v1958, %v1966
        %v1976 = vmul.f32 %v1959, %v1966
        %v1977 = vmul.f32 %v1960, %v1966
        %v1978 = vld [vmem:[#allocation8] sm:$0x1]
        %v1980 = vlaneseq
        %v1981 = vshrl.u32 %v1980, 7
        %v1982 = vsub.s32 0, %v1981
        %v1983 = vrot.slane %v1978, %v1982
        %v1985 = vadd.f32 %v1968, %v1983
        %v1986 = vadd.f32 %v1969, %v1983
        %v1987 = vadd.f32 %v1970, %v1983
        %v1988 = vadd.f32 %v1971, %v1983
        %v1989 = vadd.f32 %v1972, %v1983
        %v1990 = vadd.f32 %v1973, %v1983
        %v1991 = vadd.f32 %v1974, %v1983
        %v1992 = vadd.f32 %v1975, %v1983
        %v1993 = vadd.f32 %v1976, %v1983
        %v1994 = vadd.f32 %v1977, %v1983
        %v1995 = vmax.f32 %v1985, 0.0
        %v1996 = vmax.f32 %v1986, 0.0
        %v1997 = vmax.f32 %v1987, 0.0
        %v1998 = vmax.f32 %v1988, 0.0
        %v1999 = vmax.f32 %v1989, 0.0
        %v2000 = vmax.f32 %v1990, 0.0
        %v2001 = vmax.f32 %v1991, 0.0
        %v2002 = vmax.f32 %v1992, 0.0
        %v2003 = vmax.f32 %v1993, 0.0
        %v2004 = vmax.f32 %v1994, 0.0
        %v2005 = vpack.c.bf16 %v1996, %v1995
        %v2006 = vpack.c.bf16 %v1998, %v1997
        %v2007 = vpack.c.bf16 %v2000, %v1999
        %v2008 = vpack.c.bf16 %v2002, %v2001
        %v2009 = vpack.c.bf16 %v2004, %v2003
        %v2015 = vunpack.c.l.b16 %v2005
        %v2016 = vunpack.c.h.b16 %v2005
        %v2017 = vunpack.c.l.b16 %v2006
        %v2018 = vunpack.c.h.b16 %v2006
        %v2019 = vunpack.c.l.b16 %v2007
        %v2020 = vunpack.c.h.b16 %v2007
        %v2021 = vunpack.c.l.b16 %v2008
        %v2022 = vunpack.c.h.b16 %v2008
        %v2023 = vunpack.c.l.b16 %v2009
        %v2024 = vunpack.c.h.b16 %v2009
        %v2025 = vpack.c.b16 %v2015, %v2015
        %v2026 = vpack.c.b16 %v2016, %v2016
        %v2027 = vpack.c.b16 %v2017, %v2017
        %v2028 = vpack.c.b16 %v2018, %v2018
        %v2029 = vpack.c.b16 %v2019, %v2019
        %v2030 = vpack.c.b16 %v2020, %v2020
        %v2031 = vpack.c.b16 %v2021, %v2021
        %v2032 = vpack.c.b16 %v2022, %v2022
        %v2033 = vpack.c.b16 %v2023, %v2023
        %v2034 = vpack.c.b16 %v2024, %v2024
        %2045 = vst [vmem:[%s255] sm:$0xf] %v2025
        %2046 = vst [vmem:[%s255 + $0x4] sm:$0xf] %v2026
        %2047 = vst [vmem:[%s255 + $0x8] sm:$0xf] %v2027
        %2048 = vst [vmem:[%s255 + $0xc] sm:$0xf] %v2028
        %2049 = vst [vmem:[%s255 + $0x10] sm:$0xf] %v2029
        %2050 = vst [vmem:[%s255 + $0x14] sm:$0xf] %v2030
        %2051 = vst [vmem:[%s255 + $0x18] sm:$0xf] %v2031
        %2052 = vst [vmem:[%s255 + $0x1c] sm:$0xf] %v2032
        %2053 = vst [vmem:[%s255 + $0x20] sm:$0xf] %v2033
        %2054 = vst [vmem:[%s255 + $0x24] sm:$0xf] %v2034
        %s2055 = sand.u32 %s120, 1
        %s2056 = scalar_lea.sflag [#allocation4], %s2055
        %s2057 = sand.u32 %s120, 1
        %s2058 = smul.addr %s2057, 40
        %s2059 = scalar_lea.vmem [#allocation10], %s2058
        // Predicated region
        $region53: #{patch_embed_4_2_128.5} parent=35 // pred_check
          %p2060 = pneg %p130
        $region54: #{patch_embed_4_2_128.5} parent=35 // pred_check_branch
          %2062 = sbr.rel (%p2060) target = $region56
        $region55: #{patch_embed_4_2_128.5} parent=35 // pred_region
          %s2064 = ssub.s32 640, 640
          %2065 = vsyncadd %s2056, %s2064
          %s2066 = smul.addr %s23, 10
          %s2067 = smul.addr %s2066, 64
          %s2068 = scalar_lea.hbm %s4, %s2067
          %s2069 = sshll.u32 %s2059, 4
          %s2070 = int_to_ptr.vmem [resolvable:$true] %s2069
          %2075 = dma.vmem_to_hbm [thread:$0]  %s2070, 640, %s2068, %s2056, 64, 64, 4
        $region56: #{patch_embed_4_2_128.5} parent=35 // pred_fallthru
          _
      $region36: #{patch_embed_4_2_128.5} parent=5 // pred_fallthru
        _
      %p2076 = scmp.le.s32.totalorder 2, %s18
      // Predicated region
      $region57: #{patch_embed_4_2_128.5} parent=5 // pred_check
        %p2077 = pneg %p2076
      $region58: #{patch_embed_4_2_128.5} parent=5 // pred_check_branch
        %2079 = sbr.rel (%p2077) target = $region60
      $region59: #{patch_embed_4_2_128.5} parent=5 // pred_region
        %s2080 = ssub.s32 %s18, 2
        // Predicated region
        $region61: #{patch_embed_4_2_128.5} parent=59 // pred_check
          %p2081 = pneg %p136
        $region62: #{patch_embed_4_2_128.5} parent=59 // pred_check_branch
          %2083 = sbr.rel (%p2081) target = $region64
        $region63: #{patch_embed_4_2_128.5} parent=59 // pred_region
          %s2084 = sand.u32 %s121, 1
          %s2085 = scalar_lea.sflag [#allocation4], %s2084
          %s2086 = sand.u32 %s121, 1
          %s2087 = smul.addr %s2086, 40
          %s2088 = scalar_lea.vmem [#allocation10], %s2087
          %2089 = dma.done %s2085, 640
        $region64: #{patch_embed_4_2_128.5} parent=59 // pred_fallthru
          _
      $region60: #{patch_embed_4_2_128.5} parent=5 // pred_fallthru
        _
    $region6: #{patch_embed_4_2_128.5} parent=1 // loop_footer
      %s22 = sadd.s32 1, %s18
    $region7: #{patch_embed_4_2_128.5} parent=1 // loop_footer_branch
      %17 = sbr.rel target = $region3
    $region8: #{patch_embed_4_2_128.5} parent=1 // loop_exit
      _
    %2090 = vsyncpa [#allocation3], 1
    %s2091 = scalar_lea.sflag [#allocation3], 1
    %2092 = vsyncpa %s2091, 1
    %2093 = vsyncpa [#allocation6], 1
    %2094 = vsyncpa [#allocation9], 1
    %2095 = vsyncpa [#allocation4], 1
    %s2096 = scalar_lea.sflag [#allocation4], 1
    %2097 = vsyncpa %s2096, 1

// kernel: patch_embed_4_2_128.7
$region0: #{patch_embed_4_2_128.7}
  #allocation0 [shape = 'u32[]', space=smem, size = 0x4, offset = 0x4, fixed_abs, tag = 'smem constant byte address 0x4 - core index']
  #allocation1 [shape = 'u32[144,128]{1,0:T(1,128)}', space=vmem, size = 0x12000, scoped, tag = 'internal scratch']
  %s0 = inlined_call_operand.hbm [shape: bf16[8,2048], index: 0, kind: input, shape index: {}]
  %s1 = inlined_call_operand.hbm [shape: bf16[2048,128], index: 1, kind: input, shape index: {}]
  %s2 = inlined_call_operand.hbm [shape: f32[1,128], index: 2, kind: input, shape index: {}]
  %s3 = inlined_call_operand.hbm [shape: f32[1,128], index: 3, kind: input, shape index: {}]
  %s4 = inlined_call_operand.hbm [shape: f32[8,128], index: 4, kind: output, shape index: {}]
  %s5 = sld [smem:[#allocation0]]
  $region42: #{patch_embed_4_2_128.7} parent=0
    _
  %s7 = ssub.s32 1, %s5
  %s8 = scalar_select 0, %s7, %s5
  $region1: #{patch_embed_4_2_128.7} parent=0
    #allocation2 [shape = 'u8[32768]{0}', space=vmem, size = 0x8000, scoped, tag = 'input window, operand 0, single buffered']
    #allocation3 [shape = 's32[1]{0}', space=sflag, size = 0x4, scoped, tag = 'scoped memory for patch_embed_4_2_128.7']
    #allocation4 [shape = 's32[1]{0}', space=sflag, size = 0x4, scoped, tag = 'scoped memory for patch_embed_4_2_128.7']
    #allocation5 [shape = 'u8[524288]{0}', space=vmem, size = 0x80000, scoped, tag = 'input window, operand 1, single buffered']
    #allocation6 [shape = 's32[1]{0}', space=sflag, size = 0x4, scoped, tag = 'scoped memory for patch_embed_4_2_128.7']
    #allocation7 [shape = 'u8[512]{0}', space=vmem, size = 0x400, scoped, tag = 'input window, operand 2, single buffered']
    #allocation8 [shape = 'u8[512]{0}', space=vmem, size = 0x400, scoped, tag = 'input window, operand 3, single buffered']
    #allocation9 [shape = 's32[1]{0}', space=sflag, size = 0x4, scoped, tag = 'scoped memory for patch_embed_4_2_128.7']
    #allocation10 [shape = 'u8[4096]{0}', space=vmem, size = 0x1000, scoped, tag = 'output window, operand 0, single buffered']
    %9 = vsyncpa [#allocation3], 0
    %10 = vsyncpa [#allocation6], 0
    %11 = vsyncpa [#allocation9], 0
    %12 = vsyncpa [#allocation4], 0
    // Predicated region
    $region2: #{patch_embed_4_2_128.7} parent=1 // pred_check
      _
    $region3: #{patch_embed_4_2_128.7} parent=1 // pred_check_branch
      %14 = sbr.rel (0) target = $region5
    $region4: #{patch_embed_4_2_128.7} parent=1 // pred_region
      %s16 = ssub.s32 1024, 1024
      %17 = vsyncadd [#allocation3], %s16
      %s19 = sshll.u32 [#allocation2], 4
      %s20 = int_to_ptr.vmem [resolvable:$true] %s19
      %22 = dma.hbm_to_vmem [thread:$0]  %s0, 1024, %s20, [#allocation3]
    $region5: #{patch_embed_4_2_128.7} parent=1 // pred_fallthru
      _
    // Predicated region
    $region6: #{patch_embed_4_2_128.7} parent=1 // pred_check
      _
    $region7: #{patch_embed_4_2_128.7} parent=1 // pred_check_branch
      %24 = sbr.rel (0) target = $region9
    $region8: #{patch_embed_4_2_128.7} parent=1 // pred_region
      %s26 = ssub.s32 16384, 16384
      %27 = vsyncadd [#allocation6], %s26
      %s28 = sshll.u32 [#allocation5], 4
      %s29 = int_to_ptr.vmem [resolvable:$true] %s28
      %34 = dma.hbm_to_vmem [thread:$0]  %s1, 16384, %s29, [#allocation6], 64, 64, 4
    $region9: #{patch_embed_4_2_128.7} parent=1 // pred_fallthru
      _
    // Predicated region
    $region10: #{patch_embed_4_2_128.7} parent=1 // pred_check
      _
    $region11: #{patch_embed_4_2_128.7} parent=1 // pred_check_branch
      %36 = sbr.rel (0) target = $region13
    $region12: #{patch_embed_4_2_128.7} parent=1 // pred_region
      %s38 = ssub.s32 16, 16
      %39 = vsyncadd [#allocation6], %s38
      %s41 = sshll.u32 [#allocation7], 4
      %s42 = int_to_ptr.vmem [resolvable:$true] %s41
      %44 = dma.hbm_to_vmem [thread:$0]  %s2, 16, %s42, [#allocation6]
    $region13: #{patch_embed_4_2_128.7} parent=1 // pred_fallthru
      _
    // Predicated region
    $region14: #{patch_embed_4_2_128.7} parent=1 // pred_check
      _
    $region15: #{patch_embed_4_2_128.7} parent=1 // pred_check_branch
      %46 = sbr.rel (0) target = $region17
    $region16: #{patch_embed_4_2_128.7} parent=1 // pred_region
      %s48 = ssub.s32 16, 16
      %49 = vsyncadd [#allocation9], %s48
      %s51 = sshll.u32 [#allocation8], 4
      %s52 = int_to_ptr.vmem [resolvable:$true] %s51
      %54 = dma.hbm_to_vmem [thread:$0]  %s3, 16, %s52, [#allocation9]
    $region17: #{patch_embed_4_2_128.7} parent=1 // pred_fallthru
      _
    // Predicated region
    $region18: #{patch_embed_4_2_128.7} parent=1 // pred_check
      _
    $region19: #{patch_embed_4_2_128.7} parent=1 // pred_check_branch
      %56 = sbr.rel (0) target = $region21
    $region20: #{patch_embed_4_2_128.7} parent=1 // pred_region
      %57 = dma.done [#allocation3], 1024
    $region21: #{patch_embed_4_2_128.7} parent=1 // pred_fallthru
      _
    // Predicated region
    $region22: #{patch_embed_4_2_128.7} parent=1 // pred_check
      _
    $region23: #{patch_embed_4_2_128.7} parent=1 // pred_check_branch
      %59 = sbr.rel (0) target = $region25
    $region24: #{patch_embed_4_2_128.7} parent=1 // pred_region
      %60 = dma.done [#allocation6], 16384
    $region25: #{patch_embed_4_2_128.7} parent=1 // pred_fallthru
      _
    // Predicated region
    $region26: #{patch_embed_4_2_128.7} parent=1 // pred_check
      _
    $region27: #{patch_embed_4_2_128.7} parent=1 // pred_check_branch
      %62 = sbr.rel (0) target = $region29
    $region28: #{patch_embed_4_2_128.7} parent=1 // pred_region
      %63 = dma.done [#allocation6], 16
    $region29: #{patch_embed_4_2_128.7} parent=1 // pred_fallthru
      _
    // Predicated region
    $region30: #{patch_embed_4_2_128.7} parent=1 // pred_check
      _
    $region31: #{patch_embed_4_2_128.7} parent=1 // pred_check_branch
      %65 = sbr.rel (0) target = $region33
    $region32: #{patch_embed_4_2_128.7} parent=1 // pred_region
      %66 = dma.done [#allocation9], 16
    $region33: #{patch_embed_4_2_128.7} parent=1 // pred_fallthru
      _
    %v68 = vld [vmem:[#allocation2] sm:$0xff]
    %v69 = vld [vmem:[#allocation2 + $0x8] sm:$0xff]
    %v70 = vld [vmem:[#allocation2 + $0x10] sm:$0xff]
    %v71 = vld [vmem:[#allocation2 + $0x18] sm:$0xff]
    %v72 = vld [vmem:[#allocation2 + $0x20] sm:$0xff]
    %v73 = vld [vmem:[#allocation2 + $0x28] sm:$0xff]
    %v74 = vld [vmem:[#allocation2 + $0x30] sm:$0xff]
    %v75 = vld [vmem:[#allocation2 + $0x38] sm:$0xff]
    %v76 = vld [vmem:[#allocation5] sm:$0xf]
    %v77 = vld [vmem:[#allocation5 + $0x4] sm:$0xf]
    %v78 = vld [vmem:[#allocation5 + $0x8] sm:$0xf]
    %v79 = vld [vmem:[#allocation5 + $0xc] sm:$0xf]
    %v80 = vld [vmem:[#allocation5 + $0x10] sm:$0xf]
    %v81 = vld [vmem:[#allocation5 + $0x14] sm:$0xf]
    %v82 = vld [vmem:[#allocation5 + $0x18] sm:$0xf]
    %v83 = vld [vmem:[#allocation5 + $0x1c] sm:$0xf]
    %v84 = vld [vmem:[#allocation5 + $0x20] sm:$0xf]
    %v85 = vld [vmem:[#allocation5 + $0x24] sm:$0xf]
    %v86 = vld [vmem:[#allocation5 + $0x28] sm:$0xf]
    %v87 = vld [vmem:[#allocation5 + $0x2c] sm:$0xf]
    %v88 = vld [vmem:[#allocation5 + $0x30] sm:$0xf]
    %v89 = vld [vmem:[#allocation5 + $0x34] sm:$0xf]
    %v90 = vld [vmem:[#allocation5 + $0x38] sm:$0xf]
    %v91 = vld [vmem:[#allocation5 + $0x3c] sm:$0xf]
    %v92 = vld [vmem:[#allocation5 + $0x40] sm:$0xf]
    %v93 = vld [vmem:[#allocation5 + $0x44] sm:$0xf]
    %v94 = vld [vmem:[#allocation5 + $0x48] sm:$0xf]
    %v95 = vld [vmem:[#allocation5 + $0x4c] sm:$0xf]
    %v96 = vld [vmem:[#allocation5 + $0x50] sm:$0xf]
    %v97 = vld [vmem:[#allocation5 + $0x54] sm:$0xf]
    %v98 = vld [vmem:[#allocation5 + $0x58] sm:$0xf]
    %v99 = vld [vmem:[#allocation5 + $0x5c] sm:$0xf]
    %v100 = vld [vmem:[#allocation5 + $0x60] sm:$0xf]
    %v101 = vld [vmem:[#allocation5 + $0x64] sm:$0xf]
    %v102 = vld [vmem:[#allocation5 + $0x68] sm:$0xf]
    %v103 = vld [vmem:[#allocation5 + $0x6c] sm:$0xf]
    %v104 = vld [vmem:[#allocation5 + $0x70] sm:$0xf]
    %v105 = vld [vmem:[#allocation5 + $0x74] sm:$0xf]
    %v106 = vld [vmem:[#allocation5 + $0x78] sm:$0xf]
    %v107 = vld [vmem:[#allocation5 + $0x7c] sm:$0xf]
    %v108 = vld [vmem:[#allocation5 + $0x80] sm:$0xf]
    %v109 = vld [vmem:[#allocation5 + $0x84] sm:$0xf]
    %v110 = vld [vmem:[#allocation5 + $0x88] sm:$0xf]
    %v111 = vld [vmem:[#allocation5 + $0x8c] sm:$0xf]
    %v112 = vld [vmem:[#allocation5 + $0x90] sm:$0xf]
    %v113 = vld [vmem:[#allocation5 + $0x94] sm:$0xf]
    %v114 = vld [vmem:[#allocation5 + $0x98] sm:$0xf]
    %v115 = vld [vmem:[#allocation5 + $0x9c] sm:$0xf]
    %v116 = vld [vmem:[#allocation5 + $0xa0] sm:$0xf]
    %v117 = vld [vmem:[#allocation5 + $0xa4] sm:$0xf]
    %v118 = vld [vmem:[#allocation5 + $0xa8] sm:$0xf]
    %v119 = vld [vmem:[#allocation5 + $0xac] sm:$0xf]
    %v120 = vld [vmem:[#allocation5 + $0xb0] sm:$0xf]
    %v121 = vld [vmem:[#allocation5 + $0xb4] sm:$0xf]
    %v122 = vld [vmem:[#allocation5 + $0xb8] sm:$0xf]
    %v123 = vld [vmem:[#allocation5 + $0xbc] sm:$0xf]
    %v124 = vld [vmem:[#allocation5 + $0xc0] sm:$0xf]
    %v125 = vld [vmem:[#allocation5 + $0xc4] sm:$0xf]
    %v126 = vld [vmem:[#allocation5 + $0xc8] sm:$0xf]
    %v127 = vld [vmem:[#allocation5 + $0xcc] sm:$0xf]
    %v128 = vld [vmem:[#allocation5 + $0xd0] sm:$0xf]
    %v129 = vld [vmem:[#allocation5 + $0xd4] sm:$0xf]
    %v130 = vld [vmem:[#allocation5 + $0xd8] sm:$0xf]
    %v131 = vld [vmem:[#allocation5 + $0xdc] sm:$0xf]
    %v132 = vld [vmem:[#allocation5 + $0xe0] sm:$0xf]
    %v133 = vld [vmem:[#allocation5 + $0xe4] sm:$0xf]
    %v134 = vld [vmem:[#allocation5 + $0xe8] sm:$0xf]
    %v135 = vld [vmem:[#allocation5 + $0xec] sm:$0xf]
    %v136 = vld [vmem:[#allocation5 + $0xf0] sm:$0xf]
    %v137 = vld [vmem:[#allocation5 + $0xf4] sm:$0xf]
    %v138 = vld [vmem:[#allocation5 + $0xf8] sm:$0xf]
    %v139 = vld [vmem:[#allocation5 + $0xfc] sm:$0xf]
    %v140 = vld [vmem:[#allocation5 + $0x100] sm:$0xf]
    %v141 = vld [vmem:[#allocation5 + $0x104] sm:$0xf]
    %v142 = vld [vmem:[#allocation5 + $0x108] sm:$0xf]
    %v143 = vld [vmem:[#allocation5 + $0x10c] sm:$0xf]
    %v144 = vld [vmem:[#allocation5 + $0x110] sm:$0xf]
    %v145 = vld [vmem:[#allocation5 + $0x114] sm:$0xf]
    %v146 = vld [vmem:[#allocation5 + $0x118] sm:$0xf]
    %v147 = vld [vmem:[#allocation5 + $0x11c] sm:$0xf]
    %v148 = vld [vmem:[#allocation5 + $0x120] sm:$0xf]
    %v149 = vld [vmem:[#allocation5 + $0x124] sm:$0xf]
    %v150 = vld [vmem:[#allocation5 + $0x128] sm:$0xf]
    %v151 = vld [vmem:[#allocation5 + $0x12c] sm:$0xf]
    %v152 = vld [vmem:[#allocation5 + $0x130] sm:$0xf]
    %v153 = vld [vmem:[#allocation5 + $0x134] sm:$0xf]
    %v154 = vld [vmem:[#allocation5 + $0x138] sm:$0xf]
    %v155 = vld [vmem:[#allocation5 + $0x13c] sm:$0xf]
    %v156 = vld [vmem:[#allocation5 + $0x140] sm:$0xf]
    %v157 = vld [vmem:[#allocation5 + $0x144] sm:$0xf]
    %v158 = vld [vmem:[#allocation5 + $0x148] sm:$0xf]
    %v159 = vld [vmem:[#allocation5 + $0x14c] sm:$0xf]
    %v160 = vld [vmem:[#allocation5 + $0x150] sm:$0xf]
    %v161 = vld [vmem:[#allocation5 + $0x154] sm:$0xf]
    %v162 = vld [vmem:[#allocation5 + $0x158] sm:$0xf]
    %v163 = vld [vmem:[#allocation5 + $0x15c] sm:$0xf]
    %v164 = vld [vmem:[#allocation5 + $0x160] sm:$0xf]
    %v165 = vld [vmem:[#allocation5 + $0x164] sm:$0xf]
    %v166 = vld [vmem:[#allocation5 + $0x168] sm:$0xf]
    %v167 = vld [vmem:[#allocation5 + $0x16c] sm:$0xf]
    %v168 = vld [vmem:[#allocation5 + $0x170] sm:$0xf]
    %v169 = vld [vmem:[#allocation5 + $0x174] sm:$0xf]
    %v170 = vld [vmem:[#allocation5 + $0x178] sm:$0xf]
    %v171 = vld [vmem:[#allocation5 + $0x17c] sm:$0xf]
    %v172 = vld [vmem:[#allocation5 + $0x180] sm:$0xf]
    %v173 = vld [vmem:[#allocation5 + $0x184] sm:$0xf]
    %v174 = vld [vmem:[#allocation5 + $0x188] sm:$0xf]
    %v175 = vld [vmem:[#allocation5 + $0x18c] sm:$0xf]
    %v176 = vld [vmem:[#allocation5 + $0x190] sm:$0xf]
    %v177 = vld [vmem:[#allocation5 + $0x194] sm:$0xf]
    %v178 = vld [vmem:[#allocation5 + $0x198] sm:$0xf]
    %v179 = vld [vmem:[#allocation5 + $0x19c] sm:$0xf]
    %v180 = vld [vmem:[#allocation5 + $0x1a0] sm:$0xf]
    %v181 = vld [vmem:[#allocation5 + $0x1a4] sm:$0xf]
    %v182 = vld [vmem:[#allocation5 + $0x1a8] sm:$0xf]
    %v183 = vld [vmem:[#allocation5 + $0x1ac] sm:$0xf]
    %v184 = vld [vmem:[#allocation5 + $0x1b0] sm:$0xf]
    %v185 = vld [vmem:[#allocation5 + $0x1b4] sm:$0xf]
    %v186 = vld [vmem:[#allocation5 + $0x1b8] sm:$0xf]
    %v187 = vld [vmem:[#allocation5 + $0x1bc] sm:$0xf]
    %v188 = vld [vmem:[#allocation5 + $0x1c0] sm:$0xf]
    %v189 = vld [vmem:[#allocation5 + $0x1c4] sm:$0xf]
    %v190 = vld [vmem:[#allocation5 + $0x1c8] sm:$0xf]
    %v191 = vld [vmem:[#allocation5 + $0x1cc] sm:$0xf]
    %v192 = vld [vmem:[#allocation5 + $0x1d0] sm:$0xf]
    %v193 = vld [vmem:[#allocation5 + $0x1d4] sm:$0xf]
    %v194 = vld [vmem:[#allocation5 + $0x1d8] sm:$0xf]
    %v195 = vld [vmem:[#allocation5 + $0x1dc] sm:$0xf]
    %v196 = vld [vmem:[#allocation5 + $0x1e0] sm:$0xf]
    %v197 = vld [vmem:[#allocation5 + $0x1e4] sm:$0xf]
    %v198 = vld [vmem:[#allocation5 + $0x1e8] sm:$0xf]
    %v199 = vld [vmem:[#allocation5 + $0x1ec] sm:$0xf]
    %v200 = vld [vmem:[#allocation5 + $0x1f0] sm:$0xf]
    %v201 = vld [vmem:[#allocation5 + $0x1f4] sm:$0xf]
    %v202 = vld [vmem:[#allocation5 + $0x1f8] sm:$0xf]
    %v203 = vld [vmem:[#allocation5 + $0x1fc] sm:$0xf]
    %v204 = vld [vmem:[#allocation5 + $0x200] sm:$0xf]
    %v205 = vld [vmem:[#allocation5 + $0x204] sm:$0xf]
    %v206 = vld [vmem:[#allocation5 + $0x208] sm:$0xf]
    %v207 = vld [vmem:[#allocation5 + $0x20c] sm:$0xf]
    %v208 = vld [vmem:[#allocation5 + $0x210] sm:$0xf]
    %v209 = vld [vmem:[#allocation5 + $0x214] sm:$0xf]
    %v210 = vld [vmem:[#allocation5 + $0x218] sm:$0xf]
    %v211 = vld [vmem:[#allocation5 + $0x21c] sm:$0xf]
    %v212 = vld [vmem:[#allocation5 + $0x220] sm:$0xf]
    %v213 = vld [vmem:[#allocation5 + $0x224] sm:$0xf]
    %v214 = vld [vmem:[#allocation5 + $0x228] sm:$0xf]
    %v215 = vld [vmem:[#allocation5 + $0x22c] sm:$0xf]
    %v216 = vld [vmem:[#allocation5 + $0x230] sm:$0xf]
    %v217 = vld [vmem:[#allocation5 + $0x234] sm:$0xf]
    %v218 = vld [vmem:[#allocation5 + $0x238] sm:$0xf]
    %v219 = vld [vmem:[#allocation5 + $0x23c] sm:$0xf]
    %v220 = vld [vmem:[#allocation5 + $0x240] sm:$0xf]
    %v221 = vld [vmem:[#allocation5 + $0x244] sm:$0xf]
    %v222 = vld [vmem:[#allocation5 + $0x248] sm:$0xf]
    %v223 = vld [vmem:[#allocation5 + $0x24c] sm:$0xf]
    %v224 = vld [vmem:[#allocation5 + $0x250] sm:$0xf]
    %v225 = vld [vmem:[#allocation5 + $0x254] sm:$0xf]
    %v226 = vld [vmem:[#allocation5 + $0x258] sm:$0xf]
    %v227 = vld [vmem:[#allocation5 + $0x25c] sm:$0xf]
    %v228 = vld [vmem:[#allocation5 + $0x260] sm:$0xf]
    %v229 = vld [vmem:[#allocation5 + $0x264] sm:$0xf]
    %v230 = vld [vmem:[#allocation5 + $0x268] sm:$0xf]
    %v231 = vld [vmem:[#allocation5 + $0x26c] sm:$0xf]
    %v232 = vld [vmem:[#allocation5 + $0x270] sm:$0xf]
    %v233 = vld [vmem:[#allocation5 + $0x274] sm:$0xf]
    %v234 = vld [vmem:[#allocation5 + $0x278] sm:$0xf]
    %v235 = vld [vmem:[#allocation5 + $0x27c] sm:$0xf]
    %v236 = vld [vmem:[#allocation5 + $0x280] sm:$0xf]
    %v237 = vld [vmem:[#allocation5 + $0x284] sm:$0xf]
    %v238 = vld [vmem:[#allocation5 + $0x288] sm:$0xf]
    %v239 = vld [vmem:[#allocation5 + $0x28c] sm:$0xf]
    %v240 = vld [vmem:[#allocation5 + $0x290] sm:$0xf]
    %v241 = vld [vmem:[#allocation5 + $0x294] sm:$0xf]
    %v242 = vld [vmem:[#allocation5 + $0x298] sm:$0xf]
    %v243 = vld [vmem:[#allocation5 + $0x29c] sm:$0xf]
    %v244 = vld [vmem:[#allocation5 + $0x2a0] sm:$0xf]
    %v245 = vld [vmem:[#allocation5 + $0x2a4] sm:$0xf]
    %v246 = vld [vmem:[#allocation5 + $0x2a8] sm:$0xf]
    %v247 = vld [vmem:[#allocation5 + $0x2ac] sm:$0xf]
    %v248 = vld [vmem:[#allocation5 + $0x2b0] sm:$0xf]
    %v249 = vld [vmem:[#allocation5 + $0x2b4] sm:$0xf]
    %v250 = vld [vmem:[#allocation5 + $0x2b8] sm:$0xf]
    %v251 = vld [vmem:[#allocation5 + $0x2bc] sm:$0xf]
    %v252 = vld [vmem:[#allocation5 + $0x2c0] sm:$0xf]
    %v253 = vld [vmem:[#allocation5 + $0x2c4] sm:$0xf]
    %v254 = vld [vmem:[#allocation5 + $0x2c8] sm:$0xf]
    %v255 = vld [vmem:[#allocation5 + $0x2cc] sm:$0xf]
    %v256 = vld [vmem:[#allocation5 + $0x2d0] sm:$0xf]
    %v257 = vld [vmem:[#allocation5 + $0x2d4] sm:$0xf]
    %v258 = vld [vmem:[#allocation5 + $0x2d8] sm:$0xf]
    %v259 = vld [vmem:[#allocation5 + $0x2dc] sm:$0xf]
    %v260 = vld [vmem:[#allocation5 + $0x2e0] sm:$0xf]
    %v261 = vld [vmem:[#allocation5 + $0x2e4] sm:$0xf]
    %v262 = vld [vmem:[#allocation5 + $0x2e8] sm:$0xf]
    %v263 = vld [vmem:[#allocation5 + $0x2ec] sm:$0xf]
    %v264 = vld [vmem:[#allocation5 + $0x2f0] sm:$0xf]
    %v265 = vld [vmem:[#allocation5 + $0x2f4] sm:$0xf]
    %v266 = vld [vmem:[#allocation5 + $0x2f8] sm:$0xf]
    %v267 = vld [vmem:[#allocation5 + $0x2fc] sm:$0xf]
    %v268 = vld [vmem:[#allocation5 + $0x300] sm:$0xf]
    %v269 = vld [vmem:[#allocation5 + $0x304] sm:$0xf]
    %v270 = vld [vmem:[#allocation5 + $0x308] sm:$0xf]
    %v271 = vld [vmem:[#allocation5 + $0x30c] sm:$0xf]
    %v272 = vld [vmem:[#allocation5 + $0x310] sm:$0xf]
    %v273 = vld [vmem:[#allocation5 + $0x314] sm:$0xf]
    %v274 = vld [vmem:[#allocation5 + $0x318] sm:$0xf]
    %v275 = vld [vmem:[#allocation5 + $0x31c] sm:$0xf]
    %v276 = vld [vmem:[#allocation5 + $0x320] sm:$0xf]
    %v277 = vld [vmem:[#allocation5 + $0x324] sm:$0xf]
    %v278 = vld [vmem:[#allocation5 + $0x328] sm:$0xf]
    %v279 = vld [vmem:[#allocation5 + $0x32c] sm:$0xf]
    %v280 = vld [vmem:[#allocation5 + $0x330] sm:$0xf]
    %v281 = vld [vmem:[#allocation5 + $0x334] sm:$0xf]
    %v282 = vld [vmem:[#allocation5 + $0x338] sm:$0xf]
    %v283 = vld [vmem:[#allocation5 + $0x33c] sm:$0xf]
    %v284 = vld [vmem:[#allocation5 + $0x340] sm:$0xf]
    %v285 = vld [vmem:[#allocation5 + $0x344] sm:$0xf]
    %v286 = vld [vmem:[#allocation5 + $0x348] sm:$0xf]
    %v287 = vld [vmem:[#allocation5 + $0x34c] sm:$0xf]
    %v288 = vld [vmem:[#allocation5 + $0x350] sm:$0xf]
    %v289 = vld [vmem:[#allocation5 + $0x354] sm:$0xf]
    %v290 = vld [vmem:[#allocation5 + $0x358] sm:$0xf]
    %v291 = vld [vmem:[#allocation5 + $0x35c] sm:$0xf]
    %v292 = vld [vmem:[#allocation5 + $0x360] sm:$0xf]
    %v293 = vld [vmem:[#allocation5 + $0x364] sm:$0xf]
    %v294 = vld [vmem:[#allocation5 + $0x368] sm:$0xf]
    %v295 = vld [vmem:[#allocation5 + $0x36c] sm:$0xf]
    %v296 = vld [vmem:[#allocation5 + $0x370] sm:$0xf]
    %v297 = vld [vmem:[#allocation5 + $0x374] sm:$0xf]
    %v298 = vld [vmem:[#allocation5 + $0x378] sm:$0xf]
    %v299 = vld [vmem:[#allocation5 + $0x37c] sm:$0xf]
    %v300 = vld [vmem:[#allocation5 + $0x380] sm:$0xf]
    %v301 = vld [vmem:[#allocation5 + $0x384] sm:$0xf]
    %v302 = vld [vmem:[#allocation5 + $0x388] sm:$0xf]
    %v303 = vld [vmem:[#allocation5 + $0x38c] sm:$0xf]
    %v304 = vld [vmem:[#allocation5 + $0x390] sm:$0xf]
    %v305 = vld [vmem:[#allocation5 + $0x394] sm:$0xf]
    %v306 = vld [vmem:[#allocation5 + $0x398] sm:$0xf]
    %v307 = vld [vmem:[#allocation5 + $0x39c] sm:$0xf]
    %v308 = vld [vmem:[#allocation5 + $0x3a0] sm:$0xf]
    %v309 = vld [vmem:[#allocation5 + $0x3a4] sm:$0xf]
    %v310 = vld [vmem:[#allocation5 + $0x3a8] sm:$0xf]
    %v311 = vld [vmem:[#allocation5 + $0x3ac] sm:$0xf]
    %v312 = vld [vmem:[#allocation5 + $0x3b0] sm:$0xf]
    %v313 = vld [vmem:[#allocation5 + $0x3b4] sm:$0xf]
    %v314 = vld [vmem:[#allocation5 + $0x3b8] sm:$0xf]
    %v315 = vld [vmem:[#allocation5 + $0x3bc] sm:$0xf]
    %v316 = vld [vmem:[#allocation5 + $0x3c0] sm:$0xf]
    %v317 = vld [vmem:[#allocation5 + $0x3c4] sm:$0xf]
    %v318 = vld [vmem:[#allocation5 + $0x3c8] sm:$0xf]
    %v319 = vld [vmem:[#allocation5 + $0x3cc] sm:$0xf]
    %v320 = vld [vmem:[#allocation5 + $0x3d0] sm:$0xf]
    %v321 = vld [vmem:[#allocation5 + $0x3d4] sm:$0xf]
    %v322 = vld [vmem:[#allocation5 + $0x3d8] sm:$0xf]
    %v323 = vld [vmem:[#allocation5 + $0x3dc] sm:$0xf]
    %v324 = vld [vmem:[#allocation5 + $0x3e0] sm:$0xf]
    %v325 = vld [vmem:[#allocation5 + $0x3e4] sm:$0xf]
    %v326 = vld [vmem:[#allocation5 + $0x3e8] sm:$0xf]
    %v327 = vld [vmem:[#allocation5 + $0x3ec] sm:$0xf]
    %v328 = vld [vmem:[#allocation5 + $0x3f0] sm:$0xf]
    %v329 = vld [vmem:[#allocation5 + $0x3f4] sm:$0xf]
    %v330 = vld [vmem:[#allocation5 + $0x3f8] sm:$0xf]
    %v331 = vld [vmem:[#allocation5 + $0x3fc] sm:$0xf]
    %v340 = vunpack.c.l.b16 %v68
    %v341 = vunpack.c.h.b16 %v68
    %v342 = vunpack.c.l.b16 %v69
    %v343 = vunpack.c.h.b16 %v69
    %v344 = vunpack.c.l.b16 %v70
    %v345 = vunpack.c.h.b16 %v70
    %v346 = vunpack.c.l.b16 %v71
    %v347 = vunpack.c.h.b16 %v71
    %v348 = vunpack.c.l.b16 %v72
    %v349 = vunpack.c.h.b16 %v72
    %v350 = vunpack.c.l.b16 %v73
    %v351 = vunpack.c.h.b16 %v73
    %v352 = vunpack.c.l.b16 %v74
    %v353 = vunpack.c.h.b16 %v74
    %v354 = vunpack.c.l.b16 %v75
    %v355 = vunpack.c.h.b16 %v75
    %v356 = vpack.c.b16 %v340, %v340
    %v357 = vpack.c.b16 %v341, %v341
    %v358 = vpack.c.b16 %v342, %v342
    %v359 = vpack.c.b16 %v343, %v343
    %v360 = vpack.c.b16 %v344, %v344
    %v361 = vpack.c.b16 %v345, %v345
    %v362 = vpack.c.b16 %v346, %v346
    %v363 = vpack.c.b16 %v347, %v347
    %v364 = vpack.c.b16 %v348, %v348
    %v365 = vpack.c.b16 %v349, %v349
    %v366 = vpack.c.b16 %v350, %v350
    %v367 = vpack.c.b16 %v351, %v351
    %v368 = vpack.c.b16 %v352, %v352
    %v369 = vpack.c.b16 %v353, %v353
    %v370 = vpack.c.b16 %v354, %v354
    %v371 = vpack.c.b16 %v355, %v355
    %v644 = vunpack.c.l.b16 %v76
    %v645 = vunpack.c.l.b16 %v77
    %v646 = vunpack.c.l.b16 %v78
    %v647 = vunpack.c.l.b16 %v79
    %v648 = vunpack.c.l.b16 %v80
    %v649 = vunpack.c.l.b16 %v81
    %v650 = vunpack.c.l.b16 %v82
    %v651 = vunpack.c.l.b16 %v83
    %v652 = vunpack.c.l.b16 %v84
    %v653 = vunpack.c.l.b16 %v85
    %v654 = vunpack.c.l.b16 %v86
    %v655 = vunpack.c.l.b16 %v87
    %v656 = vunpack.c.l.b16 %v88
    %v657 = vunpack.c.l.b16 %v89
    %v658 = vunpack.c.l.b16 %v90
    %v659 = vunpack.c.l.b16 %v91
    %v660 = vunpack.c.l.b16 %v92
    %v661 = vunpack.c.l.b16 %v93
    %v662 = vunpack.c.l.b16 %v94
    %v663 = vunpack.c.l.b16 %v95
    %v664 = vunpack.c.l.b16 %v96
    %v665 = vunpack.c.l.b16 %v97
    %v666 = vunpack.c.l.b16 %v98
    %v667 = vunpack.c.l.b16 %v99
    %v668 = vunpack.c.l.b16 %v100
    %v669 = vunpack.c.l.b16 %v101
    %v670 = vunpack.c.l.b16 %v102
    %v671 = vunpack.c.l.b16 %v103
    %v672 = vunpack.c.l.b16 %v104
    %v673 = vunpack.c.l.b16 %v105
    %v674 = vunpack.c.l.b16 %v106
    %v675 = vunpack.c.l.b16 %v107
    %v676 = vunpack.c.l.b16 %v108
    %v677 = vunpack.c.l.b16 %v109
    %v678 = vunpack.c.l.b16 %v110
    %v679 = vunpack.c.l.b16 %v111
    %v680 = vunpack.c.l.b16 %v112
    %v681 = vunpack.c.l.b16 %v113
    %v682 = vunpack.c.l.b16 %v114
    %v683 = vunpack.c.l.b16 %v115
    %v684 = vunpack.c.l.b16 %v116
    %v685 = vunpack.c.l.b16 %v117
    %v686 = vunpack.c.l.b16 %v118
    %v687 = vunpack.c.l.b16 %v119
    %v688 = vunpack.c.l.b16 %v120
    %v689 = vunpack.c.l.b16 %v121
    %v690 = vunpack.c.l.b16 %v122
    %v691 = vunpack.c.l.b16 %v123
    %v692 = vunpack.c.l.b16 %v124
    %v693 = vunpack.c.l.b16 %v125
    %v694 = vunpack.c.l.b16 %v126
    %v695 = vunpack.c.l.b16 %v127
    %v696 = vunpack.c.l.b16 %v128
    %v697 = vunpack.c.l.b16 %v129
    %v698 = vunpack.c.l.b16 %v130
    %v699 = vunpack.c.l.b16 %v131
    %v700 = vunpack.c.l.b16 %v132
    %v701 = vunpack.c.l.b16 %v133
    %v702 = vunpack.c.l.b16 %v134
    %v703 = vunpack.c.l.b16 %v135
    %v704 = vunpack.c.l.b16 %v136
    %v705 = vunpack.c.l.b16 %v137
    %v706 = vunpack.c.l.b16 %v138
    %v707 = vunpack.c.l.b16 %v139
    %v708 = vunpack.c.l.b16 %v140
    %v709 = vunpack.c.l.b16 %v141
    %v710 = vunpack.c.l.b16 %v142
    %v711 = vunpack.c.l.b16 %v143
    %v712 = vunpack.c.l.b16 %v144
    %v713 = vunpack.c.l.b16 %v145
    %v714 = vunpack.c.l.b16 %v146
    %v715 = vunpack.c.l.b16 %v147
    %v716 = vunpack.c.l.b16 %v148
    %v717 = vunpack.c.l.b16 %v149
    %v718 = vunpack.c.l.b16 %v150
    %v719 = vunpack.c.l.b16 %v151
    %v720 = vunpack.c.l.b16 %v152
    %v721 = vunpack.c.l.b16 %v153
    %v722 = vunpack.c.l.b16 %v154
    %v723 = vunpack.c.l.b16 %v155
    %v724 = vunpack.c.l.b16 %v156
    %v725 = vunpack.c.l.b16 %v157
    %v726 = vunpack.c.l.b16 %v158
    %v727 = vunpack.c.l.b16 %v159
    %v728 = vunpack.c.l.b16 %v160
    %v729 = vunpack.c.l.b16 %v161
    %v730 = vunpack.c.l.b16 %v162
    %v731 = vunpack.c.l.b16 %v163
    %v732 = vunpack.c.l.b16 %v164
    %v733 = vunpack.c.l.b16 %v165
    %v734 = vunpack.c.l.b16 %v166
    %v735 = vunpack.c.l.b16 %v167
    %v736 = vunpack.c.l.b16 %v168
    %v737 = vunpack.c.l.b16 %v169
    %v738 = vunpack.c.l.b16 %v170
    %v739 = vunpack.c.l.b16 %v171
    %v740 = vunpack.c.l.b16 %v172
    %v741 = vunpack.c.l.b16 %v173
    %v742 = vunpack.c.l.b16 %v174
    %v743 = vunpack.c.l.b16 %v175
    %v744 = vunpack.c.l.b16 %v176
    %v745 = vunpack.c.l.b16 %v177
    %v746 = vunpack.c.l.b16 %v178
    %v747 = vunpack.c.l.b16 %v179
    %v748 = vunpack.c.l.b16 %v180
    %v749 = vunpack.c.l.b16 %v181
    %v750 = vunpack.c.l.b16 %v182
    %v751 = vunpack.c.l.b16 %v183
    %v752 = vunpack.c.l.b16 %v184
    %v753 = vunpack.c.l.b16 %v185
    %v754 = vunpack.c.l.b16 %v186
    %v755 = vunpack.c.l.b16 %v187
    %v756 = vunpack.c.l.b16 %v188
    %v757 = vunpack.c.l.b16 %v189
    %v758 = vunpack.c.l.b16 %v190
    %v759 = vunpack.c.l.b16 %v191
    %v760 = vunpack.c.l.b16 %v192
    %v761 = vunpack.c.l.b16 %v193
    %v762 = vunpack.c.l.b16 %v194
    %v763 = vunpack.c.l.b16 %v195
    %v764 = vunpack.c.l.b16 %v196
    %v765 = vunpack.c.l.b16 %v197
    %v766 = vunpack.c.l.b16 %v198
    %v767 = vunpack.c.l.b16 %v199
    %v768 = vunpack.c.l.b16 %v200
    %v769 = vunpack.c.l.b16 %v201
    %v770 = vunpack.c.l.b16 %v202
    %v771 = vunpack.c.l.b16 %v203
    %v772 = vunpack.c.l.b16 %v204
    %v773 = vunpack.c.l.b16 %v205
    %v774 = vunpack.c.l.b16 %v206
    %v775 = vunpack.c.l.b16 %v207
    %v776 = vunpack.c.l.b16 %v208
    %v777 = vunpack.c.l.b16 %v209
    %v778 = vunpack.c.l.b16 %v210
    %v779 = vunpack.c.l.b16 %v211
    %v780 = vunpack.c.l.b16 %v212
    %v781 = vunpack.c.l.b16 %v213
    %v782 = vunpack.c.l.b16 %v214
    %v783 = vunpack.c.l.b16 %v215
    %v784 = vunpack.c.l.b16 %v216
    %v785 = vunpack.c.l.b16 %v217
    %v786 = vunpack.c.l.b16 %v218
    %v787 = vunpack.c.l.b16 %v219
    %v788 = vunpack.c.l.b16 %v220
    %v789 = vunpack.c.l.b16 %v221
    %v790 = vunpack.c.l.b16 %v222
    %v791 = vunpack.c.l.b16 %v223
    %v792 = vunpack.c.l.b16 %v224
    %v793 = vunpack.c.l.b16 %v225
    %v794 = vunpack.c.l.b16 %v226
    %v795 = vunpack.c.l.b16 %v227
    %v796 = vunpack.c.l.b16 %v228
    %v797 = vunpack.c.l.b16 %v229
    %v798 = vunpack.c.l.b16 %v230
    %v799 = vunpack.c.l.b16 %v231
    %v800 = vunpack.c.l.b16 %v232
    %v801 = vunpack.c.l.b16 %v233
    %v802 = vunpack.c.l.b16 %v234
    %v803 = vunpack.c.l.b16 %v235
    %v804 = vunpack.c.l.b16 %v236
    %v805 = vunpack.c.l.b16 %v237
    %v806 = vunpack.c.l.b16 %v238
    %v807 = vunpack.c.l.b16 %v239
    %v808 = vunpack.c.l.b16 %v240
    %v809 = vunpack.c.l.b16 %v241
    %v810 = vunpack.c.l.b16 %v242
    %v811 = vunpack.c.l.b16 %v243
    %v812 = vunpack.c.l.b16 %v244
    %v813 = vunpack.c.l.b16 %v245
    %v814 = vunpack.c.l.b16 %v246
    %v815 = vunpack.c.l.b16 %v247
    %v816 = vunpack.c.l.b16 %v248
    %v817 = vunpack.c.l.b16 %v249
    %v818 = vunpack.c.l.b16 %v250
    %v819 = vunpack.c.l.b16 %v251
    %v820 = vunpack.c.l.b16 %v252
    %v821 = vunpack.c.l.b16 %v253
    %v822 = vunpack.c.l.b16 %v254
    %v823 = vunpack.c.l.b16 %v255
    %v824 = vunpack.c.l.b16 %v256
    %v825 = vunpack.c.l.b16 %v257
    %v826 = vunpack.c.l.b16 %v258
    %v827 = vunpack.c.l.b16 %v259
    %v828 = vunpack.c.l.b16 %v260
    %v829 = vunpack.c.l.b16 %v261
    %v830 = vunpack.c.l.b16 %v262
    %v831 = vunpack.c.l.b16 %v263
    %v832 = vunpack.c.l.b16 %v264
    %v833 = vunpack.c.l.b16 %v265
    %v834 = vunpack.c.l.b16 %v266
    %v835 = vunpack.c.l.b16 %v267
    %v836 = vunpack.c.l.b16 %v268
    %v837 = vunpack.c.l.b16 %v269
    %v838 = vunpack.c.l.b16 %v270
    %v839 = vunpack.c.l.b16 %v271
    %v840 = vunpack.c.l.b16 %v272
    %v841 = vunpack.c.l.b16 %v273
    %v842 = vunpack.c.l.b16 %v274
    %v843 = vunpack.c.l.b16 %v275
    %v844 = vunpack.c.l.b16 %v276
    %v845 = vunpack.c.l.b16 %v277
    %v846 = vunpack.c.l.b16 %v278
    %v847 = vunpack.c.l.b16 %v279
    %v848 = vunpack.c.l.b16 %v280
    %v849 = vunpack.c.l.b16 %v281
    %v850 = vunpack.c.l.b16 %v282
    %v851 = vunpack.c.l.b16 %v283
    %v852 = vunpack.c.l.b16 %v284
    %v853 = vunpack.c.l.b16 %v285
    %v854 = vunpack.c.l.b16 %v286
    %v855 = vunpack.c.l.b16 %v287
    %v856 = vunpack.c.l.b16 %v288
    %v857 = vunpack.c.l.b16 %v289
    %v858 = vunpack.c.l.b16 %v290
    %v859 = vunpack.c.l.b16 %v291
    %v860 = vunpack.c.l.b16 %v292
    %v861 = vunpack.c.l.b16 %v293
    %v862 = vunpack.c.l.b16 %v294
    %v863 = vunpack.c.l.b16 %v295
    %v864 = vunpack.c.l.b16 %v296
    %v865 = vunpack.c.l.b16 %v297
    %v866 = vunpack.c.l.b16 %v298
    %v867 = vunpack.c.l.b16 %v299
    %v868 = vunpack.c.l.b16 %v300
    %v869 = vunpack.c.l.b16 %v301
    %v870 = vunpack.c.l.b16 %v302
    %v871 = vunpack.c.l.b16 %v303
    %v872 = vunpack.c.l.b16 %v304
    %v873 = vunpack.c.l.b16 %v305
    %v874 = vunpack.c.l.b16 %v306
    %v875 = vunpack.c.l.b16 %v307
    %v876 = vunpack.c.l.b16 %v308
    %v877 = vunpack.c.l.b16 %v309
    %v878 = vunpack.c.l.b16 %v310
    %v879 = vunpack.c.l.b16 %v311
    %v880 = vunpack.c.l.b16 %v312
    %v881 = vunpack.c.l.b16 %v313
    %v882 = vunpack.c.l.b16 %v314
    %v883 = vunpack.c.l.b16 %v315
    %v884 = vunpack.c.l.b16 %v316
    %v885 = vunpack.c.l.b16 %v317
    %v886 = vunpack.c.l.b16 %v318
    %v887 = vunpack.c.l.b16 %v319
    %v888 = vunpack.c.l.b16 %v320
    %v889 = vunpack.c.l.b16 %v321
    %v890 = vunpack.c.l.b16 %v322
    %v891 = vunpack.c.l.b16 %v323
    %v892 = vunpack.c.l.b16 %v324
    %v893 = vunpack.c.l.b16 %v325
    %v894 = vunpack.c.l.b16 %v326
    %v895 = vunpack.c.l.b16 %v327
    %v896 = vunpack.c.l.b16 %v328
    %v897 = vunpack.c.l.b16 %v329
    %v898 = vunpack.c.l.b16 %v330
    %v899 = vunpack.c.l.b16 %v331
    %v900 = vpack.c.b16 %v645, %v644
    %v901 = vpack.c.b16 %v647, %v646
    %v902 = vpack.c.b16 %v649, %v648
    %v903 = vpack.c.b16 %v651, %v650
    %v904 = vpack.c.b16 %v653, %v652
    %v905 = vpack.c.b16 %v655, %v654
    %v906 = vpack.c.b16 %v657, %v656
    %v907 = vpack.c.b16 %v659, %v658
    %v908 = vpack.c.b16 %v661, %v660
    %v909 = vpack.c.b16 %v663, %v662
    %v910 = vpack.c.b16 %v665, %v664
    %v911 = vpack.c.b16 %v667, %v666
    %v912 = vpack.c.b16 %v669, %v668
    %v913 = vpack.c.b16 %v671, %v670
    %v914 = vpack.c.b16 %v673, %v672
    %v915 = vpack.c.b16 %v675, %v674
    %v916 = vpack.c.b16 %v677, %v676
    %v917 = vpack.c.b16 %v679, %v678
    %v918 = vpack.c.b16 %v681, %v680
    %v919 = vpack.c.b16 %v683, %v682
    %v920 = vpack.c.b16 %v685, %v684
    %v921 = vpack.c.b16 %v687, %v686
    %v922 = vpack.c.b16 %v689, %v688
    %v923 = vpack.c.b16 %v691, %v690
    %v924 = vpack.c.b16 %v693, %v692
    %v925 = vpack.c.b16 %v695, %v694
    %v926 = vpack.c.b16 %v697, %v696
    %v927 = vpack.c.b16 %v699, %v698
    %v928 = vpack.c.b16 %v701, %v700
    %v929 = vpack.c.b16 %v703, %v702
    %v930 = vpack.c.b16 %v705, %v704
    %v931 = vpack.c.b16 %v707, %v706
    %v932 = vpack.c.b16 %v709, %v708
    %v933 = vpack.c.b16 %v711, %v710
    %v934 = vpack.c.b16 %v713, %v712
    %v935 = vpack.c.b16 %v715, %v714
    %v936 = vpack.c.b16 %v717, %v716
    %v937 = vpack.c.b16 %v719, %v718
    %v938 = vpack.c.b16 %v721, %v720
    %v939 = vpack.c.b16 %v723, %v722
    %v940 = vpack.c.b16 %v725, %v724
    %v941 = vpack.c.b16 %v727, %v726
    %v942 = vpack.c.b16 %v729, %v728
    %v943 = vpack.c.b16 %v731, %v730
    %v944 = vpack.c.b16 %v733, %v732
    %v945 = vpack.c.b16 %v735, %v734
    %v946 = vpack.c.b16 %v737, %v736
    %v947 = vpack.c.b16 %v739, %v738
    %v948 = vpack.c.b16 %v741, %v740
    %v949 = vpack.c.b16 %v743, %v742
    %v950 = vpack.c.b16 %v745, %v744
    %v951 = vpack.c.b16 %v747, %v746
    %v952 = vpack.c.b16 %v749, %v748
    %v953 = vpack.c.b16 %v751, %v750
    %v954 = vpack.c.b16 %v753, %v752
    %v955 = vpack.c.b16 %v755, %v754
    %v956 = vpack.c.b16 %v757, %v756
    %v957 = vpack.c.b16 %v759, %v758
    %v958 = vpack.c.b16 %v761, %v760
    %v959 = vpack.c.b16 %v763, %v762
    %v960 = vpack.c.b16 %v765, %v764
    %v961 = vpack.c.b16 %v767, %v766
    %v962 = vpack.c.b16 %v769, %v768
    %v963 = vpack.c.b16 %v771, %v770
    %v964 = vpack.c.b16 %v773, %v772
    %v965 = vpack.c.b16 %v775, %v774
    %v966 = vpack.c.b16 %v777, %v776
    %v967 = vpack.c.b16 %v779, %v778
    %v968 = vpack.c.b16 %v781, %v780
    %v969 = vpack.c.b16 %v783, %v782
    %v970 = vpack.c.b16 %v785, %v784
    %v971 = vpack.c.b16 %v787, %v786
    %v972 = vpack.c.b16 %v789, %v788
    %v973 = vpack.c.b16 %v791, %v790
    %v974 = vpack.c.b16 %v793, %v792
    %v975 = vpack.c.b16 %v795, %v794
    %v976 = vpack.c.b16 %v797, %v796
    %v977 = vpack.c.b16 %v799, %v798
    %v978 = vpack.c.b16 %v801, %v800
    %v979 = vpack.c.b16 %v803, %v802
    %v980 = vpack.c.b16 %v805, %v804
    %v981 = vpack.c.b16 %v807, %v806
    %v982 = vpack.c.b16 %v809, %v808
    %v983 = vpack.c.b16 %v811, %v810
    %v984 = vpack.c.b16 %v813, %v812
    %v985 = vpack.c.b16 %v815, %v814
    %v986 = vpack.c.b16 %v817, %v816
    %v987 = vpack.c.b16 %v819, %v818
    %v988 = vpack.c.b16 %v821, %v820
    %v989 = vpack.c.b16 %v823, %v822
    %v990 = vpack.c.b16 %v825, %v824
    %v991 = vpack.c.b16 %v827, %v826
    %v992 = vpack.c.b16 %v829, %v828
    %v993 = vpack.c.b16 %v831, %v830
    %v994 = vpack.c.b16 %v833, %v832
    %v995 = vpack.c.b16 %v835, %v834
    %v996 = vpack.c.b16 %v837, %v836
    %v997 = vpack.c.b16 %v839, %v838
    %v998 = vpack.c.b16 %v841, %v840
    %v999 = vpack.c.b16 %v843, %v842
    %v1000 = vpack.c.b16 %v845, %v844
    %v1001 = vpack.c.b16 %v847, %v846
    %v1002 = vpack.c.b16 %v849, %v848
    %v1003 = vpack.c.b16 %v851, %v850
    %v1004 = vpack.c.b16 %v853, %v852
    %v1005 = vpack.c.b16 %v855, %v854
    %v1006 = vpack.c.b16 %v857, %v856
    %v1007 = vpack.c.b16 %v859, %v858
    %v1008 = vpack.c.b16 %v861, %v860
    %v1009 = vpack.c.b16 %v863, %v862
    %v1010 = vpack.c.b16 %v865, %v864
    %v1011 = vpack.c.b16 %v867, %v866
    %v1012 = vpack.c.b16 %v869, %v868
    %v1013 = vpack.c.b16 %v871, %v870
    %v1014 = vpack.c.b16 %v873, %v872
    %v1015 = vpack.c.b16 %v875, %v874
    %v1016 = vpack.c.b16 %v877, %v876
    %v1017 = vpack.c.b16 %v879, %v878
    %v1018 = vpack.c.b16 %v881, %v880
    %v1019 = vpack.c.b16 %v883, %v882
    %v1020 = vpack.c.b16 %v885, %v884
    %v1021 = vpack.c.b16 %v887, %v886
    %v1022 = vpack.c.b16 %v889, %v888
    %v1023 = vpack.c.b16 %v891, %v890
    %v1024 = vpack.c.b16 %v893, %v892
    %v1025 = vpack.c.b16 %v895, %v894
    %v1026 = vpack.c.b16 %v897, %v896
    %v1027 = vpack.c.b16 %v899, %v898
    %1156 = vmatprep.subr.bf16.mxu0 0
    %1157 = vmatpush1.bf16.msra.mxu0 %v900
    %1158 = vmatprep.subr.bf16.mxu0 0
    %1159 = vmatpush1.bf16.msra.mxu0 %v901
    %1160 = vmatprep.subr.bf16.mxu0 0
    %1161 = vmatpush1.bf16.msra.mxu0 %v902
    %1162 = vmatprep.subr.bf16.mxu0 0
    %1163 = vmatpush1.bf16.msra.mxu0 %v903
    %1164 = vmatprep.subr.bf16.mxu0 0
    %1165 = vmatpush1.bf16.msra.mxu0 %v904
    %1166 = vmatprep.subr.bf16.mxu0 0
    %1167 = vmatpush1.bf16.msra.mxu0 %v905
    %1168 = vmatprep.subr.bf16.mxu0 0
    %1169 = vmatpush1.bf16.msra.mxu0 %v906
    %1170 = vmatprep.subr.bf16.mxu0 0
    %1171 = vmatpush1.bf16.msra.mxu0 %v907
    %1172 = vmatprep.subr.bf16.mxu0 0
    %1173 = vmatpush1.bf16.msra.mxu0 %v908
    %1174 = vmatprep.subr.bf16.mxu0 0
    %1175 = vmatpush1.bf16.msra.mxu0 %v909
    %1176 = vmatprep.subr.bf16.mxu0 0
    %1177 = vmatpush1.bf16.msra.mxu0 %v910
    %1178 = vmatprep.subr.bf16.mxu0 0
    %1179 = vmatpush1.bf16.msra.mxu0 %v911
    %1180 = vmatprep.subr.bf16.mxu0 0
    %1181 = vmatpush1.bf16.msra.mxu0 %v912
    %1182 = vmatprep.subr.bf16.mxu0 0
    %1183 = vmatpush1.bf16.msra.mxu0 %v913
    %1184 = vmatprep.subr.bf16.mxu0 0
    %1185 = vmatpush1.bf16.msra.mxu0 %v914
    %1186 = vmatprep.subr.bf16.mxu0 0
    %1187 = vmatpush1.bf16.msra.mxu0 %v915
    %1188 = vmatprep.mubr.bf16.mxu0 %v357
    %1189 = vmatmul.mubr.bf16.gmra.mrb[0].mxu0 %v356
    %v1190 = vpop.f32.mrb[0].mxu0
    %v1191 = vadd.f32 0.0, %v1190
    %v1192 = vpop.f32.mrb[0].mxu0
    %v1193 = vpop.f32.mrb[0].mxu0
    %v1194 = vpop.f32.mrb[0].mxu0
    %1195 = vdwg.mxu0
    %1196 = vmatprep.subr.bf16.mxu0 0
    %1197 = vmatpush1.bf16.msra.mxu0 %v916
    %1198 = vmatprep.subr.bf16.mxu0 0
    %1199 = vmatpush1.bf16.msra.mxu0 %v917
    %1200 = vmatprep.subr.bf16.mxu0 0
    %1201 = vmatpush1.bf16.msra.mxu0 %v918
    %1202 = vmatprep.subr.bf16.mxu0 0
    %1203 = vmatpush1.bf16.msra.mxu0 %v919
    %1204 = vmatprep.subr.bf16.mxu0 0
    %1205 = vmatpush1.bf16.msra.mxu0 %v920
    %1206 = vmatprep.subr.bf16.mxu0 0
    %1207 = vmatpush1.bf16.msra.mxu0 %v921
    %1208 = vmatprep.subr.bf16.mxu0 0
    %1209 = vmatpush1.bf16.msra.mxu0 %v922
    %1210 = vmatprep.subr.bf16.mxu0 0
    %1211 = vmatpush1.bf16.msra.mxu0 %v923
    %1212 = vmatprep.subr.bf16.mxu0 0
    %1213 = vmatpush1.bf16.msra.mxu0 %v924
    %1214 = vmatprep.subr.bf16.mxu0 0
    %1215 = vmatpush1.bf16.msra.mxu0 %v925
    %1216 = vmatprep.subr.bf16.mxu0 0
    %1217 = vmatpush1.bf16.msra.mxu0 %v926
    %1218 = vmatprep.subr.bf16.mxu0 0
    %1219 = vmatpush1.bf16.msra.mxu0 %v927
    %1220 = vmatprep.subr.bf16.mxu0 0
    %1221 = vmatpush1.bf16.msra.mxu0 %v928
    %1222 = vmatprep.subr.bf16.mxu0 0
    %1223 = vmatpush1.bf16.msra.mxu0 %v929
    %1224 = vmatprep.subr.bf16.mxu0 0
    %1225 = vmatpush1.bf16.msra.mxu0 %v930
    %1226 = vmatprep.subr.bf16.mxu0 0
    %1227 = vmatpush1.bf16.msra.mxu0 %v931
    %1228 = vmatprep.mubr.bf16.mxu0 %v359
    %1229 = vmatmul.mubr.bf16.gmra.mrb[0].mxu0 %v358
    %v1230 = vpop.f32.mrb[0].mxu0
    %v1231 = vadd.f32 %v1191, %v1230
    %v1232 = vpop.f32.mrb[0].mxu0
    %v1233 = vpop.f32.mrb[0].mxu0
    %v1234 = vpop.f32.mrb[0].mxu0
    %1235 = vdwg.mxu0
    %1236 = vmatprep.subr.bf16.mxu0 0
    %1237 = vmatpush1.bf16.msra.mxu0 %v932
    %1238 = vmatprep.subr.bf16.mxu0 0
    %1239 = vmatpush1.bf16.msra.mxu0 %v933
    %1240 = vmatprep.subr.bf16.mxu0 0
    %1241 = vmatpush1.bf16.msra.mxu0 %v934
    %1242 = vmatprep.subr.bf16.mxu0 0
    %1243 = vmatpush1.bf16.msra.mxu0 %v935
    %1244 = vmatprep.subr.bf16.mxu0 0
    %1245 = vmatpush1.bf16.msra.mxu0 %v936
    %1246 = vmatprep.subr.bf16.mxu0 0
    %1247 = vmatpush1.bf16.msra.mxu0 %v937
    %1248 = vmatprep.subr.bf16.mxu0 0
    %1249 = vmatpush1.bf16.msra.mxu0 %v938
    %1250 = vmatprep.subr.bf16.mxu0 0
    %1251 = vmatpush1.bf16.msra.mxu0 %v939
    %1252 = vmatprep.subr.bf16.mxu0 0
    %1253 = vmatpush1.bf16.msra.mxu0 %v940
    %1254 = vmatprep.subr.bf16.mxu0 0
    %1255 = vmatpush1.bf16.msra.mxu0 %v941
    %1256 = vmatprep.subr.bf16.mxu0 0
    %1257 = vmatpush1.bf16.msra.mxu0 %v942
    %1258 = vmatprep.subr.bf16.mxu0 0
    %1259 = vmatpush1.bf16.msra.mxu0 %v943
    %1260 = vmatprep.subr.bf16.mxu0 0
    %1261 = vmatpush1.bf16.msra.mxu0 %v944
    %1262 = vmatprep.subr.bf16.mxu0 0
    %1263 = vmatpush1.bf16.msra.mxu0 %v945
    %1264 = vmatprep.subr.bf16.mxu0 0
    %1265 = vmatpush1.bf16.msra.mxu0 %v946
    %1266 = vmatprep.subr.bf16.mxu0 0
    %1267 = vmatpush1.bf16.msra.mxu0 %v947
    %1268 = vmatprep.mubr.bf16.mxu0 %v361
    %1269 = vmatmul.mubr.bf16.gmra.mrb[0].mxu0 %v360
    %v1270 = vpop.f32.mrb[0].mxu0
    %v1271 = vadd.f32 %v1231, %v1270
    %v1272 = vpop.f32.mrb[0].mxu0
    %v1273 = vpop.f32.mrb[0].mxu0
    %v1274 = vpop.f32.mrb[0].mxu0
    %1275 = vdwg.mxu0
    %1276 = vmatprep.subr.bf16.mxu0 0
    %1277 = vmatpush1.bf16.msra.mxu0 %v948
    %1278 = vmatprep.subr.bf16.mxu0 0
    %1279 = vmatpush1.bf16.msra.mxu0 %v949
    %1280 = vmatprep.subr.bf16.mxu0 0
    %1281 = vmatpush1.bf16.msra.mxu0 %v950
    %1282 = vmatprep.subr.bf16.mxu0 0
    %1283 = vmatpush1.bf16.msra.mxu0 %v951
    %1284 = vmatprep.subr.bf16.mxu0 0
    %1285 = vmatpush1.bf16.msra.mxu0 %v952
    %1286 = vmatprep.subr.bf16.mxu0 0
    %1287 = vmatpush1.bf16.msra.mxu0 %v953
    %1288 = vmatprep.subr.bf16.mxu0 0
    %1289 = vmatpush1.bf16.msra.mxu0 %v954
    %1290 = vmatprep.subr.bf16.mxu0 0
    %1291 = vmatpush1.bf16.msra.mxu0 %v955
    %1292 = vmatprep.subr.bf16.mxu0 0
    %1293 = vmatpush1.bf16.msra.mxu0 %v956
    %1294 = vmatprep.subr.bf16.mxu0 0
    %1295 = vmatpush1.bf16.msra.mxu0 %v957
    %1296 = vmatprep.subr.bf16.mxu0 0
    %1297 = vmatpush1.bf16.msra.mxu0 %v958
    %1298 = vmatprep.subr.bf16.mxu0 0
    %1299 = vmatpush1.bf16.msra.mxu0 %v959
    %1300 = vmatprep.subr.bf16.mxu0 0
    %1301 = vmatpush1.bf16.msra.mxu0 %v960
    %1302 = vmatprep.subr.bf16.mxu0 0
    %1303 = vmatpush1.bf16.msra.mxu0 %v961
    %1304 = vmatprep.subr.bf16.mxu0 0
    %1305 = vmatpush1.bf16.msra.mxu0 %v962
    %1306 = vmatprep.subr.bf16.mxu0 0
    %1307 = vmatpush1.bf16.msra.mxu0 %v963
    %1308 = vmatprep.mubr.bf16.mxu0 %v363
    %1309 = vmatmul.mubr.bf16.gmra.mrb[0].mxu0 %v362
    %v1310 = vpop.f32.mrb[0].mxu0
    %v1311 = vadd.f32 %v1271, %v1310
    %v1312 = vpop.f32.mrb[0].mxu0
    %v1313 = vpop.f32.mrb[0].mxu0
    %v1314 = vpop.f32.mrb[0].mxu0
    %1315 = vdwg.mxu0
    %1316 = vmatprep.subr.bf16.mxu0 0
    %1317 = vmatpush1.bf16.msra.mxu0 %v964
    %1318 = vmatprep.subr.bf16.mxu0 0
    %1319 = vmatpush1.bf16.msra.mxu0 %v965
    %1320 = vmatprep.subr.bf16.mxu0 0
    %1321 = vmatpush1.bf16.msra.mxu0 %v966
    %1322 = vmatprep.subr.bf16.mxu0 0
    %1323 = vmatpush1.bf16.msra.mxu0 %v967
    %1324 = vmatprep.subr.bf16.mxu0 0
    %1325 = vmatpush1.bf16.msra.mxu0 %v968
    %1326 = vmatprep.subr.bf16.mxu0 0
    %1327 = vmatpush1.bf16.msra.mxu0 %v969
    %1328 = vmatprep.subr.bf16.mxu0 0
    %1329 = vmatpush1.bf16.msra.mxu0 %v970
    %1330 = vmatprep.subr.bf16.mxu0 0
    %1331 = vmatpush1.bf16.msra.mxu0 %v971
    %1332 = vmatprep.subr.bf16.mxu0 0
    %1333 = vmatpush1.bf16.msra.mxu0 %v972
    %1334 = vmatprep.subr.bf16.mxu0 0
    %1335 = vmatpush1.bf16.msra.mxu0 %v973
    %1336 = vmatprep.subr.bf16.mxu0 0
    %1337 = vmatpush1.bf16.msra.mxu0 %v974
    %1338 = vmatprep.subr.bf16.mxu0 0
    %1339 = vmatpush1.bf16.msra.mxu0 %v975
    %1340 = vmatprep.subr.bf16.mxu0 0
    %1341 = vmatpush1.bf16.msra.mxu0 %v976
    %1342 = vmatprep.subr.bf16.mxu0 0
    %1343 = vmatpush1.bf16.msra.mxu0 %v977
    %1344 = vmatprep.subr.bf16.mxu0 0
    %1345 = vmatpush1.bf16.msra.mxu0 %v978
    %1346 = vmatprep.subr.bf16.mxu0 0
    %1347 = vmatpush1.bf16.msra.mxu0 %v979
    %1348 = vmatprep.mubr.bf16.mxu0 %v365
    %1349 = vmatmul.mubr.bf16.gmra.mrb[0].mxu0 %v364
    %v1350 = vpop.f32.mrb[0].mxu0
    %v1351 = vadd.f32 %v1311, %v1350
    %v1352 = vpop.f32.mrb[0].mxu0
    %v1353 = vpop.f32.mrb[0].mxu0
    %v1354 = vpop.f32.mrb[0].mxu0
    %1355 = vdwg.mxu0
    %1356 = vmatprep.subr.bf16.mxu0 0
    %1357 = vmatpush1.bf16.msra.mxu0 %v980
    %1358 = vmatprep.subr.bf16.mxu0 0
    %1359 = vmatpush1.bf16.msra.mxu0 %v981
    %1360 = vmatprep.subr.bf16.mxu0 0
    %1361 = vmatpush1.bf16.msra.mxu0 %v982
    %1362 = vmatprep.subr.bf16.mxu0 0
    %1363 = vmatpush1.bf16.msra.mxu0 %v983
    %1364 = vmatprep.subr.bf16.mxu0 0
    %1365 = vmatpush1.bf16.msra.mxu0 %v984
    %1366 = vmatprep.subr.bf16.mxu0 0
    %1367 = vmatpush1.bf16.msra.mxu0 %v985
    %1368 = vmatprep.subr.bf16.mxu0 0
    %1369 = vmatpush1.bf16.msra.mxu0 %v986
    %1370 = vmatprep.subr.bf16.mxu0 0
    %1371 = vmatpush1.bf16.msra.mxu0 %v987
    %1372 = vmatprep.subr.bf16.mxu0 0
    %1373 = vmatpush1.bf16.msra.mxu0 %v988
    %1374 = vmatprep.subr.bf16.mxu0 0
    %1375 = vmatpush1.bf16.msra.mxu0 %v989
    %1376 = vmatprep.subr.bf16.mxu0 0
    %1377 = vmatpush1.bf16.msra.mxu0 %v990
    %1378 = vmatprep.subr.bf16.mxu0 0
    %1379 = vmatpush1.bf16.msra.mxu0 %v991
    %1380 = vmatprep.subr.bf16.mxu0 0
    %1381 = vmatpush1.bf16.msra.mxu0 %v992
    %1382 = vmatprep.subr.bf16.mxu0 0
    %1383 = vmatpush1.bf16.msra.mxu0 %v993
    %1384 = vmatprep.subr.bf16.mxu0 0
    %1385 = vmatpush1.bf16.msra.mxu0 %v994
    %1386 = vmatprep.subr.bf16.mxu0 0
    %1387 = vmatpush1.bf16.msra.mxu0 %v995
    %1388 = vmatprep.mubr.bf16.mxu0 %v367
    %1389 = vmatmul.mubr.bf16.gmra.mrb[0].mxu0 %v366
    %v1390 = vpop.f32.mrb[0].mxu0
    %v1391 = vadd.f32 %v1351, %v1390
    %v1392 = vpop.f32.mrb[0].mxu0
    %v1393 = vpop.f32.mrb[0].mxu0
    %v1394 = vpop.f32.mrb[0].mxu0
    %1395 = vdwg.mxu0
    %1396 = vmatprep.subr.bf16.mxu0 0
    %1397 = vmatpush1.bf16.msra.mxu0 %v996
    %1398 = vmatprep.subr.bf16.mxu0 0
    %1399 = vmatpush1.bf16.msra.mxu0 %v997
    %1400 = vmatprep.subr.bf16.mxu0 0
    %1401 = vmatpush1.bf16.msra.mxu0 %v998
    %1402 = vmatprep.subr.bf16.mxu0 0
    %1403 = vmatpush1.bf16.msra.mxu0 %v999
    %1404 = vmatprep.subr.bf16.mxu0 0
    %1405 = vmatpush1.bf16.msra.mxu0 %v1000
    %1406 = vmatprep.subr.bf16.mxu0 0
    %1407 = vmatpush1.bf16.msra.mxu0 %v1001
    %1408 = vmatprep.subr.bf16.mxu0 0
    %1409 = vmatpush1.bf16.msra.mxu0 %v1002
    %1410 = vmatprep.subr.bf16.mxu0 0
    %1411 = vmatpush1.bf16.msra.mxu0 %v1003
    %1412 = vmatprep.subr.bf16.mxu0 0
    %1413 = vmatpush1.bf16.msra.mxu0 %v1004
    %1414 = vmatprep.subr.bf16.mxu0 0
    %1415 = vmatpush1.bf16.msra.mxu0 %v1005
    %1416 = vmatprep.subr.bf16.mxu0 0
    %1417 = vmatpush1.bf16.msra.mxu0 %v1006
    %1418 = vmatprep.subr.bf16.mxu0 0
    %1419 = vmatpush1.bf16.msra.mxu0 %v1007
    %1420 = vmatprep.subr.bf16.mxu0 0
    %1421 = vmatpush1.bf16.msra.mxu0 %v1008
    %1422 = vmatprep.subr.bf16.mxu0 0
    %1423 = vmatpush1.bf16.msra.mxu0 %v1009
    %1424 = vmatprep.subr.bf16.mxu0 0
    %1425 = vmatpush1.bf16.msra.mxu0 %v1010
    %1426 = vmatprep.subr.bf16.mxu0 0
    %1427 = vmatpush1.bf16.msra.mxu0 %v1011
    %1428 = vmatprep.mubr.bf16.mxu0 %v369
    %1429 = vmatmul.mubr.bf16.gmra.mrb[0].mxu0 %v368
    %v1430 = vpop.f32.mrb[0].mxu0
    %v1431 = vadd.f32 %v1391, %v1430
    %v1432 = vpop.f32.mrb[0].mxu0
    %v1433 = vpop.f32.mrb[0].mxu0
    %v1434 = vpop.f32.mrb[0].mxu0
    %1435 = vdwg.mxu0
    %1436 = vmatprep.subr.bf16.mxu0 0
    %1437 = vmatpush1.bf16.msra.mxu0 %v1012
    %1438 = vmatprep.subr.bf16.mxu0 0
    %1439 = vmatpush1.bf16.msra.mxu0 %v1013
    %1440 = vmatprep.subr.bf16.mxu0 0
    %1441 = vmatpush1.bf16.msra.mxu0 %v1014
    %1442 = vmatprep.subr.bf16.mxu0 0
    %1443 = vmatpush1.bf16.msra.mxu0 %v1015
    %1444 = vmatprep.subr.bf16.mxu0 0
    %1445 = vmatpush1.bf16.msra.mxu0 %v1016
    %1446 = vmatprep.subr.bf16.mxu0 0
    %1447 = vmatpush1.bf16.msra.mxu0 %v1017
    %1448 = vmatprep.subr.bf16.mxu0 0
    %1449 = vmatpush1.bf16.msra.mxu0 %v1018
    %1450 = vmatprep.subr.bf16.mxu0 0
    %1451 = vmatpush1.bf16.msra.mxu0 %v1019
    %1452 = vmatprep.subr.bf16.mxu0 0
    %1453 = vmatpush1.bf16.msra.mxu0 %v1020
    %1454 = vmatprep.subr.bf16.mxu0 0
    %1455 = vmatpush1.bf16.msra.mxu0 %v1021
    %1456 = vmatprep.subr.bf16.mxu0 0
    %1457 = vmatpush1.bf16.msra.mxu0 %v1022
    %1458 = vmatprep.subr.bf16.mxu0 0
    %1459 = vmatpush1.bf16.msra.mxu0 %v1023
    %1460 = vmatprep.subr.bf16.mxu0 0
    %1461 = vmatpush1.bf16.msra.mxu0 %v1024
    %1462 = vmatprep.subr.bf16.mxu0 0
    %1463 = vmatpush1.bf16.msra.mxu0 %v1025
    %1464 = vmatprep.subr.bf16.mxu0 0
    %1465 = vmatpush1.bf16.msra.mxu0 %v1026
    %1466 = vmatprep.subr.bf16.mxu0 0
    %1467 = vmatpush1.bf16.msra.mxu0 %v1027
    %1468 = vmatprep.mubr.bf16.mxu0 %v371
    %1469 = vmatmul.mubr.bf16.gmra.mrb[0].mxu0 %v370
    %v1470 = vpop.f32.mrb[0].mxu0
    %v1471 = vadd.f32 %v1431, %v1470
    %v1472 = vpop.f32.mrb[0].mxu0
    %v1473 = vpop.f32.mrb[0].mxu0
    %v1474 = vpop.f32.mrb[0].mxu0
    %1475 = vdwg.mxu0
    %v1476 = vld [vmem:[#allocation7] sm:$0x1]
    %v1478 = vlaneseq
    %v1479 = vshrl.u32 %v1478, 7
    %v1480 = vsub.s32 0, %v1479
    %v1481 = vrot.slane %v1476, %v1480
    %v1483 = vmul.f32 %v1471, %v1481
    %v1484 = vld [vmem:[#allocation8] sm:$0x1]
    %v1486 = vlaneseq
    %v1487 = vshrl.u32 %v1486, 7
    %v1488 = vsub.s32 0, %v1487
    %v1489 = vrot.slane %v1484, %v1488
    %v1491 = vadd.f32 %v1483, %v1489
    %1492 = vst [vmem:[#allocation10] sm:$0xff] %v1491
    // Predicated region
    $region34: #{patch_embed_4_2_128.7} parent=1 // pred_check
      _
    $region35: #{patch_embed_4_2_128.7} parent=1 // pred_check_branch
      %1494 = sbr.rel (0) target = $region37
    $region36: #{patch_embed_4_2_128.7} parent=1 // pred_region
      %s1496 = ssub.s32 128, 128
      %1497 = vsyncadd [#allocation4], %s1496
      %s1499 = sshll.u32 [#allocation10], 4
      %s1500 = int_to_ptr.vmem [resolvable:$true] %s1499
      %1502 = dma.vmem_to_hbm [thread:$0]  %s1500, 128, %s4, [#allocation4]
    $region37: #{patch_embed_4_2_128.7} parent=1 // pred_fallthru
      _
    // Predicated region
    $region38: #{patch_embed_4_2_128.7} parent=1 // pred_check
      _
    $region39: #{patch_embed_4_2_128.7} parent=1 // pred_check_branch
      %1504 = sbr.rel (0) target = $region41
    $region40: #{patch_embed_4_2_128.7} parent=1 // pred_region
      %1505 = dma.done [#allocation4], 128
    $region41: #{patch_embed_4_2_128.7} parent=1 // pred_fallthru
      _
    %1506 = vsyncpa [#allocation3], 1
    %1507 = vsyncpa [#allocation6], 1
    %1508 = vsyncpa [#allocation9], 1
    %1509 = vsyncpa [#allocation4], 1

</llo_original>
